<compile_context>
chip_gen: v7x
topology: tpu7x:2x2x1
jax: 0.10.0
libtpu: 0.0.40
codegen_flags: <defaults>
</compile_context>

<pallas_src>
import math
import functools
import numpy as np

import jax
import jax.numpy as jnp
from jax.experimental import pallas as pl
from jax.experimental.pallas import tpu as pltpu


# ----------------------------------------------------------------------------
# Tiling helpers
# ----------------------------------------------------------------------------

_TM = 256            # row-tile target (sublane axis); safe for 16/32 MiB scoped VMEM
_TN = 512            # output-column tile target (lane axis), multiple of 128
_TK = 512            # contraction tile target, multiple of 128
_VMEM_LIMIT_BYTES = 32 * 1024 * 1024   # fits v5e/v6e (128 MiB) and v7x (64 MiB)


def _round_tile(dim, target, mult):
    """Whole dim if it is small, else the largest multiple of `mult` <= target.

    Non-dividing tiles are fine for row/column axes (boundary blocks are
    padded and the padded rows/cols are dropped on the masked store)."""
    if dim <= target:
        return dim
    return max(mult, (target // mult) * mult)


def _k_tile(K, target=_TK):
    """Contraction tile: must divide K exactly (padding on K would corrupt the
    accumulation) and be a multiple of 128 for lane alignment."""
    if K <= target:
        return K
    t = (target // 128) * 128
    while t >= 128:
        if K % t == 0:
            return t
        t -= 128
    return K   # fallback: no K tiling


def _compiler_params(dims):
    return pltpu.CompilerParams(dimension_semantics=dims,
                                vmem_limit_bytes=_VMEM_LIMIT_BYTES)


# ----------------------------------------------------------------------------
# Elementwise helpers (all built from ops with guaranteed Mosaic lowerings)
# ----------------------------------------------------------------------------

_SQRT1_2 = 0.7071067811865476


def _erf(x):
    # Abramowitz & Stegun 7.1.26 polynomial, |error| < 1.5e-7 (exact at f32
    # working precision); uses only exp / mul / add / abs / where.
    a1, a2, a3, a4, a5 = (0.254829592, -0.284496736, 1.421413741,
                          -1.453152027, 1.061405429)
    p = 0.3275911
    ax = jnp.abs(x)
    t = 1.0 / (1.0 + p * ax)
    poly = ((((a5 * t + a4) * t + a3) * t + a2) * t + a1) * t
    y = 1.0 - poly * jnp.exp(-ax * ax)
    return jnp.where(x < 0.0, -y, y)


def _gelu(x):
    # exact (erf-based) GELU, matching torch.nn.GELU() default
    return 0.5 * x * (1.0 + _erf(x * _SQRT1_2))


# ----------------------------------------------------------------------------
# Kernel 1: generic tiled matmul  out = [residual +] act(x @ W + b)
#   grid = (M/tm, N/tn, K/tk), f32 VMEM accumulator, bf16 MXU operands.
# ----------------------------------------------------------------------------

def _matmul_kernel(*refs, gelu, has_residual):
    if has_residual:
        x_ref, w_ref, b_ref, r_ref, o_ref, acc_ref = refs
    else:
        x_ref, w_ref, b_ref, o_ref, acc_ref = refs
        r_ref = None

    k = pl.program_id(2)

    @pl.when(k == 0)
    def _():
        acc_ref[...] = jnp.zeros_like(acc_ref)

    acc_ref[...] += jnp.dot(x_ref[...].astype(jnp.bfloat16), w_ref[...],
                            preferred_element_type=jnp.float32)

    @pl.when(k == pl.num_programs(2) - 1)
    def _():
        y = acc_ref[...] + b_ref[...]          # f32 epilogue
        if gelu:
            y = _gelu(y)
        if r_ref is not None:
            y = y + r_ref[...]
        o_ref[...] = y.astype(o_ref.dtype)


def pallas_matmul(x, w, b, residual=None, *, gelu=False):
    M, K = x.shape
    N = w.shape[1]
    tm = _round_tile(M, _TM, 8)
    tn = _round_tile(N, _TN, 128)
    tk = _k_tile(K)
    grid = (pl.cdiv(M, tm), pl.cdiv(N, tn), K // tk)

    in_specs = [
        pl.BlockSpec((tm, tk), lambda i, j, kk: (i, kk)),
        pl.BlockSpec((tk, tn), lambda i, j, kk: (kk, j)),
        pl.BlockSpec((1, tn), lambda i, j, kk: (0, j)),
    ]
    args = [x, w.astype(jnp.bfloat16), b.reshape(1, N)]
    if residual is not None:
        in_specs.append(pl.BlockSpec((tm, tn), lambda i, j, kk: (i, j)))
        args.append(residual)

    kern = functools.partial(_matmul_kernel, gelu=gelu,
                             has_residual=residual is not None)
    return pl.pallas_call(
        kern,
        out_shape=jax.ShapeDtypeStruct((M, N), jnp.float32),
        grid=grid,
        in_specs=in_specs,
        out_specs=pl.BlockSpec((tm, tn), lambda i, j, kk: (i, j)),
        scratch_shapes=[pltpu.VMEM((tm, tn), jnp.float32)],
        compiler_params=_compiler_params(("parallel", "parallel", "arbitrary")),
    )(*args)


# ----------------------------------------------------------------------------
# Kernel 2: fused LayerNorm + matmul (+ GELU)   out = act(LN(x) @ W + b)
#   grid = (M/tm, N/tn); E kept whole (LN needs the full row).
# ----------------------------------------------------------------------------

def _ln_matmul_kernel(x_ref, g_ref, b_ref, w_ref, bias_ref, o_ref, *, eps, gelu):
    x = x_ref[...]                                        # (tm, E) f32
    inv_e = 1.0 / x.shape[-1]
    s1 = jnp.sum(x, axis=-1, keepdims=True)
    s2 = jnp.sum(x * x, axis=-1, keepdims=True)
    mu = s1 * inv_e
    var = s2 * inv_e - mu * mu                            # single-pass stats
    xn = (x - mu) * jax.lax.rsqrt(var + eps) * g_ref[...] + b_ref[...]
    y = jnp.dot(xn.astype(jnp.bfloat16), w_ref[...],
                preferred_element_type=jnp.float32) + bias_ref[...]
    if gelu:
        y = _gelu(y)
    o_ref[...] = y.astype(o_ref.dtype)


def pallas_ln_matmul(x, gamma, beta, w, bias, *, gelu=False, eps=1e-5):
    M, E = x.shape
    N = w.shape[1]
    tm = _round_tile(M, _TM, 8)
    tn = _round_tile(N, _TN, 128)
    grid = (pl.cdiv(M, tm), pl.cdiv(N, tn))
    return pl.pallas_call(
        functools.partial(_ln_matmul_kernel, eps=eps, gelu=gelu),
        out_shape=jax.ShapeDtypeStruct((M, N), jnp.float32),
        grid=grid,
        in_specs=[
            pl.BlockSpec((tm, E), lambda i, j: (i, 0)),
            pl.BlockSpec((1, E), lambda i, j: (0, 0)),
            pl.BlockSpec((1, E), lambda i, j: (0, 0)),
            pl.BlockSpec((E, tn), lambda i, j: (0, j)),
            pl.BlockSpec((1, tn), lambda i, j: (0, j)),
        ],
        out_specs=pl.BlockSpec((tm, tn), lambda i, j: (i, j)),
        compiler_params=_compiler_params(("parallel", "parallel")),
    )(x, gamma.reshape(1, E), beta.reshape(1, E),
      w.astype(jnp.bfloat16), bias.reshape(1, N))


# ----------------------------------------------------------------------------
# Kernel 3: fused attention + out-projection + residual, one batch per grid step
#   out[b] = x[b] + softmax((q*scale) @ k^T) @ v @ Wproj + bproj
#   Heads are iterated with a small static loop; the out-projection is
#   accumulated per head so the final store is lane-dense (1, S, E).
# ----------------------------------------------------------------------------

def _attn_block_kernel(q_ref, kt_ref, v_ref, xres_ref, pw_ref, pb_ref, o_ref, *,
                       num_heads, head_dim):
    scale = 1.0 / math.sqrt(head_dim)
    # start from residual + projection bias; add each head's contribution.
    acc = xres_ref[0] + pb_ref[...]                                  # (S, E) f32
    # TODO(synk): for long sequences replace the full-S softmax with a kv-tiled
    # flash (online-softmax) variant; at these sizes a head fits VMEM easily.
    for h in range(num_heads):                                       # static unroll
        q = (q_ref[0, h] * scale).astype(jnp.bfloat16)               # (S, Dh)
        kt = kt_ref[0, h].astype(jnp.bfloat16)                       # (Dh, S)
        v = v_ref[0, h].astype(jnp.bfloat16)                         # (S, Dh)
        s = jnp.dot(q, kt, preferred_element_type=jnp.float32)       # (S, S) f32
        m = jnp.max(s, axis=-1, keepdims=True)
        p = jnp.exp(s - m)
        l = jnp.sum(p, axis=-1, keepdims=True)
        p = p * pl.reciprocal(l, approx=True)
        o_h = jnp.dot(p.astype(jnp.bfloat16), v,
                      preferred_element_type=jnp.float32)            # (S, Dh) f32
        # head-slice of the out-projection: (S, Dh) @ (Dh, E), accumulate in f32
        acc = acc + jnp.dot(o_h.astype(jnp.bfloat16), pw_ref[h],
                            preferred_element_type=jnp.float32)
    o_ref[0] = acc.astype(o_ref.dtype)


def pallas_attention_block(x_res, q, kt, v, proj_w_heads, proj_b, *, num_heads):
    B, S, E = x_res.shape
    Dh = E // num_heads
    kern = functools.partial(_attn_block_kernel, num_heads=num_heads, head_dim=Dh)
    return pl.pallas_call(
        kern,
        out_shape=jax.ShapeDtypeStruct((B, S, E), jnp.float32),
        grid=(B,),
        in_specs=[
            pl.BlockSpec((1, num_heads, S, Dh), lambda b: (b, 0, 0, 0)),
            pl.BlockSpec((1, num_heads, Dh, S), lambda b: (b, 0, 0, 0)),
            pl.BlockSpec((1, num_heads, S, Dh), lambda b: (b, 0, 0, 0)),
            pl.BlockSpec((1, S, E), lambda b: (b, 0, 0)),
            pl.BlockSpec((num_heads, Dh, E), lambda b: (0, 0, 0)),
            pl.BlockSpec((1, E), lambda b: (0, 0)),
        ],
        out_specs=pl.BlockSpec((1, S, E), lambda b: (b, 0, 0)),
        compiler_params=_compiler_params(("parallel",)),
    )(q, kt, v, x_res, proj_w_heads, proj_b.reshape(1, E))


# ----------------------------------------------------------------------------
# Kernel 4: final LayerNorm (row tiled, single-pass statistics)
# ----------------------------------------------------------------------------

def _layernorm_kernel(x_ref, g_ref, b_ref, o_ref, *, eps):
    x = x_ref[...]
    inv_e = 1.0 / x.shape[-1]
    s1 = jnp.sum(x, axis=-1, keepdims=True)
    s2 = jnp.sum(x * x, axis=-1, keepdims=True)
    mu = s1 * inv_e
    var = s2 * inv_e - mu * mu
    o_ref[...] = ((x - mu) * jax.lax.rsqrt(var + eps) * g_ref[...]
                  + b_ref[...]).astype(o_ref.dtype)


def pallas_layernorm(x, gamma, beta, eps=1e-5):
    M, E = x.shape
    tm = _round_tile(M, 1024, 8)
    return pl.pallas_call(
        functools.partial(_layernorm_kernel, eps=eps),
        out_shape=jax.ShapeDtypeStruct((M, E), jnp.float32),
        grid=(pl.cdiv(M, tm),),
        in_specs=[pl.BlockSpec((tm, E), lambda i: (i, 0)),
                  pl.BlockSpec((1, E), lambda i: (0, 0)),
                  pl.BlockSpec((1, E), lambda i: (0, 0))],
        out_specs=pl.BlockSpec((tm, E), lambda i: (i, 0)),
        compiler_params=_compiler_params(("parallel",)),
    )(x, gamma.reshape(1, E), beta.reshape(1, E))


# ----------------------------------------------------------------------------
# 2D sin-cos positional encoding (deterministic buffer, plain numpy)
# ----------------------------------------------------------------------------

def get_2d_pos_encoding(embedding_dimension, num_patches_x, num_patches_y,
                        cls_token=True):
    # tokens ordered row-major over (y, x) to match conv flatten(H, W/P).
    def sincos_1d(dim, pos):
        omega = np.arange(dim // 2, dtype=np.float32) / (dim / 2.0)
        omega = 1.0 / (10000.0 ** omega)
        out = np.einsum("m,d->md", pos.reshape(-1).astype(np.float32), omega)
        return np.concatenate([np.sin(out), np.cos(out)], axis=1)

    ys, xs = np.meshgrid(np.arange(num_patches_y, dtype=np.float32),
                         np.arange(num_patches_x, dtype=np.float32),
                         indexing="ij")
    emb = np.concatenate([sincos_1d(embedding_dimension // 2, ys),
                          sincos_1d(embedding_dimension // 2, xs)], axis=1)
    if cls_token:
        emb = np.concatenate(
            [np.zeros((1, embedding_dimension), np.float32), emb], axis=0)
    return emb.astype(np.float32)


# ----------------------------------------------------------------------------
# Parameter construction (deterministic, synthetic)
# ----------------------------------------------------------------------------

def init_params(key, *, patch_length, channels, num_patches_x, num_patches_y,
                embedding_dimension, depth, num_heads):
    E = embedding_dimension
    P = patch_length
    C = channels

    def nrm(k, shape, dtype=jnp.float32):
        return (0.02 * jax.random.normal(k, shape)).astype(dtype)

    # exactly 3 keys before the blocks + 8 keys per block
    keys = jax.random.split(key, 3 + 8 * depth)
    ki = iter(keys)

    params = {
        # torch conv weight (E, C, 1, P) flattened over (c, p) -> (C*P, E);
        # matmul weights are pre-cast to bf16 (MXU operands), biases stay f32.
        "patch_w": nrm(next(ki), (C * P, E), jnp.bfloat16),
        "patch_b": nrm(next(ki), (E,)),
        "cls_token": nrm(next(ki), (1, 1, E)),
        "pos": jnp.asarray(
            get_2d_pos_encoding(E, num_patches_x, num_patches_y, True))[None],
        "norm_g": jnp.ones((E,), jnp.float32),
        "norm_b": jnp.zeros((E,), jnp.float32),
        "blocks": [],
    }
    for _ in range(depth):
        blk = {
            "ln1_g": jnp.ones((E,), jnp.float32),
            "ln1_b": jnp.zeros((E,), jnp.float32),
            "qkv_w": nrm(next(ki), (E, 3 * E), jnp.bfloat16),
            "qkv_b": nrm(next(ki), (3 * E,)),
            "proj_w": nrm(next(ki), (E, E), jnp.bfloat16),
            "proj_b": nrm(next(ki), (E,)),
            "ln2_g": jnp.ones((E,), jnp.float32),
            "ln2_b": jnp.zeros((E,), jnp.float32),
            "fc1_w": nrm(next(ki), (E, 4 * E), jnp.bfloat16),
            "fc1_b": nrm(next(ki), (4 * E,)),
            "fc2_w": nrm(next(ki), (4 * E, E), jnp.bfloat16),
            "fc2_b": nrm(next(ki), (E,)),
        }
        params["blocks"].append(blk)
    return params


# ----------------------------------------------------------------------------
# Forward pass (MaskedEncoder2D.forward, return_attention=False)
# ----------------------------------------------------------------------------

def masked_encoder_2d_forward(params, x, *, patch_length, num_heads):
    B, C, H, W = x.shape
    P = patch_length
    Wp = W // P
    E = params["patch_w"].shape[1]
    Dh = E // num_heads

    # --- PatchEmbed: Conv2d(kernel=(1,P), stride=(1,P)) as a matmul ---------
    # (B, C, H, Wp, P) -> (B, H, Wp, C, P) -> (B*H*Wp, C*P)
    patches = x.reshape(B, C, H, Wp, P).transpose(0, 2, 3, 1, 4)
    patches = patches.reshape(B * H * Wp, C * P).astype(jnp.float32)
    tok = pallas_matmul(patches, params["patch_w"], params["patch_b"])
    tok = tok.reshape(B, H * Wp, E)                       # (B, N, E)

    # --- positional encoding + class token ----------------------------------
    tok = tok + params["pos"][:, 1:, :]
    cls = params["cls_token"] + params["pos"][:, :1, :]
    cls = jnp.broadcast_to(cls, (B, 1, E))
    xseq = jnp.concatenate([cls, tok], axis=1)            # (B, S, E)
    S = xseq.shape[1]

    # --- transformer blocks (pre-norm ViT block, mlp_ratio=4, GELU) ---------
    for blk in params["blocks"]:
        x2d = xseq.reshape(B * S, E)

        # (1) LN1 fused into the QKV projection
        qkv = pallas_ln_matmul(x2d, blk["ln1_g"], blk["ln1_b"],
                               blk["qkv_w"], blk["qkv_b"])          # (B*S, 3E)

        # head split (plain-JAX glue); k is pre-transposed so the kernel only
        # issues standard (M,K)x(K,N) MXU matmuls
        qkv = qkv.reshape(B, S, 3, num_heads, Dh)
        q = qkv[:, :, 0].transpose(0, 2, 1, 3)            # (B, H, S, Dh)
        kt = qkv[:, :, 1].transpose(0, 2, 3, 1)           # (B, H, Dh, S)
        v = qkv[:, :, 2].transpose(0, 2, 1, 3)            # (B, H, S, Dh)
        pw_heads = blk["proj_w"].reshape(num_heads, Dh, E)

        # (2) attention + out-projection + residual, fused per batch
        xseq = pallas_attention_block(xseq, q, kt, v, pw_heads, blk["proj_b"],
                                      num_heads=num_heads)          # (B, S, E)

        # (3) LN2 + FC1 + GELU fused, (4) FC2 + residual fused
        x2d = xseq.reshape(B * S, E)
        h = pallas_ln_matmul(x2d, blk["ln2_g"], blk["ln2_b"],
                             blk["fc1_w"], blk["fc1_b"], gelu=True)  # (B*S, 4E)
        x2d = pallas_matmul(h, blk["fc2_w"], blk["fc2_b"], residual=x2d)
        xseq = x2d.reshape(B, S, E)

    # --- final LayerNorm -----------------------------------------------------
    out = pallas_layernorm(xseq.reshape(B * S, E),
                           params["norm_g"], params["norm_b"])
    return out.reshape(B, S, E)


# ----------------------------------------------------------------------------
# main
# ----------------------------------------------------------------------------

if __name__ == "__main__":
    # small config consistent with the module
    patch_length = 4
    channels = 4
    num_patches_y = 16          # = H (patch kernel is (1, P))
    num_patches_x = 4           # = W // patch_length
    embedding_dimension = 32
    depth = 2
    num_heads = 4

    B = 2
    H = num_patches_y
    W = num_patches_x * patch_length

    key = jax.random.PRNGKey(0)
    kx, kp = jax.random.split(key)
    x = jax.random.normal(kx, (B, channels, H, W), dtype=jnp.float32)  # NCHW

    params = init_params(
        kp,
        patch_length=patch_length, channels=channels,
        num_patches_x=num_patches_x, num_patches_y=num_patches_y,
        embedding_dimension=embedding_dimension, depth=depth,
        num_heads=num_heads)

    fwd = jax.jit(functools.partial(
        masked_encoder_2d_forward,
        patch_length=patch_length, num_heads=num_heads))

    out = jax.block_until_ready(fwd(params, x))
    assert out.shape == (B, num_patches_x * num_patches_y + 1,
                         embedding_dimension)
    assert bool(jnp.all(jnp.isfinite(out)))
    print("KERNEL_OK")
</pallas_src>

<mosaic_0001>
module attributes {stable_mosaic.version = 11 : i64} {
  func.func @_matmul_kernel(%arg0: i32, %arg1: i32, %arg2: i32, %arg3: memref<128x16xf32, #tpu.memory_space<vmem>>, %arg4: memref<16x32xbf16, #tpu.memory_space<vmem>>, %arg5: memref<1x32xf32, #tpu.memory_space<vmem>>, %arg6: memref<128x32xf32, #tpu.memory_space<vmem>>, %arg7: memref<128x32xf32, #tpu.memory_space<vmem>>) attributes {dimension_semantics = [#tpu.dimension_semantics<parallel>, #tpu.dimension_semantics<parallel>, #tpu.dimension_semantics<arbitrary>], iteration_bounds = array<i64: 1, 1, 1>, scalar_prefetch = 0 : i64, scratch_operands = 1 : i64, tpu.core_type = #tpu.core_type<tc>, window_params = [{transform_indices = @transform_0, window_bounds = array<i64: 128, 16>}, {transform_indices = @transform_1, window_bounds = array<i64: 16, 32>}, {transform_indices = @transform_2, window_bounds = array<i64: 1, 32>}, {transform_indices = @transform_3, window_bounds = array<i64: 128, 32>}]} {
    %c0_i32 = arith.constant 0 : i32
    %0 = arith.cmpi eq, %arg2, %c0_i32 : i32
    %1 = arith.extui %0 : i1 to i32
    %c0_i32_0 = arith.constant 0 : i32
    %2 = arith.cmpi ne, %1, %c0_i32_0 : i32
    scf.if %2 {
      %cst_10 = arith.constant 0.000000e+00 : f32
      %13 = vector.broadcast %cst_10 : f32 to vector<128x32xf32>
      %c0_11 = arith.constant 0 : index
      %c0_12 = arith.constant 0 : index
      %14 = vector.load %arg7[%c0_11, %c0_12] : memref<128x32xf32, #tpu.memory_space<vmem>>, vector<128x32xf32>
      tpu.vector_store %arg7[%c0_11, %c0_12], %13 {strides = array<i32>} : memref<128x32xf32, #tpu.memory_space<vmem>>, vector<128x32xf32>,
    } else {
    }
    %c0 = arith.constant 0 : index
    %c0_1 = arith.constant 0 : index
    %3 = vector.load %arg7[%c0, %c0_1] : memref<128x32xf32, #tpu.memory_space<vmem>>, vector<128x32xf32>
    %c0_2 = arith.constant 0 : index
    %c0_3 = arith.constant 0 : index
    %4 = vector.load %arg3[%c0_2, %c0_3] : memref<128x16xf32, #tpu.memory_space<vmem>>, vector<128x16xf32>
    %5 = arith.truncf %4 : vector<128x16xf32> to vector<128x16xbf16>
    %c0_4 = arith.constant 0 : index
    %c0_5 = arith.constant 0 : index
    %6 = vector.load %arg4[%c0_4, %c0_5] : memref<16x32xbf16, #tpu.memory_space<vmem>>, vector<16x32xbf16>
    %cst = arith.constant dense<0.000000e+00> : vector<128x32xf32>
    %7 = tpu.matmul %5, %6, %cst {dimension_numbers = #tpu.dot_dimension_numbers<[1], [0], [0], [1], [0, 0, 1, 1], [], []>} : vector<128x16xbf16>, vector<16x32xbf16>, vector<128x32xf32> -> vector<128x32xf32>
    %8 = arith.addf %3, %7 : vector<128x32xf32>
    %c0_6 = arith.constant 0 : index
    %c0_7 = arith.constant 0 : index
    %9 = vector.load %arg7[%c0_6, %c0_7] : memref<128x32xf32, #tpu.memory_space<vmem>>, vector<128x32xf32>
    tpu.vector_store %arg7[%c0_6, %c0_7], %8 {strides = array<i32>} : memref<128x32xf32, #tpu.memory_space<vmem>>, vector<128x32xf32>,
    %c0_i32_8 = arith.constant 0 : i32
    %10 = arith.cmpi eq, %arg2, %c0_i32_8 : i32
    %11 = arith.extui %10 : i1 to i32
    %c0_i32_9 = arith.constant 0 : i32
    %12 = arith.cmpi ne, %11, %c0_i32_9 : i32
    scf.if %12 {
      %c0_10 = arith.constant 0 : index
      %c0_11 = arith.constant 0 : index
      %13 = vector.load %arg7[%c0_10, %c0_11] : memref<128x32xf32, #tpu.memory_space<vmem>>, vector<128x32xf32>
      %c0_12 = arith.constant 0 : index
      %c0_13 = arith.constant 0 : index
      %14 = vector.load %arg5[%c0_12, %c0_13] : memref<1x32xf32, #tpu.memory_space<vmem>>, vector<1x32xf32>
      %15 = vector.broadcast %14 : vector<1x32xf32> to vector<128x32xf32>
      %16 = arith.addf %13, %15 : vector<128x32xf32>
      %c0_14 = arith.constant 0 : index
      %c0_15 = arith.constant 0 : index
      %17 = vector.load %arg6[%c0_14, %c0_15] : memref<128x32xf32, #tpu.memory_space<vmem>>, vector<128x32xf32>
      tpu.vector_store %arg6[%c0_14, %c0_15], %16 {strides = array<i32>} : memref<128x32xf32, #tpu.memory_space<vmem>>, vector<128x32xf32>,
    } else {
    }
    return
  }
  func.func @transform_0(%arg0: i32, %arg1: i32, %arg2: i32) -> (i32, i32) {
    %c0_i32 = arith.constant 0 : i32
    return %arg0, %arg2 : i32, i32
  }
  func.func @transform_1(%arg0: i32, %arg1: i32, %arg2: i32) -> (i32, i32) {
    %c0_i32 = arith.constant 0 : i32
    return %arg2, %arg1 : i32, i32
  }
  func.func @transform_2(%arg0: i32, %arg1: i32, %arg2: i32) -> (i32, i32) {
    %c0_i32 = arith.constant 0 : i32
    %c0_i32_0 = arith.constant 0 : i32
    return %c0_i32, %arg1 : i32, i32
  }
  func.func @transform_3(%arg0: i32, %arg1: i32, %arg2: i32) -> (i32, i32) {
    %c0_i32 = arith.constant 0 : i32
    return %arg0, %arg1 : i32, i32
  }
}

module attributes {stable_mosaic.version = 11 : i64} {
  func.func @_ln_matmul_kernel(%arg0: i32, %arg1: i32, %arg2: memref<130x32xf32, #tpu.memory_space<vmem>>, %arg3: memref<1x32xf32, #tpu.memory_space<vmem>>, %arg4: memref<1x32xf32, #tpu.memory_space<vmem>>, %arg5: memref<32x96xbf16, #tpu.memory_space<vmem>>, %arg6: memref<1x96xf32, #tpu.memory_space<vmem>>, %arg7: memref<130x96xf32, #tpu.memory_space<vmem>>) attributes {dimension_semantics = [#tpu.dimension_semantics<parallel>, #tpu.dimension_semantics<parallel>], iteration_bounds = array<i64: 1, 1>, scalar_prefetch = 0 : i64, scratch_operands = 0 : i64, tpu.core_type = #tpu.core_type<tc>, window_params = [{transform_indices = @transform_0, window_bounds = array<i64: 130, 32>}, {pipeline_mode = #tpu.pipeline_mode<synchronous>, transform_indices = @transform_1, window_bounds = array<i64: 1, 32>}, {pipeline_mode = #tpu.pipeline_mode<synchronous>, transform_indices = @transform_2, window_bounds = array<i64: 1, 32>}, {transform_indices = @transform_3, window_bounds = array<i64: 32, 96>}, {transform_indices = @transform_4, window_bounds = array<i64: 1, 96>}, {transform_indices = @transform_5, window_bounds = array<i64: 130, 96>}]} {
    %c0 = arith.constant 0 : index
    %c0_0 = arith.constant 0 : index
    %0 = vector.load %arg2[%c0, %c0_0] : memref<130x32xf32, #tpu.memory_space<vmem>>, vector<130x32xf32>
    %cst = arith.constant dense<0.000000e+00> : vector<130xf32>
    %1 = vector.multi_reduction <add>, %0, %cst [1] : vector<130x32xf32> to vector<130xf32>
    %2 = vector.shape_cast %1 : vector<130xf32> to vector<130x1xf32>
    %3 = arith.mulf %0, %0 : vector<130x32xf32>
    %cst_1 = arith.constant dense<0.000000e+00> : vector<130xf32>
    %4 = vector.multi_reduction <add>, %3, %cst_1 [1] : vector<130x32xf32> to vector<130xf32>
    %5 = vector.shape_cast %4 : vector<130xf32> to vector<130x1xf32>
    %cst_2 = arith.constant 3.125000e-02 : f32
    %6 = vector.broadcast %cst_2 : f32 to vector<130x1xf32>
    %7 = arith.mulf %2, %6 : vector<130x1xf32>
    %cst_3 = arith.constant 3.125000e-02 : f32
    %8 = vector.broadcast %cst_3 : f32 to vector<130x1xf32>
    %9 = arith.mulf %5, %8 : vector<130x1xf32>
    %10 = arith.mulf %7, %7 : vector<130x1xf32>
    %11 = arith.subf %9, %10 : vector<130x1xf32>
    %12 = vector.broadcast %7 : vector<130x1xf32> to vector<130x32xf32>
    %13 = arith.subf %0, %12 : vector<130x32xf32>
    %cst_4 = arith.constant 9.99999974E-6 : f32
    %14 = vector.broadcast %cst_4 : f32 to vector<130x1xf32>
    %15 = arith.addf %11, %14 : vector<130x1xf32>
    %16 = math.rsqrt %15 : vector<130x1xf32>
    %17 = vector.broadcast %16 : vector<130x1xf32> to vector<130x32xf32>
    %18 = arith.mulf %13, %17 : vector<130x32xf32>
    %c0_5 = arith.constant 0 : index
    %c0_6 = arith.constant 0 : index
    %19 = vector.load %arg3[%c0_5, %c0_6] : memref<1x32xf32, #tpu.memory_space<vmem>>, vector<1x32xf32>
    %20 = vector.broadcast %19 : vector<1x32xf32> to vector<130x32xf32>
    %21 = arith.mulf %18, %20 : vector<130x32xf32>
    %c0_7 = arith.constant 0 : index
    %c0_8 = arith.constant 0 : index
    %22 = vector.load %arg4[%c0_7, %c0_8] : memref<1x32xf32, #tpu.memory_space<vmem>>, vector<1x32xf32>
    %23 = vector.broadcast %22 : vector<1x32xf32> to vector<130x32xf32>
    %24 = arith.addf %21, %23 : vector<130x32xf32>
    %25 = arith.truncf %24 : vector<130x32xf32> to vector<130x32xbf16>
    %c0_9 = arith.constant 0 : index
    %c0_10 = arith.constant 0 : index
    %26 = vector.load %arg5[%c0_9, %c0_10] : memref<32x96xbf16, #tpu.memory_space<vmem>>, vector<32x96xbf16>
    %cst_11 = arith.constant dense<0.000000e+00> : vector<130x96xf32>
    %27 = tpu.matmul %25, %26, %cst_11 {dimension_numbers = #tpu.dot_dimension_numbers<[1], [0], [0], [1], [0, 0, 1, 1], [], []>} : vector<130x32xbf16>, vector<32x96xbf16>, vector<130x96xf32> -> vector<130x96xf32>
    %c0_12 = arith.constant 0 : index
    %c0_13 = arith.constant 0 : index
    %28 = vector.load %arg6[%c0_12, %c0_13] : memref<1x96xf32, #tpu.memory_space<vmem>>, vector<1x96xf32>
    %29 = vector.broadcast %28 : vector<1x96xf32> to vector<130x96xf32>
    %30 = arith.addf %27, %29 : vector<130x96xf32>
    %c0_14 = arith.constant 0 : index
    %c0_15 = arith.constant 0 : index
    %31 = vector.load %arg7[%c0_14, %c0_15] : memref<130x96xf32, #tpu.memory_space<vmem>>, vector<130x96xf32>
    tpu.vector_store %arg7[%c0_14, %c0_15], %30 {strides = array<i32>} : memref<130x96xf32, #tpu.memory_space<vmem>>, vector<130x96xf32>,
    return
  }
  func.func @transform_0(%arg0: i32, %arg1: i32) -> (i32, i32) {
    %c0_i32 = arith.constant 0 : i32
    %c0_i32_0 = arith.constant 0 : i32
    return %arg0, %c0_i32 : i32, i32
  }
  func.func @transform_1(%arg0: i32, %arg1: i32) -> (i32, i32) {
    %c0_i32 = arith.constant 0 : i32
    %c0_i32_0 = arith.constant 0 : i32
    %c0_i32_1 = arith.constant 0 : i32
    return %c0_i32, %c0_i32_0 : i32, i32
  }
  func.func @transform_2(%arg0: i32, %arg1: i32) -> (i32, i32) {
    %c0_i32 = arith.constant 0 : i32
    %c0_i32_0 = arith.constant 0 : i32
    %c0_i32_1 = arith.constant 0 : i32
    return %c0_i32, %c0_i32_0 : i32, i32
  }
  func.func @transform_3(%arg0: i32, %arg1: i32) -> (i32, i32) {
    %c0_i32 = arith.constant 0 : i32
    %c0_i32_0 = arith.constant 0 : i32
    return %c0_i32, %arg1 : i32, i32
  }
  func.func @transform_4(%arg0: i32, %arg1: i32) -> (i32, i32) {
    %c0_i32 = arith.constant 0 : i32
    %c0_i32_0 = arith.constant 0 : i32
    return %c0_i32, %arg1 : i32, i32
  }
  func.func @transform_5(%arg0: i32, %arg1: i32) -> (i32, i32) {
    %c0_i32 = arith.constant 0 : i32
    return %arg0, %arg1 : i32, i32
  }
}

module attributes {stable_mosaic.version = 11 : i64} {
  func.func @_matmul_kernel(%arg0: i32, %arg1: i32, %arg2: i32, %arg3: memref<130x128xf32, #tpu.memory_space<vmem>>, %arg4: memref<128x32xbf16, #tpu.memory_space<vmem>>, %arg5: memref<1x32xf32, #tpu.memory_space<vmem>>, %arg6: memref<130x32xf32, #tpu.memory_space<vmem>>, %arg7: memref<130x32xf32, #tpu.memory_space<vmem>>, %arg8: memref<130x32xf32, #tpu.memory_space<vmem>>) attributes {dimension_semantics = [#tpu.dimension_semantics<parallel>, #tpu.dimension_semantics<parallel>, #tpu.dimension_semantics<arbitrary>], iteration_bounds = array<i64: 1, 1, 1>, scalar_prefetch = 0 : i64, scratch_operands = 1 : i64, tpu.core_type = #tpu.core_type<tc>, window_params = [{transform_indices = @transform_0, window_bounds = array<i64: 130, 128>}, {transform_indices = @transform_1, window_bounds = array<i64: 128, 32>}, {transform_indices = @transform_2, window_bounds = array<i64: 1, 32>}, {transform_indices = @transform_3, window_bounds = array<i64: 130, 32>}, {transform_indices = @transform_4, window_bounds = array<i64: 130, 32>}]} {
    %c0_i32 = arith.constant 0 : i32
    %0 = arith.cmpi eq, %arg2, %c0_i32 : i32
    %1 = arith.extui %0 : i1 to i32
    %c0_i32_0 = arith.constant 0 : i32
    %2 = arith.cmpi ne, %1, %c0_i32_0 : i32
    scf.if %2 {
      %cst_10 = arith.constant 0.000000e+00 : f32
      %13 = vector.broadcast %cst_10 : f32 to vector<130x32xf32>
      %c0_11 = arith.constant 0 : index
      %c0_12 = arith.constant 0 : index
      %14 = vector.load %arg8[%c0_11, %c0_12] : memref<130x32xf32, #tpu.memory_space<vmem>>, vector<130x32xf32>
      tpu.vector_store %arg8[%c0_11, %c0_12], %13 {strides = array<i32>} : memref<130x32xf32, #tpu.memory_space<vmem>>, vector<130x32xf32>,
    } else {
    }
    %c0 = arith.constant 0 : index
    %c0_1 = arith.constant 0 : index
    %3 = vector.load %arg8[%c0, %c0_1] : memref<130x32xf32, #tpu.memory_space<vmem>>, vector<130x32xf32>
    %c0_2 = arith.constant 0 : index
    %c0_3 = arith.constant 0 : index
    %4 = vector.load %arg3[%c0_2, %c0_3] : memref<130x128xf32, #tpu.memory_space<vmem>>, vector<130x128xf32>
    %5 = arith.truncf %4 : vector<130x128xf32> to vector<130x128xbf16>
    %c0_4 = arith.constant 0 : index
    %c0_5 = arith.constant 0 : index
    %6 = vector.load %arg4[%c0_4, %c0_5] : memref<128x32xbf16, #tpu.memory_space<vmem>>, vector<128x32xbf16>
    %cst = arith.constant dense<0.000000e+00> : vector<130x32xf32>
    %7 = tpu.matmul %5, %6, %cst {dimension_numbers = #tpu.dot_dimension_numbers<[1], [0], [0], [1], [0, 0, 1, 1], [], []>} : vector<130x128xbf16>, vector<128x32xbf16>, vector<130x32xf32> -> vector<130x32xf32>
    %8 = arith.addf %3, %7 : vector<130x32xf32>
    %c0_6 = arith.constant 0 : index
    %c0_7 = arith.constant 0 : index
    %9 = vector.load %arg8[%c0_6, %c0_7] : memref<130x32xf32, #tpu.memory_space<vmem>>, vector<130x32xf32>
    tpu.vector_store %arg8[%c0_6, %c0_7], %8 {strides = array<i32>} : memref<130x32xf32, #tpu.memory_space<vmem>>, vector<130x32xf32>,
    %c0_i32_8 = arith.constant 0 : i32
    %10 = arith.cmpi eq, %arg2, %c0_i32_8 : i32
    %11 = arith.extui %10 : i1 to i32
    %c0_i32_9 = arith.constant 0 : i32
    %12 = arith.cmpi ne, %11, %c0_i32_9 : i32
    scf.if %12 {
      %c0_10 = arith.constant 0 : index
      %c0_11 = arith.constant 0 : index
      %13 = vector.load %arg8[%c0_10, %c0_11] : memref<130x32xf32, #tpu.memory_space<vmem>>, vector<130x32xf32>
      %c0_12 = arith.constant 0 : index
      %c0_13 = arith.constant 0 : index
      %14 = vector.load %arg5[%c0_12, %c0_13] : memref<1x32xf32, #tpu.memory_space<vmem>>, vector<1x32xf32>
      %15 = vector.broadcast %14 : vector<1x32xf32> to vector<130x32xf32>
      %16 = arith.addf %13, %15 : vector<130x32xf32>
      %c0_14 = arith.constant 0 : index
      %c0_15 = arith.constant 0 : index
      %17 = vector.load %arg6[%c0_14, %c0_15] : memref<130x32xf32, #tpu.memory_space<vmem>>, vector<130x32xf32>
      %18 = arith.addf %16, %17 : vector<130x32xf32>
      %c0_16 = arith.constant 0 : index
      %c0_17 = arith.constant 0 : index
      %19 = vector.load %arg7[%c0_16, %c0_17] : memref<130x32xf32, #tpu.memory_space<vmem>>, vector<130x32xf32>
      tpu.vector_store %arg7[%c0_16, %c0_17], %18 {strides = array<i32>} : memref<130x32xf32, #tpu.memory_space<vmem>>, vector<130x32xf32>,
    } else {
    }
    return
  }
  func.func @transform_0(%arg0: i32, %arg1: i32, %arg2: i32) -> (i32, i32) {
    %c0_i32 = arith.constant 0 : i32
    return %arg0, %arg2 : i32, i32
  }
  func.func @transform_1(%arg0: i32, %arg1: i32, %arg2: i32) -> (i32, i32) {
    %c0_i32 = arith.constant 0 : i32
    return %arg2, %arg1 : i32, i32
  }
  func.func @transform_2(%arg0: i32, %arg1: i32, %arg2: i32) -> (i32, i32) {
    %c0_i32 = arith.constant 0 : i32
    %c0_i32_0 = arith.constant 0 : i32
    return %c0_i32, %arg1 : i32, i32
  }
  func.func @transform_3(%arg0: i32, %arg1: i32, %arg2: i32) -> (i32, i32) {
    %c0_i32 = arith.constant 0 : i32
    return %arg0, %arg1 : i32, i32
  }
  func.func @transform_4(%arg0: i32, %arg1: i32, %arg2: i32) -> (i32, i32) {
    %c0_i32 = arith.constant 0 : i32
    return %arg0, %arg1 : i32, i32
  }
}

module attributes {stable_mosaic.version = 11 : i64} {
  func.func @_attn_block_kernel(%arg0: i32, %arg1: memref<1x4x65x8xf32, #tpu.memory_space<vmem>>, %arg2: memref<1x4x8x65xf32, #tpu.memory_space<vmem>>, %arg3: memref<1x4x65x8xf32, #tpu.memory_space<vmem>>, %arg4: memref<1x65x32xf32, #tpu.memory_space<vmem>>, %arg5: memref<4x8x32xbf16, #tpu.memory_space<vmem>>, %arg6: memref<1x32xf32, #tpu.memory_space<vmem>>, %arg7: memref<1x65x32xf32, #tpu.memory_space<vmem>>) attributes {dimension_semantics = [#tpu.dimension_semantics<parallel>], iteration_bounds = array<i64: 2>, scalar_prefetch = 0 : i64, scratch_operands = 0 : i64, tpu.core_type = #tpu.core_type<tc>, window_params = [{transform_indices = @transform_0, window_bounds = array<i64: 1, 4, 65, 8>}, {transform_indices = @transform_1, window_bounds = array<i64: 1, 4, 8, 65>}, {transform_indices = @transform_2, window_bounds = array<i64: 1, 4, 65, 8>}, {transform_indices = @transform_3, window_bounds = array<i64: 1, 65, 32>}, {pipeline_mode = #tpu.pipeline_mode<synchronous>, transform_indices = @transform_4, window_bounds = array<i64: 4, 8, 32>}, {pipeline_mode = #tpu.pipeline_mode<synchronous>, transform_indices = @transform_5, window_bounds = array<i64: 1, 32>}, {transform_indices = @transform_6, window_bounds = array<i64: 1, 65, 32>}]} {
    %c0 = arith.constant 0 : index
    %c0_0 = arith.constant 0 : index
    %c0_1 = arith.constant 0 : index
    %0 = vector.load %arg4[%c0, %c0_0, %c0_1] : memref<1x65x32xf32, #tpu.memory_space<vmem>>, vector<1x65x32xf32>
    %1 = vector.shape_cast %0 : vector<1x65x32xf32> to vector<65x32xf32>
    %c0_2 = arith.constant 0 : index
    %c0_3 = arith.constant 0 : index
    %2 = vector.load %arg6[%c0_2, %c0_3] : memref<1x32xf32, #tpu.memory_space<vmem>>, vector<1x32xf32>
    %3 = vector.broadcast %2 : vector<1x32xf32> to vector<65x32xf32>
    %4 = arith.addf %1, %3 : vector<65x32xf32>
    %c0_4 = arith.constant 0 : index
    %c0_5 = arith.constant 0 : index
    %c0_6 = arith.constant 0 : index
    %c0_7 = arith.constant 0 : index
    %5 = vector.load %arg1[%c0_4, %c0_5, %c0_6, %c0_7] : memref<1x4x65x8xf32, #tpu.memory_space<vmem>>, vector<1x1x65x8xf32>
    %6 = vector.shape_cast %5 : vector<1x1x65x8xf32> to vector<65x8xf32>
    %cst = arith.constant 0.353553385 : f32
    %7 = vector.broadcast %cst : f32 to vector<65x8xf32>
    %8 = arith.mulf %6, %7 : vector<65x8xf32>
    %9 = arith.truncf %8 : vector<65x8xf32> to vector<65x8xbf16>
    %c0_8 = arith.constant 0 : index
    %c0_9 = arith.constant 0 : index
    %c0_10 = arith.constant 0 : index
    %c0_11 = arith.constant 0 : index
    %10 = vector.load %arg2[%c0_8, %c0_9, %c0_10, %c0_11] : memref<1x4x8x65xf32, #tpu.memory_space<vmem>>, vector<1x1x8x65xf32>
    %11 = vector.shape_cast %10 : vector<1x1x8x65xf32> to vector<8x65xf32>
    %12 = arith.truncf %11 : vector<8x65xf32> to vector<8x65xbf16>
    %c0_12 = arith.constant 0 : index
    %c0_13 = arith.constant 0 : index
    %c0_14 = arith.constant 0 : index
    %c0_15 = arith.constant 0 : index
    %13 = vector.load %arg3[%c0_12, %c0_13, %c0_14, %c0_15] : memref<1x4x65x8xf32, #tpu.memory_space<vmem>>, vector<1x1x65x8xf32>
    %14 = vector.shape_cast %13 : vector<1x1x65x8xf32> to vector<65x8xf32>
    %15 = arith.truncf %14 : vector<65x8xf32> to vector<65x8xbf16>
    %cst_16 = arith.constant dense<0.000000e+00> : vector<65x65xf32>
    %16 = tpu.matmul %9, %12, %cst_16 {dimension_numbers = #tpu.dot_dimension_numbers<[1], [0], [0], [1], [0, 0, 1, 1], [], []>} : vector<65x8xbf16>, vector<8x65xbf16>, vector<65x65xf32> -> vector<65x65xf32>
    %cst_17 = arith.constant dense<0xFF800000> : vector<65xf32>
    %17 = vector.multi_reduction <maximumf>, %16, %cst_17 [1] : vector<65x65xf32> to vector<65xf32>
    %18 = vector.shape_cast %17 : vector<65xf32> to vector<65x1xf32>
    %19 = vector.broadcast %18 : vector<65x1xf32> to vector<65x65xf32>
    %20 = arith.subf %16, %19 : vector<65x65xf32>
    %21 = math.exp %20 : vector<65x65xf32>
    %cst_18 = arith.constant dense<0.000000e+00> : vector<65xf32>
    %22 = vector.multi_reduction <add>, %21, %cst_18 [1] : vector<65x65xf32> to vector<65xf32>
    %23 = vector.shape_cast %22 : vector<65xf32> to vector<65x1xf32>
    %24 = tpu.reciprocal %23 {approx = true} : vector<65x1xf32> -> vector<65x1xf32>
    %25 = vector.broadcast %24 : vector<65x1xf32> to vector<65x65xf32>
    %26 = arith.mulf %21, %25 : vector<65x65xf32>
    %27 = arith.truncf %26 : vector<65x65xf32> to vector<65x65xbf16>
    %cst_19 = arith.constant dense<0.000000e+00> : vector<65x8xf32>
    %28 = tpu.matmul %27, %15, %cst_19 {dimension_numbers = #tpu.dot_dimension_numbers<[1], [0], [0], [1], [0, 0, 1, 1], [], []>} : vector<65x65xbf16>, vector<65x8xbf16>, vector<65x8xf32> -> vector<65x8xf32>
    %29 = arith.truncf %28 : vector<65x8xf32> to vector<65x8xbf16>
    %c0_20 = arith.constant 0 : index
    %c0_21 = arith.constant 0 : index
    %c0_22 = arith.constant 0 : index
    %30 = vector.load %arg5[%c0_20, %c0_21, %c0_22] : memref<4x8x32xbf16, #tpu.memory_space<vmem>>, vector<1x8x32xbf16>
    %31 = vector.shape_cast %30 : vector<1x8x32xbf16> to vector<8x32xbf16>
    %cst_23 = arith.constant dense<0.000000e+00> : vector<65x32xf32>
    %32 = tpu.matmul %29, %31, %cst_23 {dimension_numbers = #tpu.dot_dimension_numbers<[1], [0], [0], [1], [0, 0, 1, 1], [], []>} : vector<65x8xbf16>, vector<8x32xbf16>, vector<65x32xf32> -> vector<65x32xf32>
    %33 = arith.addf %4, %32 : vector<65x32xf32>
    %c0_24 = arith.constant 0 : index
    %c1 = arith.constant 1 : index
    %c0_25 = arith.constant 0 : index
    %c0_26 = arith.constant 0 : index
    %34 = vector.load %arg1[%c0_24, %c1, %c0_25, %c0_26] : memref<1x4x65x8xf32, #tpu.memory_space<vmem>>, vector<1x1x65x8xf32>
    %35 = vector.shape_cast %34 : vector<1x1x65x8xf32> to vector<65x8xf32>
    %cst_27 = arith.constant 0.353553385 : f32
    %36 = vector.broadcast %cst_27 : f32 to vector<65x8xf32>
    %37 = arith.mulf %35, %36 : vector<65x8xf32>
    %38 = arith.truncf %37 : vector<65x8xf32> to vector<65x8xbf16>
    %c0_28 = arith.constant 0 : index
    %c1_29 = arith.constant 1 : index
    %c0_30 = arith.constant 0 : index
    %c0_31 = arith.constant 0 : index
    %39 = vector.load %arg2[%c0_28, %c1_29, %c0_30, %c0_31] : memref<1x4x8x65xf32, #tpu.memory_space<vmem>>, vector<1x1x8x65xf32>
    %40 = vector.shape_cast %39 : vector<1x1x8x65xf32> to vector<8x65xf32>
    %41 = arith.truncf %40 : vector<8x65xf32> to vector<8x65xbf16>
    %c0_32 = arith.constant 0 : index
    %c1_33 = arith.constant 1 : index
    %c0_34 = arith.constant 0 : index
    %c0_35 = arith.constant 0 : index
    %42 = vector.load %arg3[%c0_32, %c1_33, %c0_34, %c0_35] : memref<1x4x65x8xf32, #tpu.memory_space<vmem>>, vector<1x1x65x8xf32>
    %43 = vector.shape_cast %42 : vector<1x1x65x8xf32> to vector<65x8xf32>
    %44 = arith.truncf %43 : vector<65x8xf32> to vector<65x8xbf16>
    %cst_36 = arith.constant dense<0.000000e+00> : vector<65x65xf32>
    %45 = tpu.matmul %38, %41, %cst_36 {dimension_numbers = #tpu.dot_dimension_numbers<[1], [0], [0], [1], [0, 0, 1, 1], [], []>} : vector<65x8xbf16>, vector<8x65xbf16>, vector<65x65xf32> -> vector<65x65xf32>
    %cst_37 = arith.constant dense<0xFF800000> : vector<65xf32>
    %46 = vector.multi_reduction <maximumf>, %45, %cst_37 [1] : vector<65x65xf32> to vector<65xf32>
    %47 = vector.shape_cast %46 : vector<65xf32> to vector<65x1xf32>
    %48 = vector.broadcast %47 : vector<65x1xf32> to vector<65x65xf32>
    %49 = arith.subf %45, %48 : vector<65x65xf32>
    %50 = math.exp %49 : vector<65x65xf32>
    %cst_38 = arith.constant dense<0.000000e+00> : vector<65xf32>
    %51 = vector.multi_reduction <add>, %50, %cst_38 [1] : vector<65x65xf32> to vector<65xf32>
    %52 = vector.shape_cast %51 : vector<65xf32> to vector<65x1xf32>
    %53 = tpu.reciprocal %52 {approx = true} : vector<65x1xf32> -> vector<65x1xf32>
    %54 = vector.broadcast %53 : vector<65x1xf32> to vector<65x65xf32>
    %55 = arith.mulf %50, %54 : vector<65x65xf32>
    %56 = arith.truncf %55 : vector<65x65xf32> to vector<65x65xbf16>
    %cst_39 = arith.constant dense<0.000000e+00> : vector<65x8xf32>
    %57 = tpu.matmul %56, %44, %cst_39 {dimension_numbers = #tpu.dot_dimension_numbers<[1], [0], [0], [1], [0, 0, 1, 1], [], []>} : vector<65x65xbf16>, vector<65x8xbf16>, vector<65x8xf32> -> vector<65x8xf32>
    %58 = arith.truncf %57 : vector<65x8xf32> to vector<65x8xbf16>
    %c1_40 = arith.constant 1 : index
    %c0_41 = arith.constant 0 : index
    %c0_42 = arith.constant 0 : index
    %59 = vector.load %arg5[%c1_40, %c0_41, %c0_42] : memref<4x8x32xbf16, #tpu.memory_space<vmem>>, vector<1x8x32xbf16>
    %60 = vector.shape_cast %59 : vector<1x8x32xbf16> to vector<8x32xbf16>
    %cst_43 = arith.constant dense<0.000000e+00> : vector<65x32xf32>
    %61 = tpu.matmul %58, %60, %cst_43 {dimension_numbers = #tpu.dot_dimension_numbers<[1], [0], [0], [1], [0, 0, 1, 1], [], []>} : vector<65x8xbf16>, vector<8x32xbf16>, vector<65x32xf32> -> vector<65x32xf32>
    %62 = arith.addf %33, %61 : vector<65x32xf32>
    %c0_44 = arith.constant 0 : index
    %c2 = arith.constant 2 : index
    %c0_45 = arith.constant 0 : index
    %c0_46 = arith.constant 0 : index
    %63 = vector.load %arg1[%c0_44, %c2, %c0_45, %c0_46] : memref<1x4x65x8xf32, #tpu.memory_space<vmem>>, vector<1x1x65x8xf32>
    %64 = vector.shape_cast %63 : vector<1x1x65x8xf32> to vector<65x8xf32>
    %cst_47 = arith.constant 0.353553385 : f32
    %65 = vector.broadcast %cst_47 : f32 to vector<65x8xf32>
    %66 = arith.mulf %64, %65 : vector<65x8xf32>
    %67 = arith.truncf %66 : vector<65x8xf32> to vector<65x8xbf16>
    %c0_48 = arith.constant 0 : index
    %c2_49 = arith.constant 2 : index
    %c0_50 = arith.constant 0 : index
    %c0_51 = arith.constant 0 : index
    %68 = vector.load %arg2[%c0_48, %c2_49, %c0_50, %c0_51] : memref<1x4x8x65xf32, #tpu.memory_space<vmem>>, vector<1x1x8x65xf32>
    %69 = vector.shape_cast %68 : vector<1x1x8x65xf32> to vector<8x65xf32>
    %70 = arith.truncf %69 : vector<8x65xf32> to vector<8x65xbf16>
    %c0_52 = arith.constant 0 : index
    %c2_53 = arith.constant 2 : index
    %c0_54 = arith.constant 0 : index
    %c0_55 = arith.constant 0 : index
    %71 = vector.load %arg3[%c0_52, %c2_53, %c0_54, %c0_55] : memref<1x4x65x8xf32, #tpu.memory_space<vmem>>, vector<1x1x65x8xf32>
    %72 = vector.shape_cast %71 : vector<1x1x65x8xf32> to vector<65x8xf32>
    %73 = arith.truncf %72 : vector<65x8xf32> to vector<65x8xbf16>
    %cst_56 = arith.constant dense<0.000000e+00> : vector<65x65xf32>
    %74 = tpu.matmul %67, %70, %cst_56 {dimension_numbers = #tpu.dot_dimension_numbers<[1], [0], [0], [1], [0, 0, 1, 1], [], []>} : vector<65x8xbf16>, vector<8x65xbf16>, vector<65x65xf32> -> vector<65x65xf32>
    %cst_57 = arith.constant dense<0xFF800000> : vector<65xf32>
    %75 = vector.multi_reduction <maximumf>, %74, %cst_57 [1] : vector<65x65xf32> to vector<65xf32>
    %76 = vector.shape_cast %75 : vector<65xf32> to vector<65x1xf32>
    %77 = vector.broadcast %76 : vector<65x1xf32> to vector<65x65xf32>
    %78 = arith.subf %74, %77 : vector<65x65xf32>
    %79 = math.exp %78 : vector<65x65xf32>
    %cst_58 = arith.constant dense<0.000000e+00> : vector<65xf32>
    %80 = vector.multi_reduction <add>, %79, %cst_58 [1] : vector<65x65xf32> to vector<65xf32>
    %81 = vector.shape_cast %80 : vector<65xf32> to vector<65x1xf32>
    %82 = tpu.reciprocal %81 {approx = true} : vector<65x1xf32> -> vector<65x1xf32>
    %83 = vector.broadcast %82 : vector<65x1xf32> to vector<65x65xf32>
    %84 = arith.mulf %79, %83 : vector<65x65xf32>
    %85 = arith.truncf %84 : vector<65x65xf32> to vector<65x65xbf16>
    %cst_59 = arith.constant dense<0.000000e+00> : vector<65x8xf32>
    %86 = tpu.matmul %85, %73, %cst_59 {dimension_numbers = #tpu.dot_dimension_numbers<[1], [0], [0], [1], [0, 0, 1, 1], [], []>} : vector<65x65xbf16>, vector<65x8xbf16>, vector<65x8xf32> -> vector<65x8xf32>
    %87 = arith.truncf %86 : vector<65x8xf32> to vector<65x8xbf16>
    %c2_60 = arith.constant 2 : index
    %c0_61 = arith.constant 0 : index
    %c0_62 = arith.constant 0 : index
    %88 = vector.load %arg5[%c2_60, %c0_61, %c0_62] : memref<4x8x32xbf16, #tpu.memory_space<vmem>>, vector<1x8x32xbf16>
    %89 = vector.shape_cast %88 : vector<1x8x32xbf16> to vector<8x32xbf16>
    %cst_63 = arith.constant dense<0.000000e+00> : vector<65x32xf32>
    %90 = tpu.matmul %87, %89, %cst_63 {dimension_numbers = #tpu.dot_dimension_numbers<[1], [0], [0], [1], [0, 0, 1, 1], [], []>} : vector<65x8xbf16>, vector<8x32xbf16>, vector<65x32xf32> -> vector<65x32xf32>
    %91 = arith.addf %62, %90 : vector<65x32xf32>
    %c0_64 = arith.constant 0 : index
    %c3 = arith.constant 3 : index
    %c0_65 = arith.constant 0 : index
    %c0_66 = arith.constant 0 : index
    %92 = vector.load %arg1[%c0_64, %c3, %c0_65, %c0_66] : memref<1x4x65x8xf32, #tpu.memory_space<vmem>>, vector<1x1x65x8xf32>
    %93 = vector.shape_cast %92 : vector<1x1x65x8xf32> to vector<65x8xf32>
    %cst_67 = arith.constant 0.353553385 : f32
    %94 = vector.broadcast %cst_67 : f32 to vector<65x8xf32>
    %95 = arith.mulf %93, %94 : vector<65x8xf32>
    %96 = arith.truncf %95 : vector<65x8xf32> to vector<65x8xbf16>
    %c0_68 = arith.constant 0 : index
    %c3_69 = arith.constant 3 : index
    %c0_70 = arith.constant 0 : index
    %c0_71 = arith.constant 0 : index
    %97 = vector.load %arg2[%c0_68, %c3_69, %c0_70, %c0_71] : memref<1x4x8x65xf32, #tpu.memory_space<vmem>>, vector<1x1x8x65xf32>
    %98 = vector.shape_cast %97 : vector<1x1x8x65xf32> to vector<8x65xf32>
    %99 = arith.truncf %98 : vector<8x65xf32> to vector<8x65xbf16>
    %c0_72 = arith.constant 0 : index
    %c3_73 = arith.constant 3 : index
    %c0_74 = arith.constant 0 : index
    %c0_75 = arith.constant 0 : index
    %100 = vector.load %arg3[%c0_72, %c3_73, %c0_74, %c0_75] : memref<1x4x65x8xf32, #tpu.memory_space<vmem>>, vector<1x1x65x8xf32>
    %101 = vector.shape_cast %100 : vector<1x1x65x8xf32> to vector<65x8xf32>
    %102 = arith.truncf %101 : vector<65x8xf32> to vector<65x8xbf16>
    %cst_76 = arith.constant dense<0.000000e+00> : vector<65x65xf32>
    %103 = tpu.matmul %96, %99, %cst_76 {dimension_numbers = #tpu.dot_dimension_numbers<[1], [0], [0], [1], [0, 0, 1, 1], [], []>} : vector<65x8xbf16>, vector<8x65xbf16>, vector<65x65xf32> -> vector<65x65xf32>
    %cst_77 = arith.constant dense<0xFF800000> : vector<65xf32>
    %104 = vector.multi_reduction <maximumf>, %103, %cst_77 [1] : vector<65x65xf32> to vector<65xf32>
    %105 = vector.shape_cast %104 : vector<65xf32> to vector<65x1xf32>
    %106 = vector.broadcast %105 : vector<65x1xf32> to vector<65x65xf32>
    %107 = arith.subf %103, %106 : vector<65x65xf32>
    %108 = math.exp %107 : vector<65x65xf32>
    %cst_78 = arith.constant dense<0.000000e+00> : vector<65xf32>
    %109 = vector.multi_reduction <add>, %108, %cst_78 [1] : vector<65x65xf32> to vector<65xf32>
    %110 = vector.shape_cast %109 : vector<65xf32> to vector<65x1xf32>
    %111 = tpu.reciprocal %110 {approx = true} : vector<65x1xf32> -> vector<65x1xf32>
    %112 = vector.broadcast %111 : vector<65x1xf32> to vector<65x65xf32>
    %113 = arith.mulf %108, %112 : vector<65x65xf32>
    %114 = arith.truncf %113 : vector<65x65xf32> to vector<65x65xbf16>
    %cst_79 = arith.constant dense<0.000000e+00> : vector<65x8xf32>
    %115 = tpu.matmul %114, %102, %cst_79 {dimension_numbers = #tpu.dot_dimension_numbers<[1], [0], [0], [1], [0, 0, 1, 1], [], []>} : vector<65x65xbf16>, vector<65x8xbf16>, vector<65x8xf32> -> vector<65x8xf32>
    %116 = arith.truncf %115 : vector<65x8xf32> to vector<65x8xbf16>
    %c3_80 = arith.constant 3 : index
    %c0_81 = arith.constant 0 : index
    %c0_82 = arith.constant 0 : index
    %117 = vector.load %arg5[%c3_80, %c0_81, %c0_82] : memref<4x8x32xbf16, #tpu.memory_space<vmem>>, vector<1x8x32xbf16>
    %118 = vector.shape_cast %117 : vector<1x8x32xbf16> to vector<8x32xbf16>
    %cst_83 = arith.constant dense<0.000000e+00> : vector<65x32xf32>
    %119 = tpu.matmul %116, %118, %cst_83 {dimension_numbers = #tpu.dot_dimension_numbers<[1], [0], [0], [1], [0, 0, 1, 1], [], []>} : vector<65x8xbf16>, vector<8x32xbf16>, vector<65x32xf32> -> vector<65x32xf32>
    %120 = arith.addf %91, %119 : vector<65x32xf32>
    %c0_84 = arith.constant 0 : index
    %c0_85 = arith.constant 0 : index
    %c0_86 = arith.constant 0 : index
    %121 = vector.load %arg7[%c0_84, %c0_85, %c0_86] : memref<1x65x32xf32, #tpu.memory_space<vmem>>, vector<1x65x32xf32>
    %122 = vector.shape_cast %121 : vector<1x65x32xf32> to vector<65x32xf32>
    %123 = vector.shape_cast %120 : vector<65x32xf32> to vector<1x65x32xf32>
    tpu.vector_store %arg7[%c0_84, %c0_85, %c0_86], %123 {strides = array<i32>} : memref<1x65x32xf32, #tpu.memory_space<vmem>>, vector<1x65x32xf32>,
    return
  }
  func.func @transform_0(%arg0: i32) -> (i32, i32, i32, i32) {
    %c0_i32 = arith.constant 0 : i32
    %c0_i32_0 = arith.constant 0 : i32
    %c0_i32_1 = arith.constant 0 : i32
    %c0_i32_2 = arith.constant 0 : i32
    return %arg0, %c0_i32, %c0_i32_0, %c0_i32_1 : i32, i32, i32, i32
  }
  func.func @transform_1(%arg0: i32) -> (i32, i32, i32, i32) {
    %c0_i32 = arith.constant 0 : i32
    %c0_i32_0 = arith.constant 0 : i32
    %c0_i32_1 = arith.constant 0 : i32
    %c0_i32_2 = arith.constant 0 : i32
    return %arg0, %c0_i32, %c0_i32_0, %c0_i32_1 : i32, i32, i32, i32
  }
  func.func @transform_2(%arg0: i32) -> (i32, i32, i32, i32) {
    %c0_i32 = arith.constant 0 : i32
    %c0_i32_0 = arith.constant 0 : i32
    %c0_i32_1 = arith.constant 0 : i32
    %c0_i32_2 = arith.constant 0 : i32
    return %arg0, %c0_i32, %c0_i32_0, %c0_i32_1 : i32, i32, i32, i32
  }
  func.func @transform_3(%arg0: i32) -> (i32, i32, i32) {
    %c0_i32 = arith.constant 0 : i32
    %c0_i32_0 = arith.constant 0 : i32
    %c0_i32_1 = arith.constant 0 : i32
    return %arg0, %c0_i32, %c0_i32_0 : i32, i32, i32
  }
  func.func @transform_4(%arg0: i32) -> (i32, i32, i32) {
    %c0_i32 = arith.constant 0 : i32
    %c0_i32_0 = arith.constant 0 : i32
    %c0_i32_1 = arith.constant 0 : i32
    %c0_i32_2 = arith.constant 0 : i32
    return %c0_i32, %c0_i32_0, %c0_i32_1 : i32, i32, i32
  }
  func.func @transform_5(%arg0: i32) -> (i32, i32) {
    %c0_i32 = arith.constant 0 : i32
    %c0_i32_0 = arith.constant 0 : i32
    %c0_i32_1 = arith.constant 0 : i32
    return %c0_i32, %c0_i32_0 : i32, i32
  }
  func.func @transform_6(%arg0: i32) -> (i32, i32, i32) {
    %c0_i32 = arith.constant 0 : i32
    %c0_i32_0 = arith.constant 0 : i32
    %c0_i32_1 = arith.constant 0 : i32
    return %arg0, %c0_i32, %c0_i32_0 : i32, i32, i32
  }
}

module attributes {stable_mosaic.version = 11 : i64} {
  func.func @_ln_matmul_kernel(%arg0: i32, %arg1: i32, %arg2: memref<130x32xf32, #tpu.memory_space<vmem>>, %arg3: memref<1x32xf32, #tpu.memory_space<vmem>>, %arg4: memref<1x32xf32, #tpu.memory_space<vmem>>, %arg5: memref<32x128xbf16, #tpu.memory_space<vmem>>, %arg6: memref<1x128xf32, #tpu.memory_space<vmem>>, %arg7: memref<130x128xf32, #tpu.memory_space<vmem>>) attributes {dimension_semantics = [#tpu.dimension_semantics<parallel>, #tpu.dimension_semantics<parallel>], iteration_bounds = array<i64: 1, 1>, scalar_prefetch = 0 : i64, scratch_operands = 0 : i64, tpu.core_type = #tpu.core_type<tc>, window_params = [{transform_indices = @transform_0, window_bounds = array<i64: 130, 32>}, {pipeline_mode = #tpu.pipeline_mode<synchronous>, transform_indices = @transform_1, window_bounds = array<i64: 1, 32>}, {pipeline_mode = #tpu.pipeline_mode<synchronous>, transform_indices = @transform_2, window_bounds = array<i64: 1, 32>}, {transform_indices = @transform_3, window_bounds = array<i64: 32, 128>}, {transform_indices = @transform_4, window_bounds = array<i64: 1, 128>}, {transform_indices = @transform_5, window_bounds = array<i64: 130, 128>}]} {
    %c0 = arith.constant 0 : index
    %c0_0 = arith.constant 0 : index
    %0 = vector.load %arg2[%c0, %c0_0] : memref<130x32xf32, #tpu.memory_space<vmem>>, vector<130x32xf32>
    %cst = arith.constant dense<0.000000e+00> : vector<130xf32>
    %1 = vector.multi_reduction <add>, %0, %cst [1] : vector<130x32xf32> to vector<130xf32>
    %2 = vector.shape_cast %1 : vector<130xf32> to vector<130x1xf32>
    %3 = arith.mulf %0, %0 : vector<130x32xf32>
    %cst_1 = arith.constant dense<0.000000e+00> : vector<130xf32>
    %4 = vector.multi_reduction <add>, %3, %cst_1 [1] : vector<130x32xf32> to vector<130xf32>
    %5 = vector.shape_cast %4 : vector<130xf32> to vector<130x1xf32>
    %cst_2 = arith.constant 3.125000e-02 : f32
    %6 = vector.broadcast %cst_2 : f32 to vector<130x1xf32>
    %7 = arith.mulf %2, %6 : vector<130x1xf32>
    %cst_3 = arith.constant 3.125000e-02 : f32
    %8 = vector.broadcast %cst_3 : f32 to vector<130x1xf32>
    %9 = arith.mulf %5, %8 : vector<130x1xf32>
    %10 = arith.mulf %7, %7 : vector<130x1xf32>
    %11 = arith.subf %9, %10 : vector<130x1xf32>
    %12 = vector.broadcast %7 : vector<130x1xf32> to vector<130x32xf32>
    %13 = arith.subf %0, %12 : vector<130x32xf32>
    %cst_4 = arith.constant 9.99999974E-6 : f32
    %14 = vector.broadcast %cst_4 : f32 to vector<130x1xf32>
    %15 = arith.addf %11, %14 : vector<130x1xf32>
    %16 = math.rsqrt %15 : vector<130x1xf32>
    %17 = vector.broadcast %16 : vector<130x1xf32> to vector<130x32xf32>
    %18 = arith.mulf %13, %17 : vector<130x32xf32>
    %c0_5 = arith.constant 0 : index
    %c0_6 = arith.constant 0 : index
    %19 = vector.load %arg3[%c0_5, %c0_6] : memref<1x32xf32, #tpu.memory_space<vmem>>, vector<1x32xf32>
    %20 = vector.broadcast %19 : vector<1x32xf32> to vector<130x32xf32>
    %21 = arith.mulf %18, %20 : vector<130x32xf32>
    %c0_7 = arith.constant 0 : index
    %c0_8 = arith.constant 0 : index
    %22 = vector.load %arg4[%c0_7, %c0_8] : memref<1x32xf32, #tpu.memory_space<vmem>>, vector<1x32xf32>
    %23 = vector.broadcast %22 : vector<1x32xf32> to vector<130x32xf32>
    %24 = arith.addf %21, %23 : vector<130x32xf32>
    %25 = arith.truncf %24 : vector<130x32xf32> to vector<130x32xbf16>
    %c0_9 = arith.constant 0 : index
    %c0_10 = arith.constant 0 : index
    %26 = vector.load %arg5[%c0_9, %c0_10] : memref<32x128xbf16, #tpu.memory_space<vmem>>, vector<32x128xbf16>
    %cst_11 = arith.constant dense<0.000000e+00> : vector<130x128xf32>
    %27 = tpu.matmul %25, %26, %cst_11 {dimension_numbers = #tpu.dot_dimension_numbers<[1], [0], [0], [1], [0, 0, 1, 1], [], []>} : vector<130x32xbf16>, vector<32x128xbf16>, vector<130x128xf32> -> vector<130x128xf32>
    %c0_12 = arith.constant 0 : index
    %c0_13 = arith.constant 0 : index
    %28 = vector.load %arg6[%c0_12, %c0_13] : memref<1x128xf32, #tpu.memory_space<vmem>>, vector<1x128xf32>
    %29 = vector.broadcast %28 : vector<1x128xf32> to vector<130x128xf32>
    %30 = arith.addf %27, %29 : vector<130x128xf32>
    %cst_14 = arith.constant 5.000000e-01 : f32
    %31 = vector.broadcast %cst_14 : f32 to vector<130x128xf32>
    %32 = arith.mulf %31, %30 : vector<130x128xf32>
    %cst_15 = arith.constant 0.707106769 : f32
    %33 = vector.broadcast %cst_15 : f32 to vector<130x128xf32>
    %34 = arith.mulf %30, %33 : vector<130x128xf32>
    %35 = math.absf %34 : vector<130x128xf32>
    %cst_16 = arith.constant 0.327591091 : f32
    %36 = vector.broadcast %cst_16 : f32 to vector<130x128xf32>
    %37 = arith.mulf %36, %35 : vector<130x128xf32>
    %cst_17 = arith.constant 1.000000e+00 : f32
    %38 = vector.broadcast %cst_17 : f32 to vector<130x128xf32>
    %39 = arith.addf %38, %37 : vector<130x128xf32>
    %cst_18 = arith.constant 1.000000e+00 : f32
    %40 = vector.broadcast %cst_18 : f32 to vector<130x128xf32>
    %41 = arith.divf %40, %39 : vector<130x128xf32>
    %cst_19 = arith.constant 1.06140542 : f32
    %42 = vector.broadcast %cst_19 : f32 to vector<130x128xf32>
    %43 = arith.mulf %42, %41 : vector<130x128xf32>
    %cst_20 = arith.constant -1.45315206 : f32
    %44 = vector.broadcast %cst_20 : f32 to vector<130x128xf32>
    %45 = arith.addf %43, %44 : vector<130x128xf32>
    %46 = arith.mulf %45, %41 : vector<130x128xf32>
    %cst_21 = arith.constant 1.42141378 : f32
    %47 = vector.broadcast %cst_21 : f32 to vector<130x128xf32>
    %48 = arith.addf %46, %47 : vector<130x128xf32>
    %49 = arith.mulf %48, %41 : vector<130x128xf32>
    %cst_22 = arith.constant -0.284496725 : f32
    %50 = vector.broadcast %cst_22 : f32 to vector<130x128xf32>
    %51 = arith.addf %49, %50 : vector<130x128xf32>
    %52 = arith.mulf %51, %41 : vector<130x128xf32>
    %cst_23 = arith.constant 0.254829586 : f32
    %53 = vector.broadcast %cst_23 : f32 to vector<130x128xf32>
    %54 = arith.addf %52, %53 : vector<130x128xf32>
    %55 = arith.mulf %54, %41 : vector<130x128xf32>
    %cst_24 = arith.constant 0.000000e+00 : f32
    %56 = vector.broadcast %cst_24 : f32 to vector<130x128xf32>
    %57 = arith.subf %56, %35 : vector<130x128xf32>
    %58 = arith.mulf %57, %35 : vector<130x128xf32>
    %59 = math.exp %58 : vector<130x128xf32>
    %60 = arith.mulf %55, %59 : vector<130x128xf32>
    %cst_25 = arith.constant 1.000000e+00 : f32
    %61 = vector.broadcast %cst_25 : f32 to vector<130x128xf32>
    %62 = arith.subf %61, %60 : vector<130x128xf32>
    %cst_26 = arith.constant 0.000000e+00 : f32
    %63 = vector.broadcast %cst_26 : f32 to vector<130x128xf32>
    %64 = arith.cmpf olt, %34, %63 : vector<130x128xf32>
    %cst_27 = arith.constant 0.000000e+00 : f32
    %65 = vector.broadcast %cst_27 : f32 to vector<130x128xf32>
    %66 = arith.subf %65, %62 : vector<130x128xf32>
    %67 = arith.select %64, %66, %62 : vector<130x128xi1>, vector<130x128xf32>
    %cst_28 = arith.constant 1.000000e+00 : f32
    %68 = vector.broadcast %cst_28 : f32 to vector<130x128xf32>
    %69 = arith.addf %68, %67 : vector<130x128xf32>
    %70 = arith.mulf %32, %69 : vector<130x128xf32>
    %c0_29 = arith.constant 0 : index
    %c0_30 = arith.constant 0 : index
    %71 = vector.load %arg7[%c0_29, %c0_30] : memref<130x128xf32, #tpu.memory_space<vmem>>, vector<130x128xf32>
    tpu.vector_store %arg7[%c0_29, %c0_30], %70 {strides = array<i32>} : memref<130x128xf32, #tpu.memory_space<vmem>>, vector<130x128xf32>,
    return
  }
  func.func @transform_0(%arg0: i32, %arg1: i32) -> (i32, i32) {
    %c0_i32 = arith.constant 0 : i32
    %c0_i32_0 = arith.constant 0 : i32
    return %arg0, %c0_i32 : i32, i32
  }
  func.func @transform_1(%arg0: i32, %arg1: i32) -> (i32, i32) {
    %c0_i32 = arith.constant 0 : i32
    %c0_i32_0 = arith.constant 0 : i32
    %c0_i32_1 = arith.constant 0 : i32
    return %c0_i32, %c0_i32_0 : i32, i32
  }
  func.func @transform_2(%arg0: i32, %arg1: i32) -> (i32, i32) {
    %c0_i32 = arith.constant 0 : i32
    %c0_i32_0 = arith.constant 0 : i32
    %c0_i32_1 = arith.constant 0 : i32
    return %c0_i32, %c0_i32_0 : i32, i32
  }
  func.func @transform_3(%arg0: i32, %arg1: i32) -> (i32, i32) {
    %c0_i32 = arith.constant 0 : i32
    %c0_i32_0 = arith.constant 0 : i32
    return %c0_i32, %arg1 : i32, i32
  }
  func.func @transform_4(%arg0: i32, %arg1: i32) -> (i32, i32) {
    %c0_i32 = arith.constant 0 : i32
    %c0_i32_0 = arith.constant 0 : i32
    return %c0_i32, %arg1 : i32, i32
  }
  func.func @transform_5(%arg0: i32, %arg1: i32) -> (i32, i32) {
    %c0_i32 = arith.constant 0 : i32
    return %arg0, %arg1 : i32, i32
  }
}

module attributes {stable_mosaic.version = 11 : i64} {
  func.func @_layernorm_kernel(%arg0: i32, %arg1: memref<130x32xf32, #tpu.memory_space<vmem>>, %arg2: memref<1x32xf32, #tpu.memory_space<vmem>>, %arg3: memref<1x32xf32, #tpu.memory_space<vmem>>, %arg4: memref<130x32xf32, #tpu.memory_space<vmem>>) attributes {dimension_semantics = [#tpu.dimension_semantics<parallel>], iteration_bounds = array<i64: 1>, scalar_prefetch = 0 : i64, scratch_operands = 0 : i64, tpu.core_type = #tpu.core_type<tc>, window_params = [{transform_indices = @transform_0, window_bounds = array<i64: 130, 32>}, {pipeline_mode = #tpu.pipeline_mode<synchronous>, transform_indices = @transform_1, window_bounds = array<i64: 1, 32>}, {pipeline_mode = #tpu.pipeline_mode<synchronous>, transform_indices = @transform_2, window_bounds = array<i64: 1, 32>}, {transform_indices = @transform_3, window_bounds = array<i64: 130, 32>}]} {
    %c0 = arith.constant 0 : index
    %c0_0 = arith.constant 0 : index
    %0 = vector.load %arg1[%c0, %c0_0] : memref<130x32xf32, #tpu.memory_space<vmem>>, vector<130x32xf32>
    %cst = arith.constant dense<0.000000e+00> : vector<130xf32>
    %1 = vector.multi_reduction <add>, %0, %cst [1] : vector<130x32xf32> to vector<130xf32>
    %2 = vector.shape_cast %1 : vector<130xf32> to vector<130x1xf32>
    %3 = arith.mulf %0, %0 : vector<130x32xf32>
    %cst_1 = arith.constant dense<0.000000e+00> : vector<130xf32>
    %4 = vector.multi_reduction <add>, %3, %cst_1 [1] : vector<130x32xf32> to vector<130xf32>
    %5 = vector.shape_cast %4 : vector<130xf32> to vector<130x1xf32>
    %cst_2 = arith.constant 3.125000e-02 : f32
    %6 = vector.broadcast %cst_2 : f32 to vector<130x1xf32>
    %7 = arith.mulf %2, %6 : vector<130x1xf32>
    %cst_3 = arith.constant 3.125000e-02 : f32
    %8 = vector.broadcast %cst_3 : f32 to vector<130x1xf32>
    %9 = arith.mulf %5, %8 : vector<130x1xf32>
    %10 = arith.mulf %7, %7 : vector<130x1xf32>
    %11 = arith.subf %9, %10 : vector<130x1xf32>
    %12 = vector.broadcast %7 : vector<130x1xf32> to vector<130x32xf32>
    %13 = arith.subf %0, %12 : vector<130x32xf32>
    %cst_4 = arith.constant 9.99999974E-6 : f32
    %14 = vector.broadcast %cst_4 : f32 to vector<130x1xf32>
    %15 = arith.addf %11, %14 : vector<130x1xf32>
    %16 = math.rsqrt %15 : vector<130x1xf32>
    %17 = vector.broadcast %16 : vector<130x1xf32> to vector<130x32xf32>
    %18 = arith.mulf %13, %17 : vector<130x32xf32>
    %c0_5 = arith.constant 0 : index
    %c0_6 = arith.constant 0 : index
    %19 = vector.load %arg2[%c0_5, %c0_6] : memref<1x32xf32, #tpu.memory_space<vmem>>, vector<1x32xf32>
    %20 = vector.broadcast %19 : vector<1x32xf32> to vector<130x32xf32>
    %21 = arith.mulf %18, %20 : vector<130x32xf32>
    %c0_7 = arith.constant 0 : index
    %c0_8 = arith.constant 0 : index
    %22 = vector.load %arg3[%c0_7, %c0_8] : memref<1x32xf32, #tpu.memory_space<vmem>>, vector<1x32xf32>
    %23 = vector.broadcast %22 : vector<1x32xf32> to vector<130x32xf32>
    %24 = arith.addf %21, %23 : vector<130x32xf32>
    %c0_9 = arith.constant 0 : index
    %c0_10 = arith.constant 0 : index
    %25 = vector.load %arg4[%c0_9, %c0_10] : memref<130x32xf32, #tpu.memory_space<vmem>>, vector<130x32xf32>
    tpu.vector_store %arg4[%c0_9, %c0_10], %24 {strides = array<i32>} : memref<130x32xf32, #tpu.memory_space<vmem>>, vector<130x32xf32>,
    return
  }
  func.func @transform_0(%arg0: i32) -> (i32, i32) {
    %c0_i32 = arith.constant 0 : i32
    %c0_i32_0 = arith.constant 0 : i32
    return %arg0, %c0_i32 : i32, i32
  }
  func.func @transform_1(%arg0: i32) -> (i32, i32) {
    %c0_i32 = arith.constant 0 : i32
    %c0_i32_0 = arith.constant 0 : i32
    %c0_i32_1 = arith.constant 0 : i32
    return %c0_i32, %c0_i32_0 : i32, i32
  }
  func.func @transform_2(%arg0: i32) -> (i32, i32) {
    %c0_i32 = arith.constant 0 : i32
    %c0_i32_0 = arith.constant 0 : i32
    %c0_i32_1 = arith.constant 0 : i32
    return %c0_i32, %c0_i32_0 : i32, i32
  }
  func.func @transform_3(%arg0: i32) -> (i32, i32) {
    %c0_i32 = arith.constant 0 : i32
    %c0_i32_0 = arith.constant 0 : i32
    return %arg0, %c0_i32 : i32, i32
  }
}

</mosaic_0001>

<llo_original>
// kernel: masked_encoder_2d_forward.10
$region0: #{masked_encoder_2d_forward.10}
  #allocation0 [shape = 'u32[]', space=smem, size = 0x4, offset = 0x4, fixed_abs, tag = 'smem constant byte address 0x4 - core index']
  #allocation1 [shape = 'u32[144,128]{1,0:T(1,128)}', space=vmem, size = 0x12000, scoped, tag = 'internal scratch']
  #allocation2 [shape = 'f32[128,32]{1,0:T(8,128)}', space=vmem, size = 0x10000, scoped, tag = 'scratch operand']
  %s0 = inlined_call_operand.vmem [shape: f32[128,16], index: 0, kind: input, shape index: {}]
  %s1 = inlined_call_operand.vmem [shape: bf16[16,32], index: 1, kind: input, shape index: {}]
  %s2 = inlined_call_operand.vmem [shape: f32[1,32], index: 2, kind: input, shape index: {}]
  %s3 = inlined_call_operand.vmem [shape: f32[128,32], index: 3, kind: output, shape index: {}]
  %s4 = sld [smem:[#allocation0]]
  $region30: #{masked_encoder_2d_forward.10} parent=0
    _
  %s6 = ssub.s32 1, %s4
  %s7 = scalar_select 0, %s6, %s4
  // Predicated region
  $region2: #{masked_encoder_2d_forward.10} parent=0 // pred_check
    _
  $region3: #{masked_encoder_2d_forward.10} parent=0 // pred_check_branch
    %9 = sbr.rel (0) target = $region5
  $region4: #{masked_encoder_2d_forward.10} parent=0 // pred_region
    _
  $region5: #{masked_encoder_2d_forward.10} parent=0 // pred_fallthru
    _
  // Predicated region
  $region6: #{masked_encoder_2d_forward.10} parent=0 // pred_check
    _
  $region7: #{masked_encoder_2d_forward.10} parent=0 // pred_check_branch
    %11 = sbr.rel (0) target = $region9
  $region8: #{masked_encoder_2d_forward.10} parent=0 // pred_region
    _
  $region9: #{masked_encoder_2d_forward.10} parent=0 // pred_fallthru
    _
  // Predicated region
  $region10: #{masked_encoder_2d_forward.10} parent=0 // pred_check
    _
  $region11: #{masked_encoder_2d_forward.10} parent=0 // pred_check_branch
    %13 = sbr.rel (0) target = $region13
  $region12: #{masked_encoder_2d_forward.10} parent=0 // pred_region
    _
  $region13: #{masked_encoder_2d_forward.10} parent=0 // pred_fallthru
    _
  %p15 = scmp.eq.s32.totalorder 0, 0
  // Predicated region
  $region14: #{masked_encoder_2d_forward.10} parent=0 // pred_check
    %p16 = pneg %p15
  $region15: #{masked_encoder_2d_forward.10} parent=0 // pred_check_branch
    %18 = sbr.rel (%p16) target = $region17
  $region16: #{masked_encoder_2d_forward.10} parent=0 // pred_region
    %vm19 = vcmask 261120
    %20 = vst.msk [vmem:[#allocation2] sm:$0xff] %vm19, 0.0
    %21 = vst.msk [vmem:[#allocation2 + $0x8] sm:$0xff] %vm19, 0.0
    %22 = vst.msk [vmem:[#allocation2 + $0x10] sm:$0xff] %vm19, 0.0
    %23 = vst.msk [vmem:[#allocation2 + $0x18] sm:$0xff] %vm19, 0.0
    %24 = vst.msk [vmem:[#allocation2 + $0x20] sm:$0xff] %vm19, 0.0
    %25 = vst.msk [vmem:[#allocation2 + $0x28] sm:$0xff] %vm19, 0.0
    %26 = vst.msk [vmem:[#allocation2 + $0x30] sm:$0xff] %vm19, 0.0
    %27 = vst.msk [vmem:[#allocation2 + $0x38] sm:$0xff] %vm19, 0.0
    %28 = vst.msk [vmem:[#allocation2 + $0x40] sm:$0xff] %vm19, 0.0
    %29 = vst.msk [vmem:[#allocation2 + $0x48] sm:$0xff] %vm19, 0.0
    %30 = vst.msk [vmem:[#allocation2 + $0x50] sm:$0xff] %vm19, 0.0
    %31 = vst.msk [vmem:[#allocation2 + $0x58] sm:$0xff] %vm19, 0.0
    %32 = vst.msk [vmem:[#allocation2 + $0x60] sm:$0xff] %vm19, 0.0
    %33 = vst.msk [vmem:[#allocation2 + $0x68] sm:$0xff] %vm19, 0.0
    %34 = vst.msk [vmem:[#allocation2 + $0x70] sm:$0xff] %vm19, 0.0
    %35 = vst.msk [vmem:[#allocation2 + $0x78] sm:$0xff] %vm19, 0.0
  $region17: #{masked_encoder_2d_forward.10} parent=0 // pred_fallthru
    _
  %v36 = vld [vmem:[#allocation2] sm:$0xff]
  %v37 = vld [vmem:[#allocation2 + $0x8] sm:$0xff]
  %v38 = vld [vmem:[#allocation2 + $0x10] sm:$0xff]
  %v39 = vld [vmem:[#allocation2 + $0x18] sm:$0xff]
  %v40 = vld [vmem:[#allocation2 + $0x20] sm:$0xff]
  %v41 = vld [vmem:[#allocation2 + $0x28] sm:$0xff]
  %v42 = vld [vmem:[#allocation2 + $0x30] sm:$0xff]
  %v43 = vld [vmem:[#allocation2 + $0x38] sm:$0xff]
  %v44 = vld [vmem:[#allocation2 + $0x40] sm:$0xff]
  %v45 = vld [vmem:[#allocation2 + $0x48] sm:$0xff]
  %v46 = vld [vmem:[#allocation2 + $0x50] sm:$0xff]
  %v47 = vld [vmem:[#allocation2 + $0x58] sm:$0xff]
  %v48 = vld [vmem:[#allocation2 + $0x60] sm:$0xff]
  %v49 = vld [vmem:[#allocation2 + $0x68] sm:$0xff]
  %v50 = vld [vmem:[#allocation2 + $0x70] sm:$0xff]
  %v51 = vld [vmem:[#allocation2 + $0x78] sm:$0xff]
  %v52 = vld [vmem:[%s0] sm:$0xff]
  %v53 = vld [vmem:[%s0 + $0x8] sm:$0xff]
  %v54 = vld [vmem:[%s0 + $0x10] sm:$0xff]
  %v55 = vld [vmem:[%s0 + $0x18] sm:$0xff]
  %v56 = vld [vmem:[%s0 + $0x20] sm:$0xff]
  %v57 = vld [vmem:[%s0 + $0x28] sm:$0xff]
  %v58 = vld [vmem:[%s0 + $0x30] sm:$0xff]
  %v59 = vld [vmem:[%s0 + $0x38] sm:$0xff]
  %v60 = vld [vmem:[%s0 + $0x40] sm:$0xff]
  %v61 = vld [vmem:[%s0 + $0x48] sm:$0xff]
  %v62 = vld [vmem:[%s0 + $0x50] sm:$0xff]
  %v63 = vld [vmem:[%s0 + $0x58] sm:$0xff]
  %v64 = vld [vmem:[%s0 + $0x60] sm:$0xff]
  %v65 = vld [vmem:[%s0 + $0x68] sm:$0xff]
  %v66 = vld [vmem:[%s0 + $0x70] sm:$0xff]
  %v67 = vld [vmem:[%s0 + $0x78] sm:$0xff]
  %v68 = vpack.c.bf16 %v53, %v52
  %v69 = vpack.c.bf16 %v55, %v54
  %v70 = vpack.c.bf16 %v57, %v56
  %v71 = vpack.c.bf16 %v59, %v58
  %v72 = vpack.c.bf16 %v61, %v60
  %v73 = vpack.c.bf16 %v63, %v62
  %v74 = vpack.c.bf16 %v65, %v64
  %v75 = vpack.c.bf16 %v67, %v66
  %v76 = vld [vmem:[%s1] sm:$0xf]
  %v77 = vld [vmem:[%s1 + $0x4] sm:$0xf]
  %v80 = vunpack.c.l.b16 %v76
  %v81 = vunpack.c.l.b16 %v77
  %v82 = vpack.c.b16 %v81, %v80
  %vm84 = vcmask 130048
  %v86 = vsel %vm84, %v68, 0
  %v89 = vsel %vm84, %v69, 0
  %v92 = vsel %vm84, %v70, 0
  %v95 = vsel %vm84, %v71, 0
  %v98 = vsel %vm84, %v72, 0
  %v101 = vsel %vm84, %v73, 0
  %v104 = vsel %vm84, %v74, 0
  %v107 = vsel %vm84, %v75, 0
  %109 = vmatprep.subr.bf16.mxu0 0
  %110 = vmatpush1.bf16.msra.mxu0 %v82
  %111 = vmatprep.subr.bf16.mxu0 0
  %112 = vmatpush1.bf16.msra.mxu0 0
  %113 = vmatprep.subr.bf16.mxu0 0
  %114 = vmatpush1.bf16.msra.mxu0 0
  %115 = vmatprep.subr.bf16.mxu0 0
  %116 = vmatpush1.bf16.msra.mxu0 0
  %117 = vmatprep.subr.bf16.mxu0 0
  %118 = vmatpush1.bf16.msra.mxu0 0
  %119 = vmatprep.subr.bf16.mxu0 0
  %120 = vmatpush1.bf16.msra.mxu0 0
  %121 = vmatprep.subr.bf16.mxu0 0
  %122 = vmatpush1.bf16.msra.mxu0 0
  %123 = vmatprep.subr.bf16.mxu0 0
  %124 = vmatpush1.bf16.msra.mxu0 0
  %125 = vmatprep.subr.bf16.mxu0 0
  %126 = vmatpush1.bf16.msra.mxu0 0
  %127 = vmatprep.subr.bf16.mxu0 0
  %128 = vmatpush1.bf16.msra.mxu0 0
  %129 = vmatprep.subr.bf16.mxu0 0
  %130 = vmatpush1.bf16.msra.mxu0 0
  %131 = vmatprep.subr.bf16.mxu0 0
  %132 = vmatpush1.bf16.msra.mxu0 0
  %133 = vmatprep.subr.bf16.mxu0 0
  %134 = vmatpush1.bf16.msra.mxu0 0
  %135 = vmatprep.subr.bf16.mxu0 0
  %136 = vmatpush1.bf16.msra.mxu0 0
  %137 = vmatprep.subr.bf16.mxu0 0
  %138 = vmatpush1.bf16.msra.mxu0 0
  %139 = vmatprep.subr.bf16.mxu0 0
  %140 = vmatpush1.bf16.msra.mxu0 0
  %141 = vmatprep.mubr.bf16.mxu0 0
  %142 = vmatmul.mubr.bf16.gmra.mrb[0].mxu0 %v86
  %v143 = vpop.f32.mrb[0].mxu0
  %v144 = vadd.f32 0.0, %v143
  %v145 = vpop.f32.mrb[0].mxu0
  %v146 = vpop.f32.mrb[0].mxu0
  %v147 = vadd.f32 0.0, %v146
  %v148 = vpop.f32.mrb[0].mxu0
  %149 = vmatprep.mubr.bf16.mxu0 0
  %150 = vmatmul.mubr.bf16.gmra.mrb[0].mxu0 %v89
  %v151 = vpop.f32.mrb[0].mxu0
  %v152 = vadd.f32 0.0, %v151
  %v153 = vpop.f32.mrb[0].mxu0
  %v154 = vpop.f32.mrb[0].mxu0
  %v155 = vadd.f32 0.0, %v154
  %v156 = vpop.f32.mrb[0].mxu0
  %157 = vmatprep.mubr.bf16.mxu0 0
  %158 = vmatmul.mubr.bf16.gmra.mrb[0].mxu0 %v92
  %v159 = vpop.f32.mrb[0].mxu0
  %v160 = vadd.f32 0.0, %v159
  %v161 = vpop.f32.mrb[0].mxu0
  %v162 = vpop.f32.mrb[0].mxu0
  %v163 = vadd.f32 0.0, %v162
  %v164 = vpop.f32.mrb[0].mxu0
  %165 = vmatprep.mubr.bf16.mxu0 0
  %166 = vmatmul.mubr.bf16.gmra.mrb[0].mxu0 %v95
  %v167 = vpop.f32.mrb[0].mxu0
  %v168 = vadd.f32 0.0, %v167
  %v169 = vpop.f32.mrb[0].mxu0
  %v170 = vpop.f32.mrb[0].mxu0
  %v171 = vadd.f32 0.0, %v170
  %v172 = vpop.f32.mrb[0].mxu0
  %173 = vmatprep.mubr.bf16.mxu0 0
  %174 = vmatmul.mubr.bf16.gmra.mrb[0].mxu0 %v98
  %v175 = vpop.f32.mrb[0].mxu0
  %v176 = vadd.f32 0.0, %v175
  %v177 = vpop.f32.mrb[0].mxu0
  %v178 = vpop.f32.mrb[0].mxu0
  %v179 = vadd.f32 0.0, %v178
  %v180 = vpop.f32.mrb[0].mxu0
  %181 = vmatprep.mubr.bf16.mxu0 0
  %182 = vmatmul.mubr.bf16.gmra.mrb[0].mxu0 %v101
  %v183 = vpop.f32.mrb[0].mxu0
  %v184 = vadd.f32 0.0, %v183
  %v185 = vpop.f32.mrb[0].mxu0
  %v186 = vpop.f32.mrb[0].mxu0
  %v187 = vadd.f32 0.0, %v186
  %v188 = vpop.f32.mrb[0].mxu0
  %189 = vmatprep.mubr.bf16.mxu0 0
  %190 = vmatmul.mubr.bf16.gmra.mrb[0].mxu0 %v104
  %v191 = vpop.f32.mrb[0].mxu0
  %v192 = vadd.f32 0.0, %v191
  %v193 = vpop.f32.mrb[0].mxu0
  %v194 = vpop.f32.mrb[0].mxu0
  %v195 = vadd.f32 0.0, %v194
  %v196 = vpop.f32.mrb[0].mxu0
  %197 = vmatprep.mubr.bf16.mxu0 0
  %198 = vmatmul.mubr.bf16.gmra.mrb[0].mxu0 %v107
  %v199 = vpop.f32.mrb[0].mxu0
  %v200 = vadd.f32 0.0, %v199
  %v201 = vpop.f32.mrb[0].mxu0
  %v202 = vpop.f32.mrb[0].mxu0
  %v203 = vadd.f32 0.0, %v202
  %v204 = vpop.f32.mrb[0].mxu0
  %205 = vdwg.mxu0
  %v206 = vadd.f32 %v36, %v144
  %v207 = vadd.f32 %v37, %v147
  %v208 = vadd.f32 %v38, %v152
  %v209 = vadd.f32 %v39, %v155
  %v210 = vadd.f32 %v40, %v160
  %v211 = vadd.f32 %v41, %v163
  %v212 = vadd.f32 %v42, %v168
  %v213 = vadd.f32 %v43, %v171
  %v214 = vadd.f32 %v44, %v176
  %v215 = vadd.f32 %v45, %v179
  %v216 = vadd.f32 %v46, %v184
  %v217 = vadd.f32 %v47, %v187
  %v218 = vadd.f32 %v48, %v192
  %v219 = vadd.f32 %v49, %v195
  %v220 = vadd.f32 %v50, %v200
  %v221 = vadd.f32 %v51, %v203
  %vm222 = vcmask 261120
  %223 = vst.msk [vmem:[#allocation2] sm:$0xff] %vm222, %v206
  %224 = vst.msk [vmem:[#allocation2 + $0x8] sm:$0xff] %vm222, %v207
  %225 = vst.msk [vmem:[#allocation2 + $0x10] sm:$0xff] %vm222, %v208
  %226 = vst.msk [vmem:[#allocation2 + $0x18] sm:$0xff] %vm222, %v209
  %227 = vst.msk [vmem:[#allocation2 + $0x20] sm:$0xff] %vm222, %v210
  %228 = vst.msk [vmem:[#allocation2 + $0x28] sm:$0xff] %vm222, %v211
  %229 = vst.msk [vmem:[#allocation2 + $0x30] sm:$0xff] %vm222, %v212
  %230 = vst.msk [vmem:[#allocation2 + $0x38] sm:$0xff] %vm222, %v213
  %231 = vst.msk [vmem:[#allocation2 + $0x40] sm:$0xff] %vm222, %v214
  %232 = vst.msk [vmem:[#allocation2 + $0x48] sm:$0xff] %vm222, %v215
  %233 = vst.msk [vmem:[#allocation2 + $0x50] sm:$0xff] %vm222, %v216
  %234 = vst.msk [vmem:[#allocation2 + $0x58] sm:$0xff] %vm222, %v217
  %235 = vst.msk [vmem:[#allocation2 + $0x60] sm:$0xff] %vm222, %v218
  %236 = vst.msk [vmem:[#allocation2 + $0x68] sm:$0xff] %vm222, %v219
  %237 = vst.msk [vmem:[#allocation2 + $0x70] sm:$0xff] %vm222, %v220
  %238 = vst.msk [vmem:[#allocation2 + $0x78] sm:$0xff] %vm222, %v221
  // Predicated region
  $region18: #{masked_encoder_2d_forward.10} parent=0 // pred_check
    %p239 = pneg %p15
  $region19: #{masked_encoder_2d_forward.10} parent=0 // pred_check_branch
    %241 = sbr.rel (%p239) target = $region21
  $region20: #{masked_encoder_2d_forward.10} parent=0 // pred_region
    %v242 = vld [vmem:[#allocation2] sm:$0xff]
    %v243 = vld [vmem:[#allocation2 + $0x8] sm:$0xff]
    %v244 = vld [vmem:[#allocation2 + $0x10] sm:$0xff]
    %v245 = vld [vmem:[#allocation2 + $0x18] sm:$0xff]
    %v246 = vld [vmem:[#allocation2 + $0x20] sm:$0xff]
    %v247 = vld [vmem:[#allocation2 + $0x28] sm:$0xff]
    %v248 = vld [vmem:[#allocation2 + $0x30] sm:$0xff]
    %v249 = vld [vmem:[#allocation2 + $0x38] sm:$0xff]
    %v250 = vld [vmem:[#allocation2 + $0x40] sm:$0xff]
    %v251 = vld [vmem:[#allocation2 + $0x48] sm:$0xff]
    %v252 = vld [vmem:[#allocation2 + $0x50] sm:$0xff]
    %v253 = vld [vmem:[#allocation2 + $0x58] sm:$0xff]
    %v254 = vld [vmem:[#allocation2 + $0x60] sm:$0xff]
    %v255 = vld [vmem:[#allocation2 + $0x68] sm:$0xff]
    %v256 = vld [vmem:[#allocation2 + $0x70] sm:$0xff]
    %v257 = vld [vmem:[#allocation2 + $0x78] sm:$0xff]
    %v258 = vld [vmem:[%s2] sm:$0x1]
    %v260 = vlaneseq
    %v261 = vshrl.u32 %v260, 7
    %v262 = vsub.s32 0, %v261
    %v263 = vrot.slane %v258, %v262
    %v265 = vadd.f32 %v242, %v263
    %v266 = vadd.f32 %v243, %v263
    %v267 = vadd.f32 %v244, %v263
    %v268 = vadd.f32 %v245, %v263
    %v269 = vadd.f32 %v246, %v263
    %v270 = vadd.f32 %v247, %v263
    %v271 = vadd.f32 %v248, %v263
    %v272 = vadd.f32 %v249, %v263
    %v273 = vadd.f32 %v250, %v263
    %v274 = vadd.f32 %v251, %v263
    %v275 = vadd.f32 %v252, %v263
    %v276 = vadd.f32 %v253, %v263
    %v277 = vadd.f32 %v254, %v263
    %v278 = vadd.f32 %v255, %v263
    %v279 = vadd.f32 %v256, %v263
    %v280 = vadd.f32 %v257, %v263
    %281 = vst.msk [vmem:[%s3] sm:$0xff] %vm222, %v265
    %282 = vst.msk [vmem:[%s3 + $0x8] sm:$0xff] %vm222, %v266
    %283 = vst.msk [vmem:[%s3 + $0x10] sm:$0xff] %vm222, %v267
    %284 = vst.msk [vmem:[%s3 + $0x18] sm:$0xff] %vm222, %v268
    %285 = vst.msk [vmem:[%s3 + $0x20] sm:$0xff] %vm222, %v269
    %286 = vst.msk [vmem:[%s3 + $0x28] sm:$0xff] %vm222, %v270
    %287 = vst.msk [vmem:[%s3 + $0x30] sm:$0xff] %vm222, %v271
    %288 = vst.msk [vmem:[%s3 + $0x38] sm:$0xff] %vm222, %v272
    %289 = vst.msk [vmem:[%s3 + $0x40] sm:$0xff] %vm222, %v273
    %290 = vst.msk [vmem:[%s3 + $0x48] sm:$0xff] %vm222, %v274
    %291 = vst.msk [vmem:[%s3 + $0x50] sm:$0xff] %vm222, %v275
    %292 = vst.msk [vmem:[%s3 + $0x58] sm:$0xff] %vm222, %v276
    %293 = vst.msk [vmem:[%s3 + $0x60] sm:$0xff] %vm222, %v277
    %294 = vst.msk [vmem:[%s3 + $0x68] sm:$0xff] %vm222, %v278
    %295 = vst.msk [vmem:[%s3 + $0x70] sm:$0xff] %vm222, %v279
    %296 = vst.msk [vmem:[%s3 + $0x78] sm:$0xff] %vm222, %v280
  $region21: #{masked_encoder_2d_forward.10} parent=0 // pred_fallthru
    _
  // Predicated region
  $region22: #{masked_encoder_2d_forward.10} parent=0 // pred_check
    _
  $region23: #{masked_encoder_2d_forward.10} parent=0 // pred_check_branch
    %298 = sbr.rel (0) target = $region25
  $region24: #{masked_encoder_2d_forward.10} parent=0 // pred_region
    _
  $region25: #{masked_encoder_2d_forward.10} parent=0 // pred_fallthru
    _
  // Predicated region
  $region26: #{masked_encoder_2d_forward.10} parent=0 // pred_check
    _
  $region27: #{masked_encoder_2d_forward.10} parent=0 // pred_check_branch
    %300 = sbr.rel (0) target = $region29
  $region28: #{masked_encoder_2d_forward.10} parent=0 // pred_region
    _
  $region29: #{masked_encoder_2d_forward.10} parent=0 // pred_fallthru
    _

// kernel: masked_encoder_2d_forward.11
$region0: #{masked_encoder_2d_forward.11}
  #allocation0 [shape = 'u32[]', space=smem, size = 0x4, offset = 0x4, fixed_abs, tag = 'smem constant byte address 0x4 - core index']
  #allocation1 [shape = 'u32[144,128]{1,0:T(1,128)}', space=vmem, size = 0x12000, scoped, tag = 'internal scratch']
  %s0 = inlined_call_operand.vmem [shape: f32[130,32], index: 0, kind: input, shape index: {}]
  %s1 = inlined_call_operand.vmem [shape: f32[1,32], index: 1, kind: input, shape index: {}]
  %s2 = inlined_call_operand.vmem [shape: f32[1,32], index: 2, kind: input, shape index: {}]
  %s3 = inlined_call_operand.vmem [shape: bf16[32,96], index: 3, kind: input, shape index: {}]
  %s4 = inlined_call_operand.vmem [shape: f32[1,96], index: 4, kind: input, shape index: {}]
  %s5 = inlined_call_operand.vmem [shape: f32[130,96], index: 5, kind: output, shape index: {}]
  %s6 = sld [smem:[#allocation0]]
  $region30: #{masked_encoder_2d_forward.11} parent=0
    _
  %s8 = ssub.s32 1, %s6
  %s9 = scalar_select 0, %s8, %s6
  // Predicated region
  $region2: #{masked_encoder_2d_forward.11} parent=0 // pred_check
    _
  $region3: #{masked_encoder_2d_forward.11} parent=0 // pred_check_branch
    %11 = sbr.rel (0) target = $region5
  $region4: #{masked_encoder_2d_forward.11} parent=0 // pred_region
    _
  $region5: #{masked_encoder_2d_forward.11} parent=0 // pred_fallthru
    _
  // Predicated region
  $region6: #{masked_encoder_2d_forward.11} parent=0 // pred_check
    _
  $region7: #{masked_encoder_2d_forward.11} parent=0 // pred_check_branch
    %13 = sbr.rel (0) target = $region9
  $region8: #{masked_encoder_2d_forward.11} parent=0 // pred_region
    _
  $region9: #{masked_encoder_2d_forward.11} parent=0 // pred_fallthru
    _
  // Predicated region
  $region10: #{masked_encoder_2d_forward.11} parent=0 // pred_check
    _
  $region11: #{masked_encoder_2d_forward.11} parent=0 // pred_check_branch
    %15 = sbr.rel (0) target = $region13
  $region12: #{masked_encoder_2d_forward.11} parent=0 // pred_region
    _
  $region13: #{masked_encoder_2d_forward.11} parent=0 // pred_fallthru
    _
  // Predicated region
  $region14: #{masked_encoder_2d_forward.11} parent=0 // pred_check
    _
  $region15: #{masked_encoder_2d_forward.11} parent=0 // pred_check_branch
    %17 = sbr.rel (0) target = $region17
  $region16: #{masked_encoder_2d_forward.11} parent=0 // pred_region
    _
  $region17: #{masked_encoder_2d_forward.11} parent=0 // pred_fallthru
    _
  // Predicated region
  $region18: #{masked_encoder_2d_forward.11} parent=0 // pred_check
    _
  $region19: #{masked_encoder_2d_forward.11} parent=0 // pred_check_branch
    %19 = sbr.rel (0) target = $region21
  $region20: #{masked_encoder_2d_forward.11} parent=0 // pred_region
    _
  $region21: #{masked_encoder_2d_forward.11} parent=0 // pred_fallthru
    _
  %v21 = vld [vmem:[%s0] sm:$0xff]
  %v22 = vld [vmem:[%s0 + $0x8] sm:$0xff]
  %v23 = vld [vmem:[%s0 + $0x10] sm:$0xff]
  %v24 = vld [vmem:[%s0 + $0x18] sm:$0xff]
  %v25 = vld [vmem:[%s0 + $0x20] sm:$0xff]
  %v26 = vld [vmem:[%s0 + $0x28] sm:$0xff]
  %v27 = vld [vmem:[%s0 + $0x30] sm:$0xff]
  %v28 = vld [vmem:[%s0 + $0x38] sm:$0xff]
  %v29 = vld [vmem:[%s0 + $0x40] sm:$0xff]
  %v30 = vld [vmem:[%s0 + $0x48] sm:$0xff]
  %v31 = vld [vmem:[%s0 + $0x50] sm:$0xff]
  %v32 = vld [vmem:[%s0 + $0x58] sm:$0xff]
  %v33 = vld [vmem:[%s0 + $0x60] sm:$0xff]
  %v34 = vld [vmem:[%s0 + $0x68] sm:$0xff]
  %v35 = vld [vmem:[%s0 + $0x70] sm:$0xff]
  %v36 = vld [vmem:[%s0 + $0x78] sm:$0xff]
  %v37 = vld [vmem:[%s0 + $0x80] sm:$0x3]
  %vm38 = vcmask 261120
  %v39 = vsel %vm38, %v21, 0.0
  %40 = vadd.xlane.f32.xlu0 %v39
  %v41 = vpop.xlane.xlu0 %40
  %v42 = vsel %vm38, %v22, 0.0
  %43 = vadd.xlane.f32.xlu0 %v42
  %v44 = vpop.xlane.xlu0 %43
  %v45 = vsel %vm38, %v23, 0.0
  %46 = vadd.xlane.f32.xlu0 %v45
  %v47 = vpop.xlane.xlu0 %46
  %v48 = vsel %vm38, %v24, 0.0
  %49 = vadd.xlane.f32.xlu0 %v48
  %v50 = vpop.xlane.xlu0 %49
  %v51 = vsel %vm38, %v25, 0.0
  %52 = vadd.xlane.f32.xlu0 %v51
  %v53 = vpop.xlane.xlu0 %52
  %v54 = vsel %vm38, %v26, 0.0
  %55 = vadd.xlane.f32.xlu0 %v54
  %v56 = vpop.xlane.xlu0 %55
  %v57 = vsel %vm38, %v27, 0.0
  %58 = vadd.xlane.f32.xlu0 %v57
  %v59 = vpop.xlane.xlu0 %58
  %v60 = vsel %vm38, %v28, 0.0
  %61 = vadd.xlane.f32.xlu0 %v60
  %v62 = vpop.xlane.xlu0 %61
  %v63 = vsel %vm38, %v29, 0.0
  %64 = vadd.xlane.f32.xlu0 %v63
  %v65 = vpop.xlane.xlu0 %64
  %v66 = vsel %vm38, %v30, 0.0
  %67 = vadd.xlane.f32.xlu0 %v66
  %v68 = vpop.xlane.xlu0 %67
  %v69 = vsel %vm38, %v31, 0.0
  %70 = vadd.xlane.f32.xlu0 %v69
  %v71 = vpop.xlane.xlu0 %70
  %v72 = vsel %vm38, %v32, 0.0
  %73 = vadd.xlane.f32.xlu0 %v72
  %v74 = vpop.xlane.xlu0 %73
  %v75 = vsel %vm38, %v33, 0.0
  %76 = vadd.xlane.f32.xlu0 %v75
  %v77 = vpop.xlane.xlu0 %76
  %v78 = vsel %vm38, %v34, 0.0
  %79 = vadd.xlane.f32.xlu0 %v78
  %v80 = vpop.xlane.xlu0 %79
  %v81 = vsel %vm38, %v35, 0.0
  %82 = vadd.xlane.f32.xlu0 %v81
  %v83 = vpop.xlane.xlu0 %82
  %v84 = vsel %vm38, %v36, 0.0
  %85 = vadd.xlane.f32.xlu0 %v84
  %v86 = vpop.xlane.xlu0 %85
  %vm87 = vcmask 254976
  %v88 = vsel %vm87, %v37, 0.0
  %89 = vadd.xlane.f32.xlu0 %v88
  %v90 = vpop.xlane.xlu0 %89
  %v91 = vmul.f32 %v21, %v21
  %v92 = vmul.f32 %v22, %v22
  %v93 = vmul.f32 %v23, %v23
  %v94 = vmul.f32 %v24, %v24
  %v95 = vmul.f32 %v25, %v25
  %v96 = vmul.f32 %v26, %v26
  %v97 = vmul.f32 %v27, %v27
  %v98 = vmul.f32 %v28, %v28
  %v99 = vmul.f32 %v29, %v29
  %v100 = vmul.f32 %v30, %v30
  %v101 = vmul.f32 %v31, %v31
  %v102 = vmul.f32 %v32, %v32
  %v103 = vmul.f32 %v33, %v33
  %v104 = vmul.f32 %v34, %v34
  %v105 = vmul.f32 %v35, %v35
  %v106 = vmul.f32 %v36, %v36
  %v107 = vmul.f32 %v37, %v37
  %v108 = vsel %vm38, %v91, 0.0
  %109 = vadd.xlane.f32.xlu0 %v108
  %v110 = vpop.xlane.xlu0 %109
  %v111 = vsel %vm38, %v92, 0.0
  %112 = vadd.xlane.f32.xlu0 %v111
  %v113 = vpop.xlane.xlu0 %112
  %v114 = vsel %vm38, %v93, 0.0
  %115 = vadd.xlane.f32.xlu0 %v114
  %v116 = vpop.xlane.xlu0 %115
  %v117 = vsel %vm38, %v94, 0.0
  %118 = vadd.xlane.f32.xlu0 %v117
  %v119 = vpop.xlane.xlu0 %118
  %v120 = vsel %vm38, %v95, 0.0
  %121 = vadd.xlane.f32.xlu0 %v120
  %v122 = vpop.xlane.xlu0 %121
  %v123 = vsel %vm38, %v96, 0.0
  %124 = vadd.xlane.f32.xlu0 %v123
  %v125 = vpop.xlane.xlu0 %124
  %v126 = vsel %vm38, %v97, 0.0
  %127 = vadd.xlane.f32.xlu0 %v126
  %v128 = vpop.xlane.xlu0 %127
  %v129 = vsel %vm38, %v98, 0.0
  %130 = vadd.xlane.f32.xlu0 %v129
  %v131 = vpop.xlane.xlu0 %130
  %v132 = vsel %vm38, %v99, 0.0
  %133 = vadd.xlane.f32.xlu0 %v132
  %v134 = vpop.xlane.xlu0 %133
  %v135 = vsel %vm38, %v100, 0.0
  %136 = vadd.xlane.f32.xlu0 %v135
  %v137 = vpop.xlane.xlu0 %136
  %v138 = vsel %vm38, %v101, 0.0
  %139 = vadd.xlane.f32.xlu0 %v138
  %v140 = vpop.xlane.xlu0 %139
  %v141 = vsel %vm38, %v102, 0.0
  %142 = vadd.xlane.f32.xlu0 %v141
  %v143 = vpop.xlane.xlu0 %142
  %v144 = vsel %vm38, %v103, 0.0
  %145 = vadd.xlane.f32.xlu0 %v144
  %v146 = vpop.xlane.xlu0 %145
  %v147 = vsel %vm38, %v104, 0.0
  %148 = vadd.xlane.f32.xlu0 %v147
  %v149 = vpop.xlane.xlu0 %148
  %v150 = vsel %vm38, %v105, 0.0
  %151 = vadd.xlane.f32.xlu0 %v150
  %v152 = vpop.xlane.xlu0 %151
  %v153 = vsel %vm38, %v106, 0.0
  %154 = vadd.xlane.f32.xlu0 %v153
  %v155 = vpop.xlane.xlu0 %154
  %v156 = vsel %vm87, %v107, 0.0
  %157 = vadd.xlane.f32.xlu0 %v156
  %v158 = vpop.xlane.xlu0 %157
  %v159 = vmul.f32 %v41, 0.03125
  %v160 = vmul.f32 %v44, 0.03125
  %v161 = vmul.f32 %v47, 0.03125
  %v162 = vmul.f32 %v50, 0.03125
  %v163 = vmul.f32 %v53, 0.03125
  %v164 = vmul.f32 %v56, 0.03125
  %v165 = vmul.f32 %v59, 0.03125
  %v166 = vmul.f32 %v62, 0.03125
  %v167 = vmul.f32 %v65, 0.03125
  %v168 = vmul.f32 %v68, 0.03125
  %v169 = vmul.f32 %v71, 0.03125
  %v170 = vmul.f32 %v74, 0.03125
  %v171 = vmul.f32 %v77, 0.03125
  %v172 = vmul.f32 %v80, 0.03125
  %v173 = vmul.f32 %v83, 0.03125
  %v174 = vmul.f32 %v86, 0.03125
  %v175 = vmul.f32 %v90, 0.03125
  %v176 = vmul.f32 %v110, 0.03125
  %v177 = vmul.f32 %v113, 0.03125
  %v178 = vmul.f32 %v116, 0.03125
  %v179 = vmul.f32 %v119, 0.03125
  %v180 = vmul.f32 %v122, 0.03125
  %v181 = vmul.f32 %v125, 0.03125
  %v182 = vmul.f32 %v128, 0.03125
  %v183 = vmul.f32 %v131, 0.03125
  %v184 = vmul.f32 %v134, 0.03125
  %v185 = vmul.f32 %v137, 0.03125
  %v186 = vmul.f32 %v140, 0.03125
  %v187 = vmul.f32 %v143, 0.03125
  %v188 = vmul.f32 %v146, 0.03125
  %v189 = vmul.f32 %v149, 0.03125
  %v190 = vmul.f32 %v152, 0.03125
  %v191 = vmul.f32 %v155, 0.03125
  %v192 = vmul.f32 %v158, 0.03125
  %v193 = vmul.f32 %v159, %v159
  %v194 = vmul.f32 %v160, %v160
  %v195 = vmul.f32 %v161, %v161
  %v196 = vmul.f32 %v162, %v162
  %v197 = vmul.f32 %v163, %v163
  %v198 = vmul.f32 %v164, %v164
  %v199 = vmul.f32 %v165, %v165
  %v200 = vmul.f32 %v166, %v166
  %v201 = vmul.f32 %v167, %v167
  %v202 = vmul.f32 %v168, %v168
  %v203 = vmul.f32 %v169, %v169
  %v204 = vmul.f32 %v170, %v170
  %v205 = vmul.f32 %v171, %v171
  %v206 = vmul.f32 %v172, %v172
  %v207 = vmul.f32 %v173, %v173
  %v208 = vmul.f32 %v174, %v174
  %v209 = vmul.f32 %v175, %v175
  %v210 = vsub.f32 %v176, %v193
  %v211 = vsub.f32 %v177, %v194
  %v212 = vsub.f32 %v178, %v195
  %v213 = vsub.f32 %v179, %v196
  %v214 = vsub.f32 %v180, %v197
  %v215 = vsub.f32 %v181, %v198
  %v216 = vsub.f32 %v182, %v199
  %v217 = vsub.f32 %v183, %v200
  %v218 = vsub.f32 %v184, %v201
  %v219 = vsub.f32 %v185, %v202
  %v220 = vsub.f32 %v186, %v203
  %v221 = vsub.f32 %v187, %v204
  %v222 = vsub.f32 %v188, %v205
  %v223 = vsub.f32 %v189, %v206
  %v224 = vsub.f32 %v190, %v207
  %v225 = vsub.f32 %v191, %v208
  %v226 = vsub.f32 %v192, %v209
  %v227 = vsub.f32 %v21, %v159
  %v228 = vsub.f32 %v22, %v160
  %v229 = vsub.f32 %v23, %v161
  %v230 = vsub.f32 %v24, %v162
  %v231 = vsub.f32 %v25, %v163
  %v232 = vsub.f32 %v26, %v164
  %v233 = vsub.f32 %v27, %v165
  %v234 = vsub.f32 %v28, %v166
  %v235 = vsub.f32 %v29, %v167
  %v236 = vsub.f32 %v30, %v168
  %v237 = vsub.f32 %v31, %v169
  %v238 = vsub.f32 %v32, %v170
  %v239 = vsub.f32 %v33, %v171
  %v240 = vsub.f32 %v34, %v172
  %v241 = vsub.f32 %v35, %v173
  %v242 = vsub.f32 %v36, %v174
  %v243 = vsub.f32 %v37, %v175
  %v244 = vadd.f32 %v210, 1e-05
  %v245 = vadd.f32 %v211, 1e-05
  %v246 = vadd.f32 %v212, 1e-05
  %v247 = vadd.f32 %v213, 1e-05
  %v248 = vadd.f32 %v214, 1e-05
  %v249 = vadd.f32 %v215, 1e-05
  %v250 = vadd.f32 %v216, 1e-05
  %v251 = vadd.f32 %v217, 1e-05
  %v252 = vadd.f32 %v218, 1e-05
  %v253 = vadd.f32 %v219, 1e-05
  %v254 = vadd.f32 %v220, 1e-05
  %v255 = vadd.f32 %v221, 1e-05
  %v256 = vadd.f32 %v222, 1e-05
  %v257 = vadd.f32 %v223, 1e-05
  %v258 = vadd.f32 %v224, 1e-05
  %v259 = vadd.f32 %v225, 1e-05
  %v260 = vadd.f32 %v226, 1e-05
  %v261 = vrsqrt.pop %v244
  %v262 = vrsqrt.pop %v245
  %v263 = vrsqrt.pop %v246
  %v264 = vrsqrt.pop %v247
  %v265 = vrsqrt.pop %v248
  %v266 = vrsqrt.pop %v249
  %v267 = vrsqrt.pop %v250
  %v268 = vrsqrt.pop %v251
  %v269 = vrsqrt.pop %v252
  %v270 = vrsqrt.pop %v253
  %v271 = vrsqrt.pop %v254
  %v272 = vrsqrt.pop %v255
  %v273 = vrsqrt.pop %v256
  %v274 = vrsqrt.pop %v257
  %v275 = vrsqrt.pop %v258
  %v276 = vrsqrt.pop %v259
  %v277 = vrsqrt.pop %v260
  %v278 = vmul.f32 %v227, %v261
  %v279 = vmul.f32 %v228, %v262
  %v280 = vmul.f32 %v229, %v263
  %v281 = vmul.f32 %v230, %v264
  %v282 = vmul.f32 %v231, %v265
  %v283 = vmul.f32 %v232, %v266
  %v284 = vmul.f32 %v233, %v267
  %v285 = vmul.f32 %v234, %v268
  %v286 = vmul.f32 %v235, %v269
  %v287 = vmul.f32 %v236, %v270
  %v288 = vmul.f32 %v237, %v271
  %v289 = vmul.f32 %v238, %v272
  %v290 = vmul.f32 %v239, %v273
  %v291 = vmul.f32 %v240, %v274
  %v292 = vmul.f32 %v241, %v275
  %v293 = vmul.f32 %v242, %v276
  %v294 = vmul.f32 %v243, %v277
  %v295 = vld [vmem:[%s1] sm:$0x1]
  %v297 = vlaneseq
  %v298 = vshrl.u32 %v297, 7
  %v299 = vsub.s32 0, %v298
  %v300 = vrot.slane %v295, %v299
  %v302 = vmul.f32 %v278, %v300
  %v303 = vmul.f32 %v279, %v300
  %v304 = vmul.f32 %v280, %v300
  %v305 = vmul.f32 %v281, %v300
  %v306 = vmul.f32 %v282, %v300
  %v307 = vmul.f32 %v283, %v300
  %v308 = vmul.f32 %v284, %v300
  %v309 = vmul.f32 %v285, %v300
  %v310 = vmul.f32 %v286, %v300
  %v311 = vmul.f32 %v287, %v300
  %v312 = vmul.f32 %v288, %v300
  %v313 = vmul.f32 %v289, %v300
  %v314 = vmul.f32 %v290, %v300
  %v315 = vmul.f32 %v291, %v300
  %v316 = vmul.f32 %v292, %v300
  %v317 = vmul.f32 %v293, %v300
  %v318 = vmul.f32 %v294, %v300
  %v319 = vld [vmem:[%s2] sm:$0x1]
  %v321 = vlaneseq
  %v322 = vshrl.u32 %v321, 7
  %v323 = vsub.s32 0, %v322
  %v324 = vrot.slane %v319, %v323
  %v326 = vadd.f32 %v302, %v324
  %v327 = vadd.f32 %v303, %v324
  %v328 = vadd.f32 %v304, %v324
  %v329 = vadd.f32 %v305, %v324
  %v330 = vadd.f32 %v306, %v324
  %v331 = vadd.f32 %v307, %v324
  %v332 = vadd.f32 %v308, %v324
  %v333 = vadd.f32 %v309, %v324
  %v334 = vadd.f32 %v310, %v324
  %v335 = vadd.f32 %v311, %v324
  %v336 = vadd.f32 %v312, %v324
  %v337 = vadd.f32 %v313, %v324
  %v338 = vadd.f32 %v314, %v324
  %v339 = vadd.f32 %v315, %v324
  %v340 = vadd.f32 %v316, %v324
  %v341 = vadd.f32 %v317, %v324
  %v342 = vadd.f32 %v318, %v324
  %v343 = vpack.c.bf16 %v327, %v326
  %v344 = vpack.c.bf16 %v329, %v328
  %v345 = vpack.c.bf16 %v331, %v330
  %v346 = vpack.c.bf16 %v333, %v332
  %v347 = vpack.c.bf16 %v335, %v334
  %v348 = vpack.c.bf16 %v337, %v336
  %v349 = vpack.c.bf16 %v339, %v338
  %v350 = vpack.c.bf16 %v341, %v340
  %v351 = vpack.c.bf16 %v342, %v342
  %v352 = vld [vmem:[%s3] sm:$0xf]
  %v353 = vld [vmem:[%s3 + $0x4] sm:$0xf]
  %v354 = vld [vmem:[%s3 + $0x8] sm:$0xf]
  %v355 = vld [vmem:[%s3 + $0xc] sm:$0xf]
  %v356 = vld [vmem:[%s4] sm:$0x1]
  %v358 = vlaneseq
  %v359 = vshrl.u32 %v358, 7
  %v360 = vsub.s32 0, %v359
  %v361 = vrot.slane %v356, %v360
  %v367 = vunpack.c.l.b16 %v352
  %v368 = vunpack.c.l.b16 %v353
  %v369 = vunpack.c.l.b16 %v354
  %v370 = vunpack.c.l.b16 %v355
  %v371 = vpack.c.b16 %v368, %v367
  %v372 = vpack.c.b16 %v370, %v369
  %v376 = vsel %vm38, %v343, 0
  %v379 = vsel %vm38, %v344, 0
  %v382 = vsel %vm38, %v345, 0
  %v385 = vsel %vm38, %v346, 0
  %v388 = vsel %vm38, %v347, 0
  %v391 = vsel %vm38, %v348, 0
  %v394 = vsel %vm38, %v349, 0
  %v397 = vsel %vm38, %v350, 0
  %v400 = vsel %vm38, %v351, 0
  %402 = vmatprep.subr.bf16.mxu0 0
  %403 = vmatpush1.bf16.msra.mxu0 %v371
  %404 = vmatprep.subr.bf16.mxu0 0
  %405 = vmatpush1.bf16.msra.mxu0 %v372
  %406 = vmatprep.subr.bf16.mxu0 0
  %407 = vmatpush1.bf16.msra.mxu0 0
  %408 = vmatprep.subr.bf16.mxu0 0
  %409 = vmatpush1.bf16.msra.mxu0 0
  %410 = vmatprep.subr.bf16.mxu0 0
  %411 = vmatpush1.bf16.msra.mxu0 0
  %412 = vmatprep.subr.bf16.mxu0 0
  %413 = vmatpush1.bf16.msra.mxu0 0
  %414 = vmatprep.subr.bf16.mxu0 0
  %415 = vmatpush1.bf16.msra.mxu0 0
  %416 = vmatprep.subr.bf16.mxu0 0
  %417 = vmatpush1.bf16.msra.mxu0 0
  %418 = vmatprep.subr.bf16.mxu0 0
  %419 = vmatpush1.bf16.msra.mxu0 0
  %420 = vmatprep.subr.bf16.mxu0 0
  %421 = vmatpush1.bf16.msra.mxu0 0
  %422 = vmatprep.subr.bf16.mxu0 0
  %423 = vmatpush1.bf16.msra.mxu0 0
  %424 = vmatprep.subr.bf16.mxu0 0
  %425 = vmatpush1.bf16.msra.mxu0 0
  %426 = vmatprep.subr.bf16.mxu0 0
  %427 = vmatpush1.bf16.msra.mxu0 0
  %428 = vmatprep.subr.bf16.mxu0 0
  %429 = vmatpush1.bf16.msra.mxu0 0
  %430 = vmatprep.subr.bf16.mxu0 0
  %431 = vmatpush1.bf16.msra.mxu0 0
  %432 = vmatprep.subr.bf16.mxu0 0
  %433 = vmatpush1.bf16.msra.mxu0 0
  %434 = vmatprep.mubr.bf16.mxu0 0
  %435 = vmatmul.mubr.bf16.gmra.mrb[0].mxu0 %v376
  %v436 = vpop.f32.mrb[0].mxu0
  %v437 = vadd.f32 %v361, %v436
  %v438 = vpop.f32.mrb[0].mxu0
  %v439 = vpop.f32.mrb[0].mxu0
  %v440 = vadd.f32 %v361, %v439
  %v441 = vpop.f32.mrb[0].mxu0
  %442 = vmatprep.mubr.bf16.mxu0 0
  %443 = vmatmul.mubr.bf16.gmra.mrb[0].mxu0 %v379
  %v444 = vpop.f32.mrb[0].mxu0
  %v445 = vadd.f32 %v361, %v444
  %v446 = vpop.f32.mrb[0].mxu0
  %v447 = vpop.f32.mrb[0].mxu0
  %v448 = vadd.f32 %v361, %v447
  %v449 = vpop.f32.mrb[0].mxu0
  %450 = vmatprep.mubr.bf16.mxu0 0
  %451 = vmatmul.mubr.bf16.gmra.mrb[0].mxu0 %v382
  %v452 = vpop.f32.mrb[0].mxu0
  %v453 = vadd.f32 %v361, %v452
  %v454 = vpop.f32.mrb[0].mxu0
  %v455 = vpop.f32.mrb[0].mxu0
  %v456 = vadd.f32 %v361, %v455
  %v457 = vpop.f32.mrb[0].mxu0
  %458 = vmatprep.mubr.bf16.mxu0 0
  %459 = vmatmul.mubr.bf16.gmra.mrb[0].mxu0 %v385
  %v460 = vpop.f32.mrb[0].mxu0
  %v461 = vadd.f32 %v361, %v460
  %v462 = vpop.f32.mrb[0].mxu0
  %v463 = vpop.f32.mrb[0].mxu0
  %v464 = vadd.f32 %v361, %v463
  %v465 = vpop.f32.mrb[0].mxu0
  %466 = vmatprep.mubr.bf16.mxu0 0
  %467 = vmatmul.mubr.bf16.gmra.mrb[0].mxu0 %v388
  %v468 = vpop.f32.mrb[0].mxu0
  %v469 = vadd.f32 %v361, %v468
  %v470 = vpop.f32.mrb[0].mxu0
  %v471 = vpop.f32.mrb[0].mxu0
  %v472 = vadd.f32 %v361, %v471
  %v473 = vpop.f32.mrb[0].mxu0
  %474 = vmatprep.mubr.bf16.mxu0 0
  %475 = vmatmul.mubr.bf16.gmra.mrb[0].mxu0 %v391
  %v476 = vpop.f32.mrb[0].mxu0
  %v477 = vadd.f32 %v361, %v476
  %v478 = vpop.f32.mrb[0].mxu0
  %v479 = vpop.f32.mrb[0].mxu0
  %v480 = vadd.f32 %v361, %v479
  %v481 = vpop.f32.mrb[0].mxu0
  %482 = vmatprep.mubr.bf16.mxu0 0
  %483 = vmatmul.mubr.bf16.gmra.mrb[0].mxu0 %v394
  %v484 = vpop.f32.mrb[0].mxu0
  %v485 = vadd.f32 %v361, %v484
  %v486 = vpop.f32.mrb[0].mxu0
  %v487 = vpop.f32.mrb[0].mxu0
  %v488 = vadd.f32 %v361, %v487
  %v489 = vpop.f32.mrb[0].mxu0
  %490 = vmatprep.mubr.bf16.mxu0 0
  %491 = vmatmul.mubr.bf16.gmra.mrb[0].mxu0 %v397
  %v492 = vpop.f32.mrb[0].mxu0
  %v493 = vadd.f32 %v361, %v492
  %v494 = vpop.f32.mrb[0].mxu0
  %v495 = vpop.f32.mrb[0].mxu0
  %v496 = vadd.f32 %v361, %v495
  %v497 = vpop.f32.mrb[0].mxu0
  %498 = vmatprep.mubr.bf16.mxu0 0
  %499 = vmatmul.mubr.bf16.gmra.mrb[0].mxu0 %v400
  %v500 = vpop.f32.mrb[0].mxu0
  %v501 = vadd.f32 %v361, %v500
  %v502 = vpop.f32.mrb[0].mxu0
  %v503 = vpop.f32.mrb[0].mxu0
  %v504 = vpop.f32.mrb[0].mxu0
  %505 = vdwg.mxu0
  %vm506 = vcmask 785408
  %507 = vst.msk [vmem:[%s5] sm:$0xff] %vm506, %v437
  %508 = vst.msk [vmem:[%s5 + $0x8] sm:$0xff] %vm506, %v440
  %509 = vst.msk [vmem:[%s5 + $0x10] sm:$0xff] %vm506, %v445
  %510 = vst.msk [vmem:[%s5 + $0x18] sm:$0xff] %vm506, %v448
  %511 = vst.msk [vmem:[%s5 + $0x20] sm:$0xff] %vm506, %v453
  %512 = vst.msk [vmem:[%s5 + $0x28] sm:$0xff] %vm506, %v456
  %513 = vst.msk [vmem:[%s5 + $0x30] sm:$0xff] %vm506, %v461
  %514 = vst.msk [vmem:[%s5 + $0x38] sm:$0xff] %vm506, %v464
  %515 = vst.msk [vmem:[%s5 + $0x40] sm:$0xff] %vm506, %v469
  %516 = vst.msk [vmem:[%s5 + $0x48] sm:$0xff] %vm506, %v472
  %517 = vst.msk [vmem:[%s5 + $0x50] sm:$0xff] %vm506, %v477
  %518 = vst.msk [vmem:[%s5 + $0x58] sm:$0xff] %vm506, %v480
  %519 = vst.msk [vmem:[%s5 + $0x60] sm:$0xff] %vm506, %v485
  %520 = vst.msk [vmem:[%s5 + $0x68] sm:$0xff] %vm506, %v488
  %521 = vst.msk [vmem:[%s5 + $0x70] sm:$0xff] %vm506, %v493
  %522 = vst.msk [vmem:[%s5 + $0x78] sm:$0xff] %vm506, %v496
  %vm523 = vcmask 779264
  %524 = vst.msk [vmem:[%s5 + $0x80] sm:$0x3] %vm523, %v501
  // Predicated region
  $region22: #{masked_encoder_2d_forward.11} parent=0 // pred_check
    _
  $region23: #{masked_encoder_2d_forward.11} parent=0 // pred_check_branch
    %526 = sbr.rel (0) target = $region25
  $region24: #{masked_encoder_2d_forward.11} parent=0 // pred_region
    _
  $region25: #{masked_encoder_2d_forward.11} parent=0 // pred_fallthru
    _
  // Predicated region
  $region26: #{masked_encoder_2d_forward.11} parent=0 // pred_check
    _
  $region27: #{masked_encoder_2d_forward.11} parent=0 // pred_check_branch
    %528 = sbr.rel (0) target = $region29
  $region28: #{masked_encoder_2d_forward.11} parent=0 // pred_region
    _
  $region29: #{masked_encoder_2d_forward.11} parent=0 // pred_fallthru
    _

// kernel: masked_encoder_2d_forward.14
$region0: #{masked_encoder_2d_forward.14}
  #allocation0 [shape = 'u32[]', space=smem, size = 0x4, offset = 0x4, fixed_abs, tag = 'smem constant byte address 0x4 - core index']
  #allocation1 [shape = 'u32[144,128]{1,0:T(1,128)}', space=vmem, size = 0x12000, scoped, tag = 'internal scratch']
  #allocation2 [shape = 'f32[130,32]{1,0:T(8,128)}', space=vmem, size = 0x11000, scoped, tag = 'scratch operand']
  %s0 = inlined_call_operand.vmem [shape: f32[130,128], index: 0, kind: input, shape index: {}]
  %s1 = inlined_call_operand.vmem [shape: bf16[128,32], index: 1, kind: input, shape index: {}]
  %s2 = inlined_call_operand.vmem [shape: f32[1,32], index: 2, kind: input, shape index: {}]
  %s3 = inlined_call_operand.vmem [shape: f32[130,32], index: 3, kind: input, shape index: {}]
  %s4 = inlined_call_operand.vmem [shape: f32[130,32], index: 4, kind: output, shape index: {}]
  %s5 = sld [smem:[#allocation0]]
  $region34: #{masked_encoder_2d_forward.14} parent=0
    _
  %s7 = ssub.s32 1, %s5
  %s8 = scalar_select 0, %s7, %s5
  // Predicated region
  $region2: #{masked_encoder_2d_forward.14} parent=0 // pred_check
    _
  $region3: #{masked_encoder_2d_forward.14} parent=0 // pred_check_branch
    %10 = sbr.rel (0) target = $region5
  $region4: #{masked_encoder_2d_forward.14} parent=0 // pred_region
    _
  $region5: #{masked_encoder_2d_forward.14} parent=0 // pred_fallthru
    _
  // Predicated region
  $region6: #{masked_encoder_2d_forward.14} parent=0 // pred_check
    _
  $region7: #{masked_encoder_2d_forward.14} parent=0 // pred_check_branch
    %12 = sbr.rel (0) target = $region9
  $region8: #{masked_encoder_2d_forward.14} parent=0 // pred_region
    _
  $region9: #{masked_encoder_2d_forward.14} parent=0 // pred_fallthru
    _
  // Predicated region
  $region10: #{masked_encoder_2d_forward.14} parent=0 // pred_check
    _
  $region11: #{masked_encoder_2d_forward.14} parent=0 // pred_check_branch
    %14 = sbr.rel (0) target = $region13
  $region12: #{masked_encoder_2d_forward.14} parent=0 // pred_region
    _
  $region13: #{masked_encoder_2d_forward.14} parent=0 // pred_fallthru
    _
  // Predicated region
  $region14: #{masked_encoder_2d_forward.14} parent=0 // pred_check
    _
  $region15: #{masked_encoder_2d_forward.14} parent=0 // pred_check_branch
    %16 = sbr.rel (0) target = $region17
  $region16: #{masked_encoder_2d_forward.14} parent=0 // pred_region
    _
  $region17: #{masked_encoder_2d_forward.14} parent=0 // pred_fallthru
    _
  %p18 = scmp.eq.s32.totalorder 0, 0
  // Predicated region
  $region18: #{masked_encoder_2d_forward.14} parent=0 // pred_check
    %p19 = pneg %p18
  $region19: #{masked_encoder_2d_forward.14} parent=0 // pred_check_branch
    %21 = sbr.rel (%p19) target = $region21
  $region20: #{masked_encoder_2d_forward.14} parent=0 // pred_region
    %vm22 = vcmask 261120
    %23 = vst.msk [vmem:[#allocation2] sm:$0xff] %vm22, 0.0
    %24 = vst.msk [vmem:[#allocation2 + $0x8] sm:$0xff] %vm22, 0.0
    %25 = vst.msk [vmem:[#allocation2 + $0x10] sm:$0xff] %vm22, 0.0
    %26 = vst.msk [vmem:[#allocation2 + $0x18] sm:$0xff] %vm22, 0.0
    %27 = vst.msk [vmem:[#allocation2 + $0x20] sm:$0xff] %vm22, 0.0
    %28 = vst.msk [vmem:[#allocation2 + $0x28] sm:$0xff] %vm22, 0.0
    %29 = vst.msk [vmem:[#allocation2 + $0x30] sm:$0xff] %vm22, 0.0
    %30 = vst.msk [vmem:[#allocation2 + $0x38] sm:$0xff] %vm22, 0.0
    %31 = vst.msk [vmem:[#allocation2 + $0x40] sm:$0xff] %vm22, 0.0
    %32 = vst.msk [vmem:[#allocation2 + $0x48] sm:$0xff] %vm22, 0.0
    %33 = vst.msk [vmem:[#allocation2 + $0x50] sm:$0xff] %vm22, 0.0
    %34 = vst.msk [vmem:[#allocation2 + $0x58] sm:$0xff] %vm22, 0.0
    %35 = vst.msk [vmem:[#allocation2 + $0x60] sm:$0xff] %vm22, 0.0
    %36 = vst.msk [vmem:[#allocation2 + $0x68] sm:$0xff] %vm22, 0.0
    %37 = vst.msk [vmem:[#allocation2 + $0x70] sm:$0xff] %vm22, 0.0
    %38 = vst.msk [vmem:[#allocation2 + $0x78] sm:$0xff] %vm22, 0.0
    %vm39 = vcmask 254976
    %40 = vst.msk [vmem:[#allocation2 + $0x80] sm:$0x3] %vm39, 0.0
  $region21: #{masked_encoder_2d_forward.14} parent=0 // pred_fallthru
    _
  %v41 = vld [vmem:[#allocation2] sm:$0xff]
  %v42 = vld [vmem:[#allocation2 + $0x8] sm:$0xff]
  %v43 = vld [vmem:[#allocation2 + $0x10] sm:$0xff]
  %v44 = vld [vmem:[#allocation2 + $0x18] sm:$0xff]
  %v45 = vld [vmem:[#allocation2 + $0x20] sm:$0xff]
  %v46 = vld [vmem:[#allocation2 + $0x28] sm:$0xff]
  %v47 = vld [vmem:[#allocation2 + $0x30] sm:$0xff]
  %v48 = vld [vmem:[#allocation2 + $0x38] sm:$0xff]
  %v49 = vld [vmem:[#allocation2 + $0x40] sm:$0xff]
  %v50 = vld [vmem:[#allocation2 + $0x48] sm:$0xff]
  %v51 = vld [vmem:[#allocation2 + $0x50] sm:$0xff]
  %v52 = vld [vmem:[#allocation2 + $0x58] sm:$0xff]
  %v53 = vld [vmem:[#allocation2 + $0x60] sm:$0xff]
  %v54 = vld [vmem:[#allocation2 + $0x68] sm:$0xff]
  %v55 = vld [vmem:[#allocation2 + $0x70] sm:$0xff]
  %v56 = vld [vmem:[#allocation2 + $0x78] sm:$0xff]
  %v57 = vld [vmem:[#allocation2 + $0x80] sm:$0x3]
  %v58 = vld [vmem:[%s0] sm:$0xff]
  %v59 = vld [vmem:[%s0 + $0x8] sm:$0xff]
  %v60 = vld [vmem:[%s0 + $0x10] sm:$0xff]
  %v61 = vld [vmem:[%s0 + $0x18] sm:$0xff]
  %v62 = vld [vmem:[%s0 + $0x20] sm:$0xff]
  %v63 = vld [vmem:[%s0 + $0x28] sm:$0xff]
  %v64 = vld [vmem:[%s0 + $0x30] sm:$0xff]
  %v65 = vld [vmem:[%s0 + $0x38] sm:$0xff]
  %v66 = vld [vmem:[%s0 + $0x40] sm:$0xff]
  %v67 = vld [vmem:[%s0 + $0x48] sm:$0xff]
  %v68 = vld [vmem:[%s0 + $0x50] sm:$0xff]
  %v69 = vld [vmem:[%s0 + $0x58] sm:$0xff]
  %v70 = vld [vmem:[%s0 + $0x60] sm:$0xff]
  %v71 = vld [vmem:[%s0 + $0x68] sm:$0xff]
  %v72 = vld [vmem:[%s0 + $0x70] sm:$0xff]
  %v73 = vld [vmem:[%s0 + $0x78] sm:$0xff]
  %v74 = vld [vmem:[%s0 + $0x80] sm:$0x3]
  %v75 = vpack.c.bf16 %v59, %v58
  %v76 = vpack.c.bf16 %v61, %v60
  %v77 = vpack.c.bf16 %v63, %v62
  %v78 = vpack.c.bf16 %v65, %v64
  %v79 = vpack.c.bf16 %v67, %v66
  %v80 = vpack.c.bf16 %v69, %v68
  %v81 = vpack.c.bf16 %v71, %v70
  %v82 = vpack.c.bf16 %v73, %v72
  %v83 = vpack.c.bf16 %v74, %v74
  %v84 = vld [vmem:[%s1] sm:$0xf]
  %v85 = vld [vmem:[%s1 + $0x4] sm:$0xf]
  %v86 = vld [vmem:[%s1 + $0x8] sm:$0xf]
  %v87 = vld [vmem:[%s1 + $0xc] sm:$0xf]
  %v88 = vld [vmem:[%s1 + $0x10] sm:$0xf]
  %v89 = vld [vmem:[%s1 + $0x14] sm:$0xf]
  %v90 = vld [vmem:[%s1 + $0x18] sm:$0xf]
  %v91 = vld [vmem:[%s1 + $0x1c] sm:$0xf]
  %v92 = vld [vmem:[%s1 + $0x20] sm:$0xf]
  %v93 = vld [vmem:[%s1 + $0x24] sm:$0xf]
  %v94 = vld [vmem:[%s1 + $0x28] sm:$0xf]
  %v95 = vld [vmem:[%s1 + $0x2c] sm:$0xf]
  %v96 = vld [vmem:[%s1 + $0x30] sm:$0xf]
  %v97 = vld [vmem:[%s1 + $0x34] sm:$0xf]
  %v98 = vld [vmem:[%s1 + $0x38] sm:$0xf]
  %v99 = vld [vmem:[%s1 + $0x3c] sm:$0xf]
  %v116 = vunpack.c.l.b16 %v84
  %v117 = vunpack.c.l.b16 %v85
  %v118 = vunpack.c.l.b16 %v86
  %v119 = vunpack.c.l.b16 %v87
  %v120 = vunpack.c.l.b16 %v88
  %v121 = vunpack.c.l.b16 %v89
  %v122 = vunpack.c.l.b16 %v90
  %v123 = vunpack.c.l.b16 %v91
  %v124 = vunpack.c.l.b16 %v92
  %v125 = vunpack.c.l.b16 %v93
  %v126 = vunpack.c.l.b16 %v94
  %v127 = vunpack.c.l.b16 %v95
  %v128 = vunpack.c.l.b16 %v96
  %v129 = vunpack.c.l.b16 %v97
  %v130 = vunpack.c.l.b16 %v98
  %v131 = vunpack.c.l.b16 %v99
  %v132 = vpack.c.b16 %v117, %v116
  %v133 = vpack.c.b16 %v119, %v118
  %v134 = vpack.c.b16 %v121, %v120
  %v135 = vpack.c.b16 %v123, %v122
  %v136 = vpack.c.b16 %v125, %v124
  %v137 = vpack.c.b16 %v127, %v126
  %v138 = vpack.c.b16 %v129, %v128
  %v139 = vpack.c.b16 %v131, %v130
  %148 = vmatprep.subr.bf16.mxu0 0
  %149 = vmatpush1.bf16.msra.mxu0 %v132
  %150 = vmatprep.subr.bf16.mxu0 0
  %151 = vmatpush1.bf16.msra.mxu0 %v133
  %152 = vmatprep.subr.bf16.mxu0 0
  %153 = vmatpush1.bf16.msra.mxu0 %v134
  %154 = vmatprep.subr.bf16.mxu0 0
  %155 = vmatpush1.bf16.msra.mxu0 %v135
  %156 = vmatprep.subr.bf16.mxu0 0
  %157 = vmatpush1.bf16.msra.mxu0 %v136
  %158 = vmatprep.subr.bf16.mxu0 0
  %159 = vmatpush1.bf16.msra.mxu0 %v137
  %160 = vmatprep.subr.bf16.mxu0 0
  %161 = vmatpush1.bf16.msra.mxu0 %v138
  %162 = vmatprep.subr.bf16.mxu0 0
  %163 = vmatpush1.bf16.msra.mxu0 %v139
  %164 = vmatprep.subr.bf16.mxu0 0
  %165 = vmatpush1.bf16.msra.mxu0 0
  %166 = vmatprep.subr.bf16.mxu0 0
  %167 = vmatpush1.bf16.msra.mxu0 0
  %168 = vmatprep.subr.bf16.mxu0 0
  %169 = vmatpush1.bf16.msra.mxu0 0
  %170 = vmatprep.subr.bf16.mxu0 0
  %171 = vmatpush1.bf16.msra.mxu0 0
  %172 = vmatprep.subr.bf16.mxu0 0
  %173 = vmatpush1.bf16.msra.mxu0 0
  %174 = vmatprep.subr.bf16.mxu0 0
  %175 = vmatpush1.bf16.msra.mxu0 0
  %176 = vmatprep.subr.bf16.mxu0 0
  %177 = vmatpush1.bf16.msra.mxu0 0
  %178 = vmatprep.subr.bf16.mxu0 0
  %179 = vmatpush1.bf16.msra.mxu0 0
  %180 = vmatprep.mubr.bf16.mxu0 0
  %181 = vmatmul.mubr.bf16.gmra.mrb[0].mxu0 %v75
  %v182 = vpop.f32.mrb[0].mxu0
  %v183 = vadd.f32 0.0, %v182
  %v184 = vpop.f32.mrb[0].mxu0
  %v185 = vpop.f32.mrb[0].mxu0
  %v186 = vadd.f32 0.0, %v185
  %v187 = vpop.f32.mrb[0].mxu0
  %188 = vmatprep.mubr.bf16.mxu0 0
  %189 = vmatmul.mubr.bf16.gmra.mrb[0].mxu0 %v76
  %v190 = vpop.f32.mrb[0].mxu0
  %v191 = vadd.f32 0.0, %v190
  %v192 = vpop.f32.mrb[0].mxu0
  %v193 = vpop.f32.mrb[0].mxu0
  %v194 = vadd.f32 0.0, %v193
  %v195 = vpop.f32.mrb[0].mxu0
  %196 = vmatprep.mubr.bf16.mxu0 0
  %197 = vmatmul.mubr.bf16.gmra.mrb[0].mxu0 %v77
  %v198 = vpop.f32.mrb[0].mxu0
  %v199 = vadd.f32 0.0, %v198
  %v200 = vpop.f32.mrb[0].mxu0
  %v201 = vpop.f32.mrb[0].mxu0
  %v202 = vadd.f32 0.0, %v201
  %v203 = vpop.f32.mrb[0].mxu0
  %204 = vmatprep.mubr.bf16.mxu0 0
  %205 = vmatmul.mubr.bf16.gmra.mrb[0].mxu0 %v78
  %v206 = vpop.f32.mrb[0].mxu0
  %v207 = vadd.f32 0.0, %v206
  %v208 = vpop.f32.mrb[0].mxu0
  %v209 = vpop.f32.mrb[0].mxu0
  %v210 = vadd.f32 0.0, %v209
  %v211 = vpop.f32.mrb[0].mxu0
  %212 = vmatprep.mubr.bf16.mxu0 0
  %213 = vmatmul.mubr.bf16.gmra.mrb[0].mxu0 %v79
  %v214 = vpop.f32.mrb[0].mxu0
  %v215 = vadd.f32 0.0, %v214
  %v216 = vpop.f32.mrb[0].mxu0
  %v217 = vpop.f32.mrb[0].mxu0
  %v218 = vadd.f32 0.0, %v217
  %v219 = vpop.f32.mrb[0].mxu0
  %220 = vmatprep.mubr.bf16.mxu0 0
  %221 = vmatmul.mubr.bf16.gmra.mrb[0].mxu0 %v80
  %v222 = vpop.f32.mrb[0].mxu0
  %v223 = vadd.f32 0.0, %v222
  %v224 = vpop.f32.mrb[0].mxu0
  %v225 = vpop.f32.mrb[0].mxu0
  %v226 = vadd.f32 0.0, %v225
  %v227 = vpop.f32.mrb[0].mxu0
  %228 = vmatprep.mubr.bf16.mxu0 0
  %229 = vmatmul.mubr.bf16.gmra.mrb[0].mxu0 %v81
  %v230 = vpop.f32.mrb[0].mxu0
  %v231 = vadd.f32 0.0, %v230
  %v232 = vpop.f32.mrb[0].mxu0
  %v233 = vpop.f32.mrb[0].mxu0
  %v234 = vadd.f32 0.0, %v233
  %v235 = vpop.f32.mrb[0].mxu0
  %236 = vmatprep.mubr.bf16.mxu0 0
  %237 = vmatmul.mubr.bf16.gmra.mrb[0].mxu0 %v82
  %v238 = vpop.f32.mrb[0].mxu0
  %v239 = vadd.f32 0.0, %v238
  %v240 = vpop.f32.mrb[0].mxu0
  %v241 = vpop.f32.mrb[0].mxu0
  %v242 = vadd.f32 0.0, %v241
  %v243 = vpop.f32.mrb[0].mxu0
  %244 = vmatprep.mubr.bf16.mxu0 0
  %245 = vmatmul.mubr.bf16.gmra.mrb[0].mxu0 %v83
  %v246 = vpop.f32.mrb[0].mxu0
  %v247 = vadd.f32 0.0, %v246
  %v248 = vpop.f32.mrb[0].mxu0
  %v249 = vpop.f32.mrb[0].mxu0
  %v250 = vpop.f32.mrb[0].mxu0
  %251 = vdwg.mxu0
  %v252 = vadd.f32 %v41, %v183
  %v253 = vadd.f32 %v42, %v186
  %v254 = vadd.f32 %v43, %v191
  %v255 = vadd.f32 %v44, %v194
  %v256 = vadd.f32 %v45, %v199
  %v257 = vadd.f32 %v46, %v202
  %v258 = vadd.f32 %v47, %v207
  %v259 = vadd.f32 %v48, %v210
  %v260 = vadd.f32 %v49, %v215
  %v261 = vadd.f32 %v50, %v218
  %v262 = vadd.f32 %v51, %v223
  %v263 = vadd.f32 %v52, %v226
  %v264 = vadd.f32 %v53, %v231
  %v265 = vadd.f32 %v54, %v234
  %v266 = vadd.f32 %v55, %v239
  %v267 = vadd.f32 %v56, %v242
  %v268 = vadd.f32 %v57, %v247
  %vm269 = vcmask 261120
  %270 = vst.msk [vmem:[#allocation2] sm:$0xff] %vm269, %v252
  %271 = vst.msk [vmem:[#allocation2 + $0x8] sm:$0xff] %vm269, %v253
  %272 = vst.msk [vmem:[#allocation2 + $0x10] sm:$0xff] %vm269, %v254
  %273 = vst.msk [vmem:[#allocation2 + $0x18] sm:$0xff] %vm269, %v255
  %274 = vst.msk [vmem:[#allocation2 + $0x20] sm:$0xff] %vm269, %v256
  %275 = vst.msk [vmem:[#allocation2 + $0x28] sm:$0xff] %vm269, %v257
  %276 = vst.msk [vmem:[#allocation2 + $0x30] sm:$0xff] %vm269, %v258
  %277 = vst.msk [vmem:[#allocation2 + $0x38] sm:$0xff] %vm269, %v259
  %278 = vst.msk [vmem:[#allocation2 + $0x40] sm:$0xff] %vm269, %v260
  %279 = vst.msk [vmem:[#allocation2 + $0x48] sm:$0xff] %vm269, %v261
  %280 = vst.msk [vmem:[#allocation2 + $0x50] sm:$0xff] %vm269, %v262
  %281 = vst.msk [vmem:[#allocation2 + $0x58] sm:$0xff] %vm269, %v263
  %282 = vst.msk [vmem:[#allocation2 + $0x60] sm:$0xff] %vm269, %v264
  %283 = vst.msk [vmem:[#allocation2 + $0x68] sm:$0xff] %vm269, %v265
  %284 = vst.msk [vmem:[#allocation2 + $0x70] sm:$0xff] %vm269, %v266
  %285 = vst.msk [vmem:[#allocation2 + $0x78] sm:$0xff] %vm269, %v267
  %vm286 = vcmask 254976
  %287 = vst.msk [vmem:[#allocation2 + $0x80] sm:$0x3] %vm286, %v268
  // Predicated region
  $region22: #{masked_encoder_2d_forward.14} parent=0 // pred_check
    %p288 = pneg %p18
  $region23: #{masked_encoder_2d_forward.14} parent=0 // pred_check_branch
    %290 = sbr.rel (%p288) target = $region25
  $region24: #{masked_encoder_2d_forward.14} parent=0 // pred_region
    %v291 = vld [vmem:[#allocation2] sm:$0xff]
    %v292 = vld [vmem:[#allocation2 + $0x8] sm:$0xff]
    %v293 = vld [vmem:[#allocation2 + $0x10] sm:$0xff]
    %v294 = vld [vmem:[#allocation2 + $0x18] sm:$0xff]
    %v295 = vld [vmem:[#allocation2 + $0x20] sm:$0xff]
    %v296 = vld [vmem:[#allocation2 + $0x28] sm:$0xff]
    %v297 = vld [vmem:[#allocation2 + $0x30] sm:$0xff]
    %v298 = vld [vmem:[#allocation2 + $0x38] sm:$0xff]
    %v299 = vld [vmem:[#allocation2 + $0x40] sm:$0xff]
    %v300 = vld [vmem:[#allocation2 + $0x48] sm:$0xff]
    %v301 = vld [vmem:[#allocation2 + $0x50] sm:$0xff]
    %v302 = vld [vmem:[#allocation2 + $0x58] sm:$0xff]
    %v303 = vld [vmem:[#allocation2 + $0x60] sm:$0xff]
    %v304 = vld [vmem:[#allocation2 + $0x68] sm:$0xff]
    %v305 = vld [vmem:[#allocation2 + $0x70] sm:$0xff]
    %v306 = vld [vmem:[#allocation2 + $0x78] sm:$0xff]
    %v307 = vld [vmem:[#allocation2 + $0x80] sm:$0x3]
    %v308 = vld [vmem:[%s2] sm:$0x1]
    %v310 = vlaneseq
    %v311 = vshrl.u32 %v310, 7
    %v312 = vsub.s32 0, %v311
    %v313 = vrot.slane %v308, %v312
    %v315 = vadd.f32 %v291, %v313
    %v316 = vadd.f32 %v292, %v313
    %v317 = vadd.f32 %v293, %v313
    %v318 = vadd.f32 %v294, %v313
    %v319 = vadd.f32 %v295, %v313
    %v320 = vadd.f32 %v296, %v313
    %v321 = vadd.f32 %v297, %v313
    %v322 = vadd.f32 %v298, %v313
    %v323 = vadd.f32 %v299, %v313
    %v324 = vadd.f32 %v300, %v313
    %v325 = vadd.f32 %v301, %v313
    %v326 = vadd.f32 %v302, %v313
    %v327 = vadd.f32 %v303, %v313
    %v328 = vadd.f32 %v304, %v313
    %v329 = vadd.f32 %v305, %v313
    %v330 = vadd.f32 %v306, %v313
    %v331 = vadd.f32 %v307, %v313
    %v332 = vld [vmem:[%s3] sm:$0xff]
    %v333 = vld [vmem:[%s3 + $0x8] sm:$0xff]
    %v334 = vld [vmem:[%s3 + $0x10] sm:$0xff]
    %v335 = vld [vmem:[%s3 + $0x18] sm:$0xff]
    %v336 = vld [vmem:[%s3 + $0x20] sm:$0xff]
    %v337 = vld [vmem:[%s3 + $0x28] sm:$0xff]
    %v338 = vld [vmem:[%s3 + $0x30] sm:$0xff]
    %v339 = vld [vmem:[%s3 + $0x38] sm:$0xff]
    %v340 = vld [vmem:[%s3 + $0x40] sm:$0xff]
    %v341 = vld [vmem:[%s3 + $0x48] sm:$0xff]
    %v342 = vld [vmem:[%s3 + $0x50] sm:$0xff]
    %v343 = vld [vmem:[%s3 + $0x58] sm:$0xff]
    %v344 = vld [vmem:[%s3 + $0x60] sm:$0xff]
    %v345 = vld [vmem:[%s3 + $0x68] sm:$0xff]
    %v346 = vld [vmem:[%s3 + $0x70] sm:$0xff]
    %v347 = vld [vmem:[%s3 + $0x78] sm:$0xff]
    %v348 = vld [vmem:[%s3 + $0x80] sm:$0x3]
    %v349 = vadd.f32 %v315, %v332
    %v350 = vadd.f32 %v316, %v333
    %v351 = vadd.f32 %v317, %v334
    %v352 = vadd.f32 %v318, %v335
    %v353 = vadd.f32 %v319, %v336
    %v354 = vadd.f32 %v320, %v337
    %v355 = vadd.f32 %v321, %v338
    %v356 = vadd.f32 %v322, %v339
    %v357 = vadd.f32 %v323, %v340
    %v358 = vadd.f32 %v324, %v341
    %v359 = vadd.f32 %v325, %v342
    %v360 = vadd.f32 %v326, %v343
    %v361 = vadd.f32 %v327, %v344
    %v362 = vadd.f32 %v328, %v345
    %v363 = vadd.f32 %v329, %v346
    %v364 = vadd.f32 %v330, %v347
    %v365 = vadd.f32 %v331, %v348
    %366 = vst.msk [vmem:[%s4] sm:$0xff] %vm269, %v349
    %367 = vst.msk [vmem:[%s4 + $0x8] sm:$0xff] %vm269, %v350
    %368 = vst.msk [vmem:[%s4 + $0x10] sm:$0xff] %vm269, %v351
    %369 = vst.msk [vmem:[%s4 + $0x18] sm:$0xff] %vm269, %v352
    %370 = vst.msk [vmem:[%s4 + $0x20] sm:$0xff] %vm269, %v353
    %371 = vst.msk [vmem:[%s4 + $0x28] sm:$0xff] %vm269, %v354
    %372 = vst.msk [vmem:[%s4 + $0x30] sm:$0xff] %vm269, %v355
    %373 = vst.msk [vmem:[%s4 + $0x38] sm:$0xff] %vm269, %v356
    %374 = vst.msk [vmem:[%s4 + $0x40] sm:$0xff] %vm269, %v357
    %375 = vst.msk [vmem:[%s4 + $0x48] sm:$0xff] %vm269, %v358
    %376 = vst.msk [vmem:[%s4 + $0x50] sm:$0xff] %vm269, %v359
    %377 = vst.msk [vmem:[%s4 + $0x58] sm:$0xff] %vm269, %v360
    %378 = vst.msk [vmem:[%s4 + $0x60] sm:$0xff] %vm269, %v361
    %379 = vst.msk [vmem:[%s4 + $0x68] sm:$0xff] %vm269, %v362
    %380 = vst.msk [vmem:[%s4 + $0x70] sm:$0xff] %vm269, %v363
    %381 = vst.msk [vmem:[%s4 + $0x78] sm:$0xff] %vm269, %v364
    %382 = vst.msk [vmem:[%s4 + $0x80] sm:$0x3] %vm286, %v365
  $region25: #{masked_encoder_2d_forward.14} parent=0 // pred_fallthru
    _
  // Predicated region
  $region26: #{masked_encoder_2d_forward.14} parent=0 // pred_check
    _
  $region27: #{masked_encoder_2d_forward.14} parent=0 // pred_check_branch
    %384 = sbr.rel (0) target = $region29
  $region28: #{masked_encoder_2d_forward.14} parent=0 // pred_region
    _
  $region29: #{masked_encoder_2d_forward.14} parent=0 // pred_fallthru
    _
  // Predicated region
  $region30: #{masked_encoder_2d_forward.14} parent=0 // pred_check
    _
  $region31: #{masked_encoder_2d_forward.14} parent=0 // pred_check_branch
    %386 = sbr.rel (0) target = $region33
  $region32: #{masked_encoder_2d_forward.14} parent=0 // pred_region
    _
  $region33: #{masked_encoder_2d_forward.14} parent=0 // pred_fallthru
    _

// kernel: masked_encoder_2d_forward.19
$region0: #{masked_encoder_2d_forward.19}
  #allocation0 [shape = 'u32[]', space=smem, size = 0x4, offset = 0x4, fixed_abs, tag = 'smem constant byte address 0x4 - core index']
  #allocation1 [shape = 'u32[144,128]{1,0:T(1,128)}', space=vmem, size = 0x12000, scoped, tag = 'internal scratch']
  %s0 = inlined_call_operand.vmem [shape: f32[130,32], index: 0, kind: input, shape index: {}]
  %s1 = inlined_call_operand.vmem [shape: f32[1,32], index: 1, kind: input, shape index: {}]
  %s2 = inlined_call_operand.vmem [shape: f32[1,32], index: 2, kind: input, shape index: {}]
  %s3 = inlined_call_operand.vmem [shape: f32[130,32], index: 3, kind: output, shape index: {}]
  %s4 = sld [smem:[#allocation0]]
  $region22: #{masked_encoder_2d_forward.19} parent=0
    _
  %s6 = ssub.s32 1, %s4
  %s7 = scalar_select 0, %s6, %s4
  // Predicated region
  $region2: #{masked_encoder_2d_forward.19} parent=0 // pred_check
    _
  $region3: #{masked_encoder_2d_forward.19} parent=0 // pred_check_branch
    %9 = sbr.rel (0) target = $region5
  $region4: #{masked_encoder_2d_forward.19} parent=0 // pred_region
    _
  $region5: #{masked_encoder_2d_forward.19} parent=0 // pred_fallthru
    _
  // Predicated region
  $region6: #{masked_encoder_2d_forward.19} parent=0 // pred_check
    _
  $region7: #{masked_encoder_2d_forward.19} parent=0 // pred_check_branch
    %11 = sbr.rel (0) target = $region9
  $region8: #{masked_encoder_2d_forward.19} parent=0 // pred_region
    _
  $region9: #{masked_encoder_2d_forward.19} parent=0 // pred_fallthru
    _
  // Predicated region
  $region10: #{masked_encoder_2d_forward.19} parent=0 // pred_check
    _
  $region11: #{masked_encoder_2d_forward.19} parent=0 // pred_check_branch
    %13 = sbr.rel (0) target = $region13
  $region12: #{masked_encoder_2d_forward.19} parent=0 // pred_region
    _
  $region13: #{masked_encoder_2d_forward.19} parent=0 // pred_fallthru
    _
  %v14 = vld [vmem:[%s0] sm:$0xff]
  %v15 = vld [vmem:[%s0 + $0x8] sm:$0xff]
  %v16 = vld [vmem:[%s0 + $0x10] sm:$0xff]
  %v17 = vld [vmem:[%s0 + $0x18] sm:$0xff]
  %v18 = vld [vmem:[%s0 + $0x20] sm:$0xff]
  %v19 = vld [vmem:[%s0 + $0x28] sm:$0xff]
  %v20 = vld [vmem:[%s0 + $0x30] sm:$0xff]
  %v21 = vld [vmem:[%s0 + $0x38] sm:$0xff]
  %v22 = vld [vmem:[%s0 + $0x40] sm:$0xff]
  %v23 = vld [vmem:[%s0 + $0x48] sm:$0xff]
  %v24 = vld [vmem:[%s0 + $0x50] sm:$0xff]
  %v25 = vld [vmem:[%s0 + $0x58] sm:$0xff]
  %v26 = vld [vmem:[%s0 + $0x60] sm:$0xff]
  %v27 = vld [vmem:[%s0 + $0x68] sm:$0xff]
  %v28 = vld [vmem:[%s0 + $0x70] sm:$0xff]
  %v29 = vld [vmem:[%s0 + $0x78] sm:$0xff]
  %v30 = vld [vmem:[%s0 + $0x80] sm:$0x3]
  %vm31 = vcmask 261120
  %v32 = vsel %vm31, %v14, 0.0
  %33 = vadd.xlane.f32.xlu0 %v32
  %v34 = vpop.xlane.xlu0 %33
  %v35 = vsel %vm31, %v15, 0.0
  %36 = vadd.xlane.f32.xlu0 %v35
  %v37 = vpop.xlane.xlu0 %36
  %v38 = vsel %vm31, %v16, 0.0
  %39 = vadd.xlane.f32.xlu0 %v38
  %v40 = vpop.xlane.xlu0 %39
  %v41 = vsel %vm31, %v17, 0.0
  %42 = vadd.xlane.f32.xlu0 %v41
  %v43 = vpop.xlane.xlu0 %42
  %v44 = vsel %vm31, %v18, 0.0
  %45 = vadd.xlane.f32.xlu0 %v44
  %v46 = vpop.xlane.xlu0 %45
  %v47 = vsel %vm31, %v19, 0.0
  %48 = vadd.xlane.f32.xlu0 %v47
  %v49 = vpop.xlane.xlu0 %48
  %v50 = vsel %vm31, %v20, 0.0
  %51 = vadd.xlane.f32.xlu0 %v50
  %v52 = vpop.xlane.xlu0 %51
  %v53 = vsel %vm31, %v21, 0.0
  %54 = vadd.xlane.f32.xlu0 %v53
  %v55 = vpop.xlane.xlu0 %54
  %v56 = vsel %vm31, %v22, 0.0
  %57 = vadd.xlane.f32.xlu0 %v56
  %v58 = vpop.xlane.xlu0 %57
  %v59 = vsel %vm31, %v23, 0.0
  %60 = vadd.xlane.f32.xlu0 %v59
  %v61 = vpop.xlane.xlu0 %60
  %v62 = vsel %vm31, %v24, 0.0
  %63 = vadd.xlane.f32.xlu0 %v62
  %v64 = vpop.xlane.xlu0 %63
  %v65 = vsel %vm31, %v25, 0.0
  %66 = vadd.xlane.f32.xlu0 %v65
  %v67 = vpop.xlane.xlu0 %66
  %v68 = vsel %vm31, %v26, 0.0
  %69 = vadd.xlane.f32.xlu0 %v68
  %v70 = vpop.xlane.xlu0 %69
  %v71 = vsel %vm31, %v27, 0.0
  %72 = vadd.xlane.f32.xlu0 %v71
  %v73 = vpop.xlane.xlu0 %72
  %v74 = vsel %vm31, %v28, 0.0
  %75 = vadd.xlane.f32.xlu0 %v74
  %v76 = vpop.xlane.xlu0 %75
  %v77 = vsel %vm31, %v29, 0.0
  %78 = vadd.xlane.f32.xlu0 %v77
  %v79 = vpop.xlane.xlu0 %78
  %vm80 = vcmask 254976
  %v81 = vsel %vm80, %v30, 0.0
  %82 = vadd.xlane.f32.xlu0 %v81
  %v83 = vpop.xlane.xlu0 %82
  %v84 = vmul.f32 %v14, %v14
  %v85 = vmul.f32 %v15, %v15
  %v86 = vmul.f32 %v16, %v16
  %v87 = vmul.f32 %v17, %v17
  %v88 = vmul.f32 %v18, %v18
  %v89 = vmul.f32 %v19, %v19
  %v90 = vmul.f32 %v20, %v20
  %v91 = vmul.f32 %v21, %v21
  %v92 = vmul.f32 %v22, %v22
  %v93 = vmul.f32 %v23, %v23
  %v94 = vmul.f32 %v24, %v24
  %v95 = vmul.f32 %v25, %v25
  %v96 = vmul.f32 %v26, %v26
  %v97 = vmul.f32 %v27, %v27
  %v98 = vmul.f32 %v28, %v28
  %v99 = vmul.f32 %v29, %v29
  %v100 = vmul.f32 %v30, %v30
  %v101 = vsel %vm31, %v84, 0.0
  %102 = vadd.xlane.f32.xlu0 %v101
  %v103 = vpop.xlane.xlu0 %102
  %v104 = vsel %vm31, %v85, 0.0
  %105 = vadd.xlane.f32.xlu0 %v104
  %v106 = vpop.xlane.xlu0 %105
  %v107 = vsel %vm31, %v86, 0.0
  %108 = vadd.xlane.f32.xlu0 %v107
  %v109 = vpop.xlane.xlu0 %108
  %v110 = vsel %vm31, %v87, 0.0
  %111 = vadd.xlane.f32.xlu0 %v110
  %v112 = vpop.xlane.xlu0 %111
  %v113 = vsel %vm31, %v88, 0.0
  %114 = vadd.xlane.f32.xlu0 %v113
  %v115 = vpop.xlane.xlu0 %114
  %v116 = vsel %vm31, %v89, 0.0
  %117 = vadd.xlane.f32.xlu0 %v116
  %v118 = vpop.xlane.xlu0 %117
  %v119 = vsel %vm31, %v90, 0.0
  %120 = vadd.xlane.f32.xlu0 %v119
  %v121 = vpop.xlane.xlu0 %120
  %v122 = vsel %vm31, %v91, 0.0
  %123 = vadd.xlane.f32.xlu0 %v122
  %v124 = vpop.xlane.xlu0 %123
  %v125 = vsel %vm31, %v92, 0.0
  %126 = vadd.xlane.f32.xlu0 %v125
  %v127 = vpop.xlane.xlu0 %126
  %v128 = vsel %vm31, %v93, 0.0
  %129 = vadd.xlane.f32.xlu0 %v128
  %v130 = vpop.xlane.xlu0 %129
  %v131 = vsel %vm31, %v94, 0.0
  %132 = vadd.xlane.f32.xlu0 %v131
  %v133 = vpop.xlane.xlu0 %132
  %v134 = vsel %vm31, %v95, 0.0
  %135 = vadd.xlane.f32.xlu0 %v134
  %v136 = vpop.xlane.xlu0 %135
  %v137 = vsel %vm31, %v96, 0.0
  %138 = vadd.xlane.f32.xlu0 %v137
  %v139 = vpop.xlane.xlu0 %138
  %v140 = vsel %vm31, %v97, 0.0
  %141 = vadd.xlane.f32.xlu0 %v140
  %v142 = vpop.xlane.xlu0 %141
  %v143 = vsel %vm31, %v98, 0.0
  %144 = vadd.xlane.f32.xlu0 %v143
  %v145 = vpop.xlane.xlu0 %144
  %v146 = vsel %vm31, %v99, 0.0
  %147 = vadd.xlane.f32.xlu0 %v146
  %v148 = vpop.xlane.xlu0 %147
  %v149 = vsel %vm80, %v100, 0.0
  %150 = vadd.xlane.f32.xlu0 %v149
  %v151 = vpop.xlane.xlu0 %150
  %v152 = vmul.f32 %v34, 0.03125
  %v153 = vmul.f32 %v37, 0.03125
  %v154 = vmul.f32 %v40, 0.03125
  %v155 = vmul.f32 %v43, 0.03125
  %v156 = vmul.f32 %v46, 0.03125
  %v157 = vmul.f32 %v49, 0.03125
  %v158 = vmul.f32 %v52, 0.03125
  %v159 = vmul.f32 %v55, 0.03125
  %v160 = vmul.f32 %v58, 0.03125
  %v161 = vmul.f32 %v61, 0.03125
  %v162 = vmul.f32 %v64, 0.03125
  %v163 = vmul.f32 %v67, 0.03125
  %v164 = vmul.f32 %v70, 0.03125
  %v165 = vmul.f32 %v73, 0.03125
  %v166 = vmul.f32 %v76, 0.03125
  %v167 = vmul.f32 %v79, 0.03125
  %v168 = vmul.f32 %v83, 0.03125
  %v169 = vmul.f32 %v103, 0.03125
  %v170 = vmul.f32 %v106, 0.03125
  %v171 = vmul.f32 %v109, 0.03125
  %v172 = vmul.f32 %v112, 0.03125
  %v173 = vmul.f32 %v115, 0.03125
  %v174 = vmul.f32 %v118, 0.03125
  %v175 = vmul.f32 %v121, 0.03125
  %v176 = vmul.f32 %v124, 0.03125
  %v177 = vmul.f32 %v127, 0.03125
  %v178 = vmul.f32 %v130, 0.03125
  %v179 = vmul.f32 %v133, 0.03125
  %v180 = vmul.f32 %v136, 0.03125
  %v181 = vmul.f32 %v139, 0.03125
  %v182 = vmul.f32 %v142, 0.03125
  %v183 = vmul.f32 %v145, 0.03125
  %v184 = vmul.f32 %v148, 0.03125
  %v185 = vmul.f32 %v151, 0.03125
  %v186 = vmul.f32 %v152, %v152
  %v187 = vmul.f32 %v153, %v153
  %v188 = vmul.f32 %v154, %v154
  %v189 = vmul.f32 %v155, %v155
  %v190 = vmul.f32 %v156, %v156
  %v191 = vmul.f32 %v157, %v157
  %v192 = vmul.f32 %v158, %v158
  %v193 = vmul.f32 %v159, %v159
  %v194 = vmul.f32 %v160, %v160
  %v195 = vmul.f32 %v161, %v161
  %v196 = vmul.f32 %v162, %v162
  %v197 = vmul.f32 %v163, %v163
  %v198 = vmul.f32 %v164, %v164
  %v199 = vmul.f32 %v165, %v165
  %v200 = vmul.f32 %v166, %v166
  %v201 = vmul.f32 %v167, %v167
  %v202 = vmul.f32 %v168, %v168
  %v203 = vsub.f32 %v169, %v186
  %v204 = vsub.f32 %v170, %v187
  %v205 = vsub.f32 %v171, %v188
  %v206 = vsub.f32 %v172, %v189
  %v207 = vsub.f32 %v173, %v190
  %v208 = vsub.f32 %v174, %v191
  %v209 = vsub.f32 %v175, %v192
  %v210 = vsub.f32 %v176, %v193
  %v211 = vsub.f32 %v177, %v194
  %v212 = vsub.f32 %v178, %v195
  %v213 = vsub.f32 %v179, %v196
  %v214 = vsub.f32 %v180, %v197
  %v215 = vsub.f32 %v181, %v198
  %v216 = vsub.f32 %v182, %v199
  %v217 = vsub.f32 %v183, %v200
  %v218 = vsub.f32 %v184, %v201
  %v219 = vsub.f32 %v185, %v202
  %v220 = vsub.f32 %v14, %v152
  %v221 = vsub.f32 %v15, %v153
  %v222 = vsub.f32 %v16, %v154
  %v223 = vsub.f32 %v17, %v155
  %v224 = vsub.f32 %v18, %v156
  %v225 = vsub.f32 %v19, %v157
  %v226 = vsub.f32 %v20, %v158
  %v227 = vsub.f32 %v21, %v159
  %v228 = vsub.f32 %v22, %v160
  %v229 = vsub.f32 %v23, %v161
  %v230 = vsub.f32 %v24, %v162
  %v231 = vsub.f32 %v25, %v163
  %v232 = vsub.f32 %v26, %v164
  %v233 = vsub.f32 %v27, %v165
  %v234 = vsub.f32 %v28, %v166
  %v235 = vsub.f32 %v29, %v167
  %v236 = vsub.f32 %v30, %v168
  %v237 = vadd.f32 %v203, 1e-05
  %v238 = vadd.f32 %v204, 1e-05
  %v239 = vadd.f32 %v205, 1e-05
  %v240 = vadd.f32 %v206, 1e-05
  %v241 = vadd.f32 %v207, 1e-05
  %v242 = vadd.f32 %v208, 1e-05
  %v243 = vadd.f32 %v209, 1e-05
  %v244 = vadd.f32 %v210, 1e-05
  %v245 = vadd.f32 %v211, 1e-05
  %v246 = vadd.f32 %v212, 1e-05
  %v247 = vadd.f32 %v213, 1e-05
  %v248 = vadd.f32 %v214, 1e-05
  %v249 = vadd.f32 %v215, 1e-05
  %v250 = vadd.f32 %v216, 1e-05
  %v251 = vadd.f32 %v217, 1e-05
  %v252 = vadd.f32 %v218, 1e-05
  %v253 = vadd.f32 %v219, 1e-05
  %v254 = vrsqrt.pop %v237
  %v255 = vrsqrt.pop %v238
  %v256 = vrsqrt.pop %v239
  %v257 = vrsqrt.pop %v240
  %v258 = vrsqrt.pop %v241
  %v259 = vrsqrt.pop %v242
  %v260 = vrsqrt.pop %v243
  %v261 = vrsqrt.pop %v244
  %v262 = vrsqrt.pop %v245
  %v263 = vrsqrt.pop %v246
  %v264 = vrsqrt.pop %v247
  %v265 = vrsqrt.pop %v248
  %v266 = vrsqrt.pop %v249
  %v267 = vrsqrt.pop %v250
  %v268 = vrsqrt.pop %v251
  %v269 = vrsqrt.pop %v252
  %v270 = vrsqrt.pop %v253
  %v271 = vmul.f32 %v220, %v254
  %v272 = vmul.f32 %v221, %v255
  %v273 = vmul.f32 %v222, %v256
  %v274 = vmul.f32 %v223, %v257
  %v275 = vmul.f32 %v224, %v258
  %v276 = vmul.f32 %v225, %v259
  %v277 = vmul.f32 %v226, %v260
  %v278 = vmul.f32 %v227, %v261
  %v279 = vmul.f32 %v228, %v262
  %v280 = vmul.f32 %v229, %v263
  %v281 = vmul.f32 %v230, %v264
  %v282 = vmul.f32 %v231, %v265
  %v283 = vmul.f32 %v232, %v266
  %v284 = vmul.f32 %v233, %v267
  %v285 = vmul.f32 %v234, %v268
  %v286 = vmul.f32 %v235, %v269
  %v287 = vmul.f32 %v236, %v270
  %v288 = vld [vmem:[%s1] sm:$0x1]
  %v290 = vlaneseq
  %v291 = vshrl.u32 %v290, 7
  %v292 = vsub.s32 0, %v291
  %v293 = vrot.slane %v288, %v292
  %v295 = vmul.f32 %v271, %v293
  %v296 = vmul.f32 %v272, %v293
  %v297 = vmul.f32 %v273, %v293
  %v298 = vmul.f32 %v274, %v293
  %v299 = vmul.f32 %v275, %v293
  %v300 = vmul.f32 %v276, %v293
  %v301 = vmul.f32 %v277, %v293
  %v302 = vmul.f32 %v278, %v293
  %v303 = vmul.f32 %v279, %v293
  %v304 = vmul.f32 %v280, %v293
  %v305 = vmul.f32 %v281, %v293
  %v306 = vmul.f32 %v282, %v293
  %v307 = vmul.f32 %v283, %v293
  %v308 = vmul.f32 %v284, %v293
  %v309 = vmul.f32 %v285, %v293
  %v310 = vmul.f32 %v286, %v293
  %v311 = vmul.f32 %v287, %v293
  %v312 = vld [vmem:[%s2] sm:$0x1]
  %v314 = vlaneseq
  %v315 = vshrl.u32 %v314, 7
  %v316 = vsub.s32 0, %v315
  %v317 = vrot.slane %v312, %v316
  %v319 = vadd.f32 %v295, %v317
  %v320 = vadd.f32 %v296, %v317
  %v321 = vadd.f32 %v297, %v317
  %v322 = vadd.f32 %v298, %v317
  %v323 = vadd.f32 %v299, %v317
  %v324 = vadd.f32 %v300, %v317
  %v325 = vadd.f32 %v301, %v317
  %v326 = vadd.f32 %v302, %v317
  %v327 = vadd.f32 %v303, %v317
  %v328 = vadd.f32 %v304, %v317
  %v329 = vadd.f32 %v305, %v317
  %v330 = vadd.f32 %v306, %v317
  %v331 = vadd.f32 %v307, %v317
  %v332 = vadd.f32 %v308, %v317
  %v333 = vadd.f32 %v309, %v317
  %v334 = vadd.f32 %v310, %v317
  %v335 = vadd.f32 %v311, %v317
  %336 = vst.msk [vmem:[%s3] sm:$0xff] %vm31, %v319
  %337 = vst.msk [vmem:[%s3 + $0x8] sm:$0xff] %vm31, %v320
  %338 = vst.msk [vmem:[%s3 + $0x10] sm:$0xff] %vm31, %v321
  %339 = vst.msk [vmem:[%s3 + $0x18] sm:$0xff] %vm31, %v322
  %340 = vst.msk [vmem:[%s3 + $0x20] sm:$0xff] %vm31, %v323
  %341 = vst.msk [vmem:[%s3 + $0x28] sm:$0xff] %vm31, %v324
  %342 = vst.msk [vmem:[%s3 + $0x30] sm:$0xff] %vm31, %v325
  %343 = vst.msk [vmem:[%s3 + $0x38] sm:$0xff] %vm31, %v326
  %344 = vst.msk [vmem:[%s3 + $0x40] sm:$0xff] %vm31, %v327
  %345 = vst.msk [vmem:[%s3 + $0x48] sm:$0xff] %vm31, %v328
  %346 = vst.msk [vmem:[%s3 + $0x50] sm:$0xff] %vm31, %v329
  %347 = vst.msk [vmem:[%s3 + $0x58] sm:$0xff] %vm31, %v330
  %348 = vst.msk [vmem:[%s3 + $0x60] sm:$0xff] %vm31, %v331
  %349 = vst.msk [vmem:[%s3 + $0x68] sm:$0xff] %vm31, %v332
  %350 = vst.msk [vmem:[%s3 + $0x70] sm:$0xff] %vm31, %v333
  %351 = vst.msk [vmem:[%s3 + $0x78] sm:$0xff] %vm31, %v334
  %352 = vst.msk [vmem:[%s3 + $0x80] sm:$0x3] %vm80, %v335
  // Predicated region
  $region14: #{masked_encoder_2d_forward.19} parent=0 // pred_check
    _
  $region15: #{masked_encoder_2d_forward.19} parent=0 // pred_check_branch
    %354 = sbr.rel (0) target = $region17
  $region16: #{masked_encoder_2d_forward.19} parent=0 // pred_region
    _
  $region17: #{masked_encoder_2d_forward.19} parent=0 // pred_fallthru
    _
  // Predicated region
  $region18: #{masked_encoder_2d_forward.19} parent=0 // pred_check
    _
  $region19: #{masked_encoder_2d_forward.19} parent=0 // pred_check_branch
    %356 = sbr.rel (0) target = $region21
  $region20: #{masked_encoder_2d_forward.19} parent=0 // pred_region
    _
  $region21: #{masked_encoder_2d_forward.19} parent=0 // pred_fallthru
    _

// kernel: masked_encoder_2d_forward.13
$region0: #{masked_encoder_2d_forward.13}
  #allocation0 [shape = 'u32[]', space=smem, size = 0x4, offset = 0x4, fixed_abs, tag = 'smem constant byte address 0x4 - core index']
  #allocation1 [shape = 'u32[144,128]{1,0:T(1,128)}', space=vmem, size = 0x12000, scoped, tag = 'internal scratch']
  %s0 = inlined_call_operand.vmem [shape: f32[130,32], index: 0, kind: input, shape index: {}]
  %s1 = inlined_call_operand.vmem [shape: f32[1,32], index: 1, kind: input, shape index: {}]
  %s2 = inlined_call_operand.vmem [shape: f32[1,32], index: 2, kind: input, shape index: {}]
  %s3 = inlined_call_operand.vmem [shape: bf16[32,128], index: 3, kind: input, shape index: {}]
  %s4 = inlined_call_operand.vmem [shape: f32[1,128], index: 4, kind: input, shape index: {}]
  %s5 = inlined_call_operand.vmem [shape: f32[130,128], index: 5, kind: output, shape index: {}]
  %s6 = sld [smem:[#allocation0]]
  $region30: #{masked_encoder_2d_forward.13} parent=0
    _
  %s8 = ssub.s32 1, %s6
  %s9 = scalar_select 0, %s8, %s6
  // Predicated region
  $region2: #{masked_encoder_2d_forward.13} parent=0 // pred_check
    _
  $region3: #{masked_encoder_2d_forward.13} parent=0 // pred_check_branch
    %11 = sbr.rel (0) target = $region5
  $region4: #{masked_encoder_2d_forward.13} parent=0 // pred_region
    _
  $region5: #{masked_encoder_2d_forward.13} parent=0 // pred_fallthru
    _
  // Predicated region
  $region6: #{masked_encoder_2d_forward.13} parent=0 // pred_check
    _
  $region7: #{masked_encoder_2d_forward.13} parent=0 // pred_check_branch
    %13 = sbr.rel (0) target = $region9
  $region8: #{masked_encoder_2d_forward.13} parent=0 // pred_region
    _
  $region9: #{masked_encoder_2d_forward.13} parent=0 // pred_fallthru
    _
  // Predicated region
  $region10: #{masked_encoder_2d_forward.13} parent=0 // pred_check
    _
  $region11: #{masked_encoder_2d_forward.13} parent=0 // pred_check_branch
    %15 = sbr.rel (0) target = $region13
  $region12: #{masked_encoder_2d_forward.13} parent=0 // pred_region
    _
  $region13: #{masked_encoder_2d_forward.13} parent=0 // pred_fallthru
    _
  // Predicated region
  $region14: #{masked_encoder_2d_forward.13} parent=0 // pred_check
    _
  $region15: #{masked_encoder_2d_forward.13} parent=0 // pred_check_branch
    %17 = sbr.rel (0) target = $region17
  $region16: #{masked_encoder_2d_forward.13} parent=0 // pred_region
    _
  $region17: #{masked_encoder_2d_forward.13} parent=0 // pred_fallthru
    _
  // Predicated region
  $region18: #{masked_encoder_2d_forward.13} parent=0 // pred_check
    _
  $region19: #{masked_encoder_2d_forward.13} parent=0 // pred_check_branch
    %19 = sbr.rel (0) target = $region21
  $region20: #{masked_encoder_2d_forward.13} parent=0 // pred_region
    _
  $region21: #{masked_encoder_2d_forward.13} parent=0 // pred_fallthru
    _
  %v21 = vld [vmem:[%s0] sm:$0xff]
  %v22 = vld [vmem:[%s0 + $0x8] sm:$0xff]
  %v23 = vld [vmem:[%s0 + $0x10] sm:$0xff]
  %v24 = vld [vmem:[%s0 + $0x18] sm:$0xff]
  %v25 = vld [vmem:[%s0 + $0x20] sm:$0xff]
  %v26 = vld [vmem:[%s0 + $0x28] sm:$0xff]
  %v27 = vld [vmem:[%s0 + $0x30] sm:$0xff]
  %v28 = vld [vmem:[%s0 + $0x38] sm:$0xff]
  %v29 = vld [vmem:[%s0 + $0x40] sm:$0xff]
  %v30 = vld [vmem:[%s0 + $0x48] sm:$0xff]
  %v31 = vld [vmem:[%s0 + $0x50] sm:$0xff]
  %v32 = vld [vmem:[%s0 + $0x58] sm:$0xff]
  %v33 = vld [vmem:[%s0 + $0x60] sm:$0xff]
  %v34 = vld [vmem:[%s0 + $0x68] sm:$0xff]
  %v35 = vld [vmem:[%s0 + $0x70] sm:$0xff]
  %v36 = vld [vmem:[%s0 + $0x78] sm:$0xff]
  %v37 = vld [vmem:[%s0 + $0x80] sm:$0x3]
  %vm38 = vcmask 261120
  %v39 = vsel %vm38, %v21, 0.0
  %40 = vadd.xlane.f32.xlu0 %v39
  %v41 = vpop.xlane.xlu0 %40
  %v42 = vsel %vm38, %v22, 0.0
  %43 = vadd.xlane.f32.xlu0 %v42
  %v44 = vpop.xlane.xlu0 %43
  %v45 = vsel %vm38, %v23, 0.0
  %46 = vadd.xlane.f32.xlu0 %v45
  %v47 = vpop.xlane.xlu0 %46
  %v48 = vsel %vm38, %v24, 0.0
  %49 = vadd.xlane.f32.xlu0 %v48
  %v50 = vpop.xlane.xlu0 %49
  %v51 = vsel %vm38, %v25, 0.0
  %52 = vadd.xlane.f32.xlu0 %v51
  %v53 = vpop.xlane.xlu0 %52
  %v54 = vsel %vm38, %v26, 0.0
  %55 = vadd.xlane.f32.xlu0 %v54
  %v56 = vpop.xlane.xlu0 %55
  %v57 = vsel %vm38, %v27, 0.0
  %58 = vadd.xlane.f32.xlu0 %v57
  %v59 = vpop.xlane.xlu0 %58
  %v60 = vsel %vm38, %v28, 0.0
  %61 = vadd.xlane.f32.xlu0 %v60
  %v62 = vpop.xlane.xlu0 %61
  %v63 = vsel %vm38, %v29, 0.0
  %64 = vadd.xlane.f32.xlu0 %v63
  %v65 = vpop.xlane.xlu0 %64
  %v66 = vsel %vm38, %v30, 0.0
  %67 = vadd.xlane.f32.xlu0 %v66
  %v68 = vpop.xlane.xlu0 %67
  %v69 = vsel %vm38, %v31, 0.0
  %70 = vadd.xlane.f32.xlu0 %v69
  %v71 = vpop.xlane.xlu0 %70
  %v72 = vsel %vm38, %v32, 0.0
  %73 = vadd.xlane.f32.xlu0 %v72
  %v74 = vpop.xlane.xlu0 %73
  %v75 = vsel %vm38, %v33, 0.0
  %76 = vadd.xlane.f32.xlu0 %v75
  %v77 = vpop.xlane.xlu0 %76
  %v78 = vsel %vm38, %v34, 0.0
  %79 = vadd.xlane.f32.xlu0 %v78
  %v80 = vpop.xlane.xlu0 %79
  %v81 = vsel %vm38, %v35, 0.0
  %82 = vadd.xlane.f32.xlu0 %v81
  %v83 = vpop.xlane.xlu0 %82
  %v84 = vsel %vm38, %v36, 0.0
  %85 = vadd.xlane.f32.xlu0 %v84
  %v86 = vpop.xlane.xlu0 %85
  %vm87 = vcmask 254976
  %v88 = vsel %vm87, %v37, 0.0
  %89 = vadd.xlane.f32.xlu0 %v88
  %v90 = vpop.xlane.xlu0 %89
  %v91 = vmul.f32 %v21, %v21
  %v92 = vmul.f32 %v22, %v22
  %v93 = vmul.f32 %v23, %v23
  %v94 = vmul.f32 %v24, %v24
  %v95 = vmul.f32 %v25, %v25
  %v96 = vmul.f32 %v26, %v26
  %v97 = vmul.f32 %v27, %v27
  %v98 = vmul.f32 %v28, %v28
  %v99 = vmul.f32 %v29, %v29
  %v100 = vmul.f32 %v30, %v30
  %v101 = vmul.f32 %v31, %v31
  %v102 = vmul.f32 %v32, %v32
  %v103 = vmul.f32 %v33, %v33
  %v104 = vmul.f32 %v34, %v34
  %v105 = vmul.f32 %v35, %v35
  %v106 = vmul.f32 %v36, %v36
  %v107 = vmul.f32 %v37, %v37
  %v108 = vsel %vm38, %v91, 0.0
  %109 = vadd.xlane.f32.xlu0 %v108
  %v110 = vpop.xlane.xlu0 %109
  %v111 = vsel %vm38, %v92, 0.0
  %112 = vadd.xlane.f32.xlu0 %v111
  %v113 = vpop.xlane.xlu0 %112
  %v114 = vsel %vm38, %v93, 0.0
  %115 = vadd.xlane.f32.xlu0 %v114
  %v116 = vpop.xlane.xlu0 %115
  %v117 = vsel %vm38, %v94, 0.0
  %118 = vadd.xlane.f32.xlu0 %v117
  %v119 = vpop.xlane.xlu0 %118
  %v120 = vsel %vm38, %v95, 0.0
  %121 = vadd.xlane.f32.xlu0 %v120
  %v122 = vpop.xlane.xlu0 %121
  %v123 = vsel %vm38, %v96, 0.0
  %124 = vadd.xlane.f32.xlu0 %v123
  %v125 = vpop.xlane.xlu0 %124
  %v126 = vsel %vm38, %v97, 0.0
  %127 = vadd.xlane.f32.xlu0 %v126
  %v128 = vpop.xlane.xlu0 %127
  %v129 = vsel %vm38, %v98, 0.0
  %130 = vadd.xlane.f32.xlu0 %v129
  %v131 = vpop.xlane.xlu0 %130
  %v132 = vsel %vm38, %v99, 0.0
  %133 = vadd.xlane.f32.xlu0 %v132
  %v134 = vpop.xlane.xlu0 %133
  %v135 = vsel %vm38, %v100, 0.0
  %136 = vadd.xlane.f32.xlu0 %v135
  %v137 = vpop.xlane.xlu0 %136
  %v138 = vsel %vm38, %v101, 0.0
  %139 = vadd.xlane.f32.xlu0 %v138
  %v140 = vpop.xlane.xlu0 %139
  %v141 = vsel %vm38, %v102, 0.0
  %142 = vadd.xlane.f32.xlu0 %v141
  %v143 = vpop.xlane.xlu0 %142
  %v144 = vsel %vm38, %v103, 0.0
  %145 = vadd.xlane.f32.xlu0 %v144
  %v146 = vpop.xlane.xlu0 %145
  %v147 = vsel %vm38, %v104, 0.0
  %148 = vadd.xlane.f32.xlu0 %v147
  %v149 = vpop.xlane.xlu0 %148
  %v150 = vsel %vm38, %v105, 0.0
  %151 = vadd.xlane.f32.xlu0 %v150
  %v152 = vpop.xlane.xlu0 %151
  %v153 = vsel %vm38, %v106, 0.0
  %154 = vadd.xlane.f32.xlu0 %v153
  %v155 = vpop.xlane.xlu0 %154
  %v156 = vsel %vm87, %v107, 0.0
  %157 = vadd.xlane.f32.xlu0 %v156
  %v158 = vpop.xlane.xlu0 %157
  %v159 = vmul.f32 %v41, 0.03125
  %v160 = vmul.f32 %v44, 0.03125
  %v161 = vmul.f32 %v47, 0.03125
  %v162 = vmul.f32 %v50, 0.03125
  %v163 = vmul.f32 %v53, 0.03125
  %v164 = vmul.f32 %v56, 0.03125
  %v165 = vmul.f32 %v59, 0.03125
  %v166 = vmul.f32 %v62, 0.03125
  %v167 = vmul.f32 %v65, 0.03125
  %v168 = vmul.f32 %v68, 0.03125
  %v169 = vmul.f32 %v71, 0.03125
  %v170 = vmul.f32 %v74, 0.03125
  %v171 = vmul.f32 %v77, 0.03125
  %v172 = vmul.f32 %v80, 0.03125
  %v173 = vmul.f32 %v83, 0.03125
  %v174 = vmul.f32 %v86, 0.03125
  %v175 = vmul.f32 %v90, 0.03125
  %v176 = vmul.f32 %v110, 0.03125
  %v177 = vmul.f32 %v113, 0.03125
  %v178 = vmul.f32 %v116, 0.03125
  %v179 = vmul.f32 %v119, 0.03125
  %v180 = vmul.f32 %v122, 0.03125
  %v181 = vmul.f32 %v125, 0.03125
  %v182 = vmul.f32 %v128, 0.03125
  %v183 = vmul.f32 %v131, 0.03125
  %v184 = vmul.f32 %v134, 0.03125
  %v185 = vmul.f32 %v137, 0.03125
  %v186 = vmul.f32 %v140, 0.03125
  %v187 = vmul.f32 %v143, 0.03125
  %v188 = vmul.f32 %v146, 0.03125
  %v189 = vmul.f32 %v149, 0.03125
  %v190 = vmul.f32 %v152, 0.03125
  %v191 = vmul.f32 %v155, 0.03125
  %v192 = vmul.f32 %v158, 0.03125
  %v193 = vmul.f32 %v159, %v159
  %v194 = vmul.f32 %v160, %v160
  %v195 = vmul.f32 %v161, %v161
  %v196 = vmul.f32 %v162, %v162
  %v197 = vmul.f32 %v163, %v163
  %v198 = vmul.f32 %v164, %v164
  %v199 = vmul.f32 %v165, %v165
  %v200 = vmul.f32 %v166, %v166
  %v201 = vmul.f32 %v167, %v167
  %v202 = vmul.f32 %v168, %v168
  %v203 = vmul.f32 %v169, %v169
  %v204 = vmul.f32 %v170, %v170
  %v205 = vmul.f32 %v171, %v171
  %v206 = vmul.f32 %v172, %v172
  %v207 = vmul.f32 %v173, %v173
  %v208 = vmul.f32 %v174, %v174
  %v209 = vmul.f32 %v175, %v175
  %v210 = vsub.f32 %v176, %v193
  %v211 = vsub.f32 %v177, %v194
  %v212 = vsub.f32 %v178, %v195
  %v213 = vsub.f32 %v179, %v196
  %v214 = vsub.f32 %v180, %v197
  %v215 = vsub.f32 %v181, %v198
  %v216 = vsub.f32 %v182, %v199
  %v217 = vsub.f32 %v183, %v200
  %v218 = vsub.f32 %v184, %v201
  %v219 = vsub.f32 %v185, %v202
  %v220 = vsub.f32 %v186, %v203
  %v221 = vsub.f32 %v187, %v204
  %v222 = vsub.f32 %v188, %v205
  %v223 = vsub.f32 %v189, %v206
  %v224 = vsub.f32 %v190, %v207
  %v225 = vsub.f32 %v191, %v208
  %v226 = vsub.f32 %v192, %v209
  %v227 = vsub.f32 %v21, %v159
  %v228 = vsub.f32 %v22, %v160
  %v229 = vsub.f32 %v23, %v161
  %v230 = vsub.f32 %v24, %v162
  %v231 = vsub.f32 %v25, %v163
  %v232 = vsub.f32 %v26, %v164
  %v233 = vsub.f32 %v27, %v165
  %v234 = vsub.f32 %v28, %v166
  %v235 = vsub.f32 %v29, %v167
  %v236 = vsub.f32 %v30, %v168
  %v237 = vsub.f32 %v31, %v169
  %v238 = vsub.f32 %v32, %v170
  %v239 = vsub.f32 %v33, %v171
  %v240 = vsub.f32 %v34, %v172
  %v241 = vsub.f32 %v35, %v173
  %v242 = vsub.f32 %v36, %v174
  %v243 = vsub.f32 %v37, %v175
  %v244 = vadd.f32 %v210, 1e-05
  %v245 = vadd.f32 %v211, 1e-05
  %v246 = vadd.f32 %v212, 1e-05
  %v247 = vadd.f32 %v213, 1e-05
  %v248 = vadd.f32 %v214, 1e-05
  %v249 = vadd.f32 %v215, 1e-05
  %v250 = vadd.f32 %v216, 1e-05
  %v251 = vadd.f32 %v217, 1e-05
  %v252 = vadd.f32 %v218, 1e-05
  %v253 = vadd.f32 %v219, 1e-05
  %v254 = vadd.f32 %v220, 1e-05
  %v255 = vadd.f32 %v221, 1e-05
  %v256 = vadd.f32 %v222, 1e-05
  %v257 = vadd.f32 %v223, 1e-05
  %v258 = vadd.f32 %v224, 1e-05
  %v259 = vadd.f32 %v225, 1e-05
  %v260 = vadd.f32 %v226, 1e-05
  %v261 = vrsqrt.pop %v244
  %v262 = vrsqrt.pop %v245
  %v263 = vrsqrt.pop %v246
  %v264 = vrsqrt.pop %v247
  %v265 = vrsqrt.pop %v248
  %v266 = vrsqrt.pop %v249
  %v267 = vrsqrt.pop %v250
  %v268 = vrsqrt.pop %v251
  %v269 = vrsqrt.pop %v252
  %v270 = vrsqrt.pop %v253
  %v271 = vrsqrt.pop %v254
  %v272 = vrsqrt.pop %v255
  %v273 = vrsqrt.pop %v256
  %v274 = vrsqrt.pop %v257
  %v275 = vrsqrt.pop %v258
  %v276 = vrsqrt.pop %v259
  %v277 = vrsqrt.pop %v260
  %v278 = vmul.f32 %v227, %v261
  %v279 = vmul.f32 %v228, %v262
  %v280 = vmul.f32 %v229, %v263
  %v281 = vmul.f32 %v230, %v264
  %v282 = vmul.f32 %v231, %v265
  %v283 = vmul.f32 %v232, %v266
  %v284 = vmul.f32 %v233, %v267
  %v285 = vmul.f32 %v234, %v268
  %v286 = vmul.f32 %v235, %v269
  %v287 = vmul.f32 %v236, %v270
  %v288 = vmul.f32 %v237, %v271
  %v289 = vmul.f32 %v238, %v272
  %v290 = vmul.f32 %v239, %v273
  %v291 = vmul.f32 %v240, %v274
  %v292 = vmul.f32 %v241, %v275
  %v293 = vmul.f32 %v242, %v276
  %v294 = vmul.f32 %v243, %v277
  %v295 = vld [vmem:[%s1] sm:$0x1]
  %v297 = vlaneseq
  %v298 = vshrl.u32 %v297, 7
  %v299 = vsub.s32 0, %v298
  %v300 = vrot.slane %v295, %v299
  %v302 = vmul.f32 %v278, %v300
  %v303 = vmul.f32 %v279, %v300
  %v304 = vmul.f32 %v280, %v300
  %v305 = vmul.f32 %v281, %v300
  %v306 = vmul.f32 %v282, %v300
  %v307 = vmul.f32 %v283, %v300
  %v308 = vmul.f32 %v284, %v300
  %v309 = vmul.f32 %v285, %v300
  %v310 = vmul.f32 %v286, %v300
  %v311 = vmul.f32 %v287, %v300
  %v312 = vmul.f32 %v288, %v300
  %v313 = vmul.f32 %v289, %v300
  %v314 = vmul.f32 %v290, %v300
  %v315 = vmul.f32 %v291, %v300
  %v316 = vmul.f32 %v292, %v300
  %v317 = vmul.f32 %v293, %v300
  %v318 = vmul.f32 %v294, %v300
  %v319 = vld [vmem:[%s2] sm:$0x1]
  %v321 = vlaneseq
  %v322 = vshrl.u32 %v321, 7
  %v323 = vsub.s32 0, %v322
  %v324 = vrot.slane %v319, %v323
  %v326 = vadd.f32 %v302, %v324
  %v327 = vadd.f32 %v303, %v324
  %v328 = vadd.f32 %v304, %v324
  %v329 = vadd.f32 %v305, %v324
  %v330 = vadd.f32 %v306, %v324
  %v331 = vadd.f32 %v307, %v324
  %v332 = vadd.f32 %v308, %v324
  %v333 = vadd.f32 %v309, %v324
  %v334 = vadd.f32 %v310, %v324
  %v335 = vadd.f32 %v311, %v324
  %v336 = vadd.f32 %v312, %v324
  %v337 = vadd.f32 %v313, %v324
  %v338 = vadd.f32 %v314, %v324
  %v339 = vadd.f32 %v315, %v324
  %v340 = vadd.f32 %v316, %v324
  %v341 = vadd.f32 %v317, %v324
  %v342 = vadd.f32 %v318, %v324
  %v343 = vpack.c.bf16 %v327, %v326
  %v344 = vpack.c.bf16 %v329, %v328
  %v345 = vpack.c.bf16 %v331, %v330
  %v346 = vpack.c.bf16 %v333, %v332
  %v347 = vpack.c.bf16 %v335, %v334
  %v348 = vpack.c.bf16 %v337, %v336
  %v349 = vpack.c.bf16 %v339, %v338
  %v350 = vpack.c.bf16 %v341, %v340
  %v351 = vpack.c.bf16 %v342, %v342
  %v352 = vld [vmem:[%s3] sm:$0xf]
  %v353 = vld [vmem:[%s3 + $0x4] sm:$0xf]
  %v354 = vld [vmem:[%s3 + $0x8] sm:$0xf]
  %v355 = vld [vmem:[%s3 + $0xc] sm:$0xf]
  %v356 = vld [vmem:[%s4] sm:$0x1]
  %v358 = vlaneseq
  %v359 = vshrl.u32 %v358, 7
  %v360 = vsub.s32 0, %v359
  %v361 = vrot.slane %v356, %v360
  %v367 = vunpack.c.l.b16 %v352
  %v368 = vunpack.c.l.b16 %v353
  %v369 = vunpack.c.l.b16 %v354
  %v370 = vunpack.c.l.b16 %v355
  %v371 = vpack.c.b16 %v368, %v367
  %v372 = vpack.c.b16 %v370, %v369
  %v376 = vsel %vm38, %v343, 0
  %v379 = vsel %vm38, %v344, 0
  %v382 = vsel %vm38, %v345, 0
  %v385 = vsel %vm38, %v346, 0
  %v388 = vsel %vm38, %v347, 0
  %v391 = vsel %vm38, %v348, 0
  %v394 = vsel %vm38, %v349, 0
  %v397 = vsel %vm38, %v350, 0
  %v400 = vsel %vm38, %v351, 0
  %402 = vmatprep.subr.bf16.mxu0 0
  %403 = vmatpush1.bf16.msra.mxu0 %v371
  %404 = vmatprep.subr.bf16.mxu0 0
  %405 = vmatpush1.bf16.msra.mxu0 %v372
  %406 = vmatprep.subr.bf16.mxu0 0
  %407 = vmatpush1.bf16.msra.mxu0 0
  %408 = vmatprep.subr.bf16.mxu0 0
  %409 = vmatpush1.bf16.msra.mxu0 0
  %410 = vmatprep.subr.bf16.mxu0 0
  %411 = vmatpush1.bf16.msra.mxu0 0
  %412 = vmatprep.subr.bf16.mxu0 0
  %413 = vmatpush1.bf16.msra.mxu0 0
  %414 = vmatprep.subr.bf16.mxu0 0
  %415 = vmatpush1.bf16.msra.mxu0 0
  %416 = vmatprep.subr.bf16.mxu0 0
  %417 = vmatpush1.bf16.msra.mxu0 0
  %418 = vmatprep.subr.bf16.mxu0 0
  %419 = vmatpush1.bf16.msra.mxu0 0
  %420 = vmatprep.subr.bf16.mxu0 0
  %421 = vmatpush1.bf16.msra.mxu0 0
  %422 = vmatprep.subr.bf16.mxu0 0
  %423 = vmatpush1.bf16.msra.mxu0 0
  %424 = vmatprep.subr.bf16.mxu0 0
  %425 = vmatpush1.bf16.msra.mxu0 0
  %426 = vmatprep.subr.bf16.mxu0 0
  %427 = vmatpush1.bf16.msra.mxu0 0
  %428 = vmatprep.subr.bf16.mxu0 0
  %429 = vmatpush1.bf16.msra.mxu0 0
  %430 = vmatprep.subr.bf16.mxu0 0
  %431 = vmatpush1.bf16.msra.mxu0 0
  %432 = vmatprep.subr.bf16.mxu0 0
  %433 = vmatpush1.bf16.msra.mxu0 0
  %434 = vmatprep.mubr.bf16.mxu0 0
  %435 = vmatmul.mubr.bf16.gmra.mrb[0].mxu0 %v376
  %v436 = vpop.f32.mrb[0].mxu0
  %v437 = vadd.f32 %v361, %v436
  %v438 = vpop.f32.mrb[0].mxu0
  %v439 = vpop.f32.mrb[0].mxu0
  %v440 = vadd.f32 %v361, %v439
  %v441 = vpop.f32.mrb[0].mxu0
  %442 = vmatprep.mubr.bf16.mxu0 0
  %443 = vmatmul.mubr.bf16.gmra.mrb[0].mxu0 %v379
  %v444 = vpop.f32.mrb[0].mxu0
  %v445 = vadd.f32 %v361, %v444
  %v446 = vpop.f32.mrb[0].mxu0
  %v447 = vpop.f32.mrb[0].mxu0
  %v448 = vadd.f32 %v361, %v447
  %v449 = vpop.f32.mrb[0].mxu0
  %450 = vmatprep.mubr.bf16.mxu0 0
  %451 = vmatmul.mubr.bf16.gmra.mrb[0].mxu0 %v382
  %v452 = vpop.f32.mrb[0].mxu0
  %v453 = vadd.f32 %v361, %v452
  %v454 = vpop.f32.mrb[0].mxu0
  %v455 = vpop.f32.mrb[0].mxu0
  %v456 = vadd.f32 %v361, %v455
  %v457 = vpop.f32.mrb[0].mxu0
  %458 = vmatprep.mubr.bf16.mxu0 0
  %459 = vmatmul.mubr.bf16.gmra.mrb[0].mxu0 %v385
  %v460 = vpop.f32.mrb[0].mxu0
  %v461 = vadd.f32 %v361, %v460
  %v462 = vpop.f32.mrb[0].mxu0
  %v463 = vpop.f32.mrb[0].mxu0
  %v464 = vadd.f32 %v361, %v463
  %v465 = vpop.f32.mrb[0].mxu0
  %466 = vmatprep.mubr.bf16.mxu0 0
  %467 = vmatmul.mubr.bf16.gmra.mrb[0].mxu0 %v388
  %v468 = vpop.f32.mrb[0].mxu0
  %v469 = vadd.f32 %v361, %v468
  %v470 = vpop.f32.mrb[0].mxu0
  %v471 = vpop.f32.mrb[0].mxu0
  %v472 = vadd.f32 %v361, %v471
  %v473 = vpop.f32.mrb[0].mxu0
  %474 = vmatprep.mubr.bf16.mxu0 0
  %475 = vmatmul.mubr.bf16.gmra.mrb[0].mxu0 %v391
  %v476 = vpop.f32.mrb[0].mxu0
  %v477 = vadd.f32 %v361, %v476
  %v478 = vpop.f32.mrb[0].mxu0
  %v479 = vpop.f32.mrb[0].mxu0
  %v480 = vadd.f32 %v361, %v479
  %v481 = vpop.f32.mrb[0].mxu0
  %482 = vmatprep.mubr.bf16.mxu0 0
  %483 = vmatmul.mubr.bf16.gmra.mrb[0].mxu0 %v394
  %v484 = vpop.f32.mrb[0].mxu0
  %v485 = vadd.f32 %v361, %v484
  %v486 = vpop.f32.mrb[0].mxu0
  %v487 = vpop.f32.mrb[0].mxu0
  %v488 = vadd.f32 %v361, %v487
  %v489 = vpop.f32.mrb[0].mxu0
  %490 = vmatprep.mubr.bf16.mxu0 0
  %491 = vmatmul.mubr.bf16.gmra.mrb[0].mxu0 %v397
  %v492 = vpop.f32.mrb[0].mxu0
  %v493 = vadd.f32 %v361, %v492
  %v494 = vpop.f32.mrb[0].mxu0
  %v495 = vpop.f32.mrb[0].mxu0
  %v496 = vadd.f32 %v361, %v495
  %v497 = vpop.f32.mrb[0].mxu0
  %498 = vmatprep.mubr.bf16.mxu0 0
  %499 = vmatmul.mubr.bf16.gmra.mrb[0].mxu0 %v400
  %v500 = vpop.f32.mrb[0].mxu0
  %v501 = vadd.f32 %v361, %v500
  %v502 = vpop.f32.mrb[0].mxu0
  %v503 = vpop.f32.mrb[0].mxu0
  %v504 = vpop.f32.mrb[0].mxu0
  %505 = vdwg.mxu0
  %v506 = vmul.f32 %v437, 0.5
  %v507 = vmul.f32 %v440, 0.5
  %v508 = vmul.f32 %v445, 0.5
  %v509 = vmul.f32 %v448, 0.5
  %v510 = vmul.f32 %v453, 0.5
  %v511 = vmul.f32 %v456, 0.5
  %v512 = vmul.f32 %v461, 0.5
  %v513 = vmul.f32 %v464, 0.5
  %v514 = vmul.f32 %v469, 0.5
  %v515 = vmul.f32 %v472, 0.5
  %v516 = vmul.f32 %v477, 0.5
  %v517 = vmul.f32 %v480, 0.5
  %v518 = vmul.f32 %v485, 0.5
  %v519 = vmul.f32 %v488, 0.5
  %v520 = vmul.f32 %v493, 0.5
  %v521 = vmul.f32 %v496, 0.5
  %v522 = vmul.f32 %v501, 0.5
  %v523 = vmul.f32 %v437, 0.70710677
  %v524 = vmul.f32 %v440, 0.70710677
  %v525 = vmul.f32 %v445, 0.70710677
  %v526 = vmul.f32 %v448, 0.70710677
  %v527 = vmul.f32 %v453, 0.70710677
  %v528 = vmul.f32 %v456, 0.70710677
  %v529 = vmul.f32 %v461, 0.70710677
  %v530 = vmul.f32 %v464, 0.70710677
  %v531 = vmul.f32 %v469, 0.70710677
  %v532 = vmul.f32 %v472, 0.70710677
  %v533 = vmul.f32 %v477, 0.70710677
  %v534 = vmul.f32 %v480, 0.70710677
  %v535 = vmul.f32 %v485, 0.70710677
  %v536 = vmul.f32 %v488, 0.70710677
  %v537 = vmul.f32 %v493, 0.70710677
  %v538 = vmul.f32 %v496, 0.70710677
  %v539 = vmul.f32 %v501, 0.70710677
  %v540 = vand.u32 2147483647, %v523
  %v541 = vand.u32 2147483647, %v524
  %v542 = vand.u32 2147483647, %v525
  %v543 = vand.u32 2147483647, %v526
  %v544 = vand.u32 2147483647, %v527
  %v545 = vand.u32 2147483647, %v528
  %v546 = vand.u32 2147483647, %v529
  %v547 = vand.u32 2147483647, %v530
  %v548 = vand.u32 2147483647, %v531
  %v549 = vand.u32 2147483647, %v532
  %v550 = vand.u32 2147483647, %v533
  %v551 = vand.u32 2147483647, %v534
  %v552 = vand.u32 2147483647, %v535
  %v553 = vand.u32 2147483647, %v536
  %v554 = vand.u32 2147483647, %v537
  %v555 = vand.u32 2147483647, %v538
  %v556 = vand.u32 2147483647, %v539
  %v557 = vmul.f32 %v540, 0.3275911
  %v558 = vmul.f32 %v541, 0.3275911
  %v559 = vmul.f32 %v542, 0.3275911
  %v560 = vmul.f32 %v543, 0.3275911
  %v561 = vmul.f32 %v544, 0.3275911
  %v562 = vmul.f32 %v545, 0.3275911
  %v563 = vmul.f32 %v546, 0.3275911
  %v564 = vmul.f32 %v547, 0.3275911
  %v565 = vmul.f32 %v548, 0.3275911
  %v566 = vmul.f32 %v549, 0.3275911
  %v567 = vmul.f32 %v550, 0.3275911
  %v568 = vmul.f32 %v551, 0.3275911
  %v569 = vmul.f32 %v552, 0.3275911
  %v570 = vmul.f32 %v553, 0.3275911
  %v571 = vmul.f32 %v554, 0.3275911
  %v572 = vmul.f32 %v555, 0.3275911
  %v573 = vmul.f32 %v556, 0.3275911
  %v574 = vadd.f32 %v557, 1.0
  %v575 = vadd.f32 %v558, 1.0
  %v576 = vadd.f32 %v559, 1.0
  %v577 = vadd.f32 %v560, 1.0
  %v578 = vadd.f32 %v561, 1.0
  %v579 = vadd.f32 %v562, 1.0
  %v580 = vadd.f32 %v563, 1.0
  %v581 = vadd.f32 %v564, 1.0
  %v582 = vadd.f32 %v565, 1.0
  %v583 = vadd.f32 %v566, 1.0
  %v584 = vadd.f32 %v567, 1.0
  %v585 = vadd.f32 %v568, 1.0
  %v586 = vadd.f32 %v569, 1.0
  %v587 = vadd.f32 %v570, 1.0
  %v588 = vadd.f32 %v571, 1.0
  %v589 = vadd.f32 %v572, 1.0
  %v590 = vadd.f32 %v573, 1.0
  %v591 = vrcp.pop %v574
  %v592 = vmul.f32 1.0, %v591
  %v593 = vrcp.pop %v575
  %v594 = vmul.f32 1.0, %v593
  %v595 = vrcp.pop %v576
  %v596 = vmul.f32 1.0, %v595
  %v597 = vrcp.pop %v577
  %v598 = vmul.f32 1.0, %v597
  %v599 = vrcp.pop %v578
  %v600 = vmul.f32 1.0, %v599
  %v601 = vrcp.pop %v579
  %v602 = vmul.f32 1.0, %v601
  %v603 = vrcp.pop %v580
  %v604 = vmul.f32 1.0, %v603
  %v605 = vrcp.pop %v581
  %v606 = vmul.f32 1.0, %v605
  %v607 = vrcp.pop %v582
  %v608 = vmul.f32 1.0, %v607
  %v609 = vrcp.pop %v583
  %v610 = vmul.f32 1.0, %v609
  %v611 = vrcp.pop %v584
  %v612 = vmul.f32 1.0, %v611
  %v613 = vrcp.pop %v585
  %v614 = vmul.f32 1.0, %v613
  %v615 = vrcp.pop %v586
  %v616 = vmul.f32 1.0, %v615
  %v617 = vrcp.pop %v587
  %v618 = vmul.f32 1.0, %v617
  %v619 = vrcp.pop %v588
  %v620 = vmul.f32 1.0, %v619
  %v621 = vrcp.pop %v589
  %v622 = vmul.f32 1.0, %v621
  %v623 = vrcp.pop %v590
  %v624 = vmul.f32 1.0, %v623
  %v625 = vmul.f32 %v592, 1.0614054
  %v626 = vmul.f32 %v594, 1.0614054
  %v627 = vmul.f32 %v596, 1.0614054
  %v628 = vmul.f32 %v598, 1.0614054
  %v629 = vmul.f32 %v600, 1.0614054
  %v630 = vmul.f32 %v602, 1.0614054
  %v631 = vmul.f32 %v604, 1.0614054
  %v632 = vmul.f32 %v606, 1.0614054
  %v633 = vmul.f32 %v608, 1.0614054
  %v634 = vmul.f32 %v610, 1.0614054
  %v635 = vmul.f32 %v612, 1.0614054
  %v636 = vmul.f32 %v614, 1.0614054
  %v637 = vmul.f32 %v616, 1.0614054
  %v638 = vmul.f32 %v618, 1.0614054
  %v639 = vmul.f32 %v620, 1.0614054
  %v640 = vmul.f32 %v622, 1.0614054
  %v641 = vmul.f32 %v624, 1.0614054
  %v642 = vadd.f32 %v625, -1.4531521
  %v643 = vadd.f32 %v626, -1.4531521
  %v644 = vadd.f32 %v627, -1.4531521
  %v645 = vadd.f32 %v628, -1.4531521
  %v646 = vadd.f32 %v629, -1.4531521
  %v647 = vadd.f32 %v630, -1.4531521
  %v648 = vadd.f32 %v631, -1.4531521
  %v649 = vadd.f32 %v632, -1.4531521
  %v650 = vadd.f32 %v633, -1.4531521
  %v651 = vadd.f32 %v634, -1.4531521
  %v652 = vadd.f32 %v635, -1.4531521
  %v653 = vadd.f32 %v636, -1.4531521
  %v654 = vadd.f32 %v637, -1.4531521
  %v655 = vadd.f32 %v638, -1.4531521
  %v656 = vadd.f32 %v639, -1.4531521
  %v657 = vadd.f32 %v640, -1.4531521
  %v658 = vadd.f32 %v641, -1.4531521
  %v659 = vmul.f32 %v642, %v592
  %v660 = vmul.f32 %v643, %v594
  %v661 = vmul.f32 %v644, %v596
  %v662 = vmul.f32 %v645, %v598
  %v663 = vmul.f32 %v646, %v600
  %v664 = vmul.f32 %v647, %v602
  %v665 = vmul.f32 %v648, %v604
  %v666 = vmul.f32 %v649, %v606
  %v667 = vmul.f32 %v650, %v608
  %v668 = vmul.f32 %v651, %v610
  %v669 = vmul.f32 %v652, %v612
  %v670 = vmul.f32 %v653, %v614
  %v671 = vmul.f32 %v654, %v616
  %v672 = vmul.f32 %v655, %v618
  %v673 = vmul.f32 %v656, %v620
  %v674 = vmul.f32 %v657, %v622
  %v675 = vmul.f32 %v658, %v624
  %v676 = vadd.f32 %v659, 1.4214138
  %v677 = vadd.f32 %v660, 1.4214138
  %v678 = vadd.f32 %v661, 1.4214138
  %v679 = vadd.f32 %v662, 1.4214138
  %v680 = vadd.f32 %v663, 1.4214138
  %v681 = vadd.f32 %v664, 1.4214138
  %v682 = vadd.f32 %v665, 1.4214138
  %v683 = vadd.f32 %v666, 1.4214138
  %v684 = vadd.f32 %v667, 1.4214138
  %v685 = vadd.f32 %v668, 1.4214138
  %v686 = vadd.f32 %v669, 1.4214138
  %v687 = vadd.f32 %v670, 1.4214138
  %v688 = vadd.f32 %v671, 1.4214138
  %v689 = vadd.f32 %v672, 1.4214138
  %v690 = vadd.f32 %v673, 1.4214138
  %v691 = vadd.f32 %v674, 1.4214138
  %v692 = vadd.f32 %v675, 1.4214138
  %v693 = vmul.f32 %v676, %v592
  %v694 = vmul.f32 %v677, %v594
  %v695 = vmul.f32 %v678, %v596
  %v696 = vmul.f32 %v679, %v598
  %v697 = vmul.f32 %v680, %v600
  %v698 = vmul.f32 %v681, %v602
  %v699 = vmul.f32 %v682, %v604
  %v700 = vmul.f32 %v683, %v606
  %v701 = vmul.f32 %v684, %v608
  %v702 = vmul.f32 %v685, %v610
  %v703 = vmul.f32 %v686, %v612
  %v704 = vmul.f32 %v687, %v614
  %v705 = vmul.f32 %v688, %v616
  %v706 = vmul.f32 %v689, %v618
  %v707 = vmul.f32 %v690, %v620
  %v708 = vmul.f32 %v691, %v622
  %v709 = vmul.f32 %v692, %v624
  %v710 = vadd.f32 %v693, -0.28449672
  %v711 = vadd.f32 %v694, -0.28449672
  %v712 = vadd.f32 %v695, -0.28449672
  %v713 = vadd.f32 %v696, -0.28449672
  %v714 = vadd.f32 %v697, -0.28449672
  %v715 = vadd.f32 %v698, -0.28449672
  %v716 = vadd.f32 %v699, -0.28449672
  %v717 = vadd.f32 %v700, -0.28449672
  %v718 = vadd.f32 %v701, -0.28449672
  %v719 = vadd.f32 %v702, -0.28449672
  %v720 = vadd.f32 %v703, -0.28449672
  %v721 = vadd.f32 %v704, -0.28449672
  %v722 = vadd.f32 %v705, -0.28449672
  %v723 = vadd.f32 %v706, -0.28449672
  %v724 = vadd.f32 %v707, -0.28449672
  %v725 = vadd.f32 %v708, -0.28449672
  %v726 = vadd.f32 %v709, -0.28449672
  %v727 = vmul.f32 %v710, %v592
  %v728 = vmul.f32 %v711, %v594
  %v729 = vmul.f32 %v712, %v596
  %v730 = vmul.f32 %v713, %v598
  %v731 = vmul.f32 %v714, %v600
  %v732 = vmul.f32 %v715, %v602
  %v733 = vmul.f32 %v716, %v604
  %v734 = vmul.f32 %v717, %v606
  %v735 = vmul.f32 %v718, %v608
  %v736 = vmul.f32 %v719, %v610
  %v737 = vmul.f32 %v720, %v612
  %v738 = vmul.f32 %v721, %v614
  %v739 = vmul.f32 %v722, %v616
  %v740 = vmul.f32 %v723, %v618
  %v741 = vmul.f32 %v724, %v620
  %v742 = vmul.f32 %v725, %v622
  %v743 = vmul.f32 %v726, %v624
  %v744 = vadd.f32 %v727, 0.2548296
  %v745 = vadd.f32 %v728, 0.2548296
  %v746 = vadd.f32 %v729, 0.2548296
  %v747 = vadd.f32 %v730, 0.2548296
  %v748 = vadd.f32 %v731, 0.2548296
  %v749 = vadd.f32 %v732, 0.2548296
  %v750 = vadd.f32 %v733, 0.2548296
  %v751 = vadd.f32 %v734, 0.2548296
  %v752 = vadd.f32 %v735, 0.2548296
  %v753 = vadd.f32 %v736, 0.2548296
  %v754 = vadd.f32 %v737, 0.2548296
  %v755 = vadd.f32 %v738, 0.2548296
  %v756 = vadd.f32 %v739, 0.2548296
  %v757 = vadd.f32 %v740, 0.2548296
  %v758 = vadd.f32 %v741, 0.2548296
  %v759 = vadd.f32 %v742, 0.2548296
  %v760 = vadd.f32 %v743, 0.2548296
  %v761 = vmul.f32 %v744, %v592
  %v762 = vmul.f32 %v745, %v594
  %v763 = vmul.f32 %v746, %v596
  %v764 = vmul.f32 %v747, %v598
  %v765 = vmul.f32 %v748, %v600
  %v766 = vmul.f32 %v749, %v602
  %v767 = vmul.f32 %v750, %v604
  %v768 = vmul.f32 %v751, %v606
  %v769 = vmul.f32 %v752, %v608
  %v770 = vmul.f32 %v753, %v610
  %v771 = vmul.f32 %v754, %v612
  %v772 = vmul.f32 %v755, %v614
  %v773 = vmul.f32 %v756, %v616
  %v774 = vmul.f32 %v757, %v618
  %v775 = vmul.f32 %v758, %v620
  %v776 = vmul.f32 %v759, %v622
  %v777 = vmul.f32 %v760, %v624
  %v778 = vsub.f32 0.0, %v540
  %v779 = vsub.f32 0.0, %v541
  %v780 = vsub.f32 0.0, %v542
  %v781 = vsub.f32 0.0, %v543
  %v782 = vsub.f32 0.0, %v544
  %v783 = vsub.f32 0.0, %v545
  %v784 = vsub.f32 0.0, %v546
  %v785 = vsub.f32 0.0, %v547
  %v786 = vsub.f32 0.0, %v548
  %v787 = vsub.f32 0.0, %v549
  %v788 = vsub.f32 0.0, %v550
  %v789 = vsub.f32 0.0, %v551
  %v790 = vsub.f32 0.0, %v552
  %v791 = vsub.f32 0.0, %v553
  %v792 = vsub.f32 0.0, %v554
  %v793 = vsub.f32 0.0, %v555
  %v794 = vsub.f32 0.0, %v556
  %v795 = vmul.f32 %v778, %v540
  %v796 = vmul.f32 %v779, %v541
  %v797 = vmul.f32 %v780, %v542
  %v798 = vmul.f32 %v781, %v543
  %v799 = vmul.f32 %v782, %v544
  %v800 = vmul.f32 %v783, %v545
  %v801 = vmul.f32 %v784, %v546
  %v802 = vmul.f32 %v785, %v547
  %v803 = vmul.f32 %v786, %v548
  %v804 = vmul.f32 %v787, %v549
  %v805 = vmul.f32 %v788, %v550
  %v806 = vmul.f32 %v789, %v551
  %v807 = vmul.f32 %v790, %v552
  %v808 = vmul.f32 %v791, %v553
  %v809 = vmul.f32 %v792, %v554
  %v810 = vmul.f32 %v793, %v555
  %v811 = vmul.f32 %v794, %v556
  %v812 = vmul.f32 %v795, 1.442695
  %v813 = vpow.pop %v812
  %v814 = vmul.f32 %v796, 1.442695
  %v815 = vpow.pop %v814
  %v816 = vmul.f32 %v797, 1.442695
  %v817 = vpow.pop %v816
  %v818 = vmul.f32 %v798, 1.442695
  %v819 = vpow.pop %v818
  %v820 = vmul.f32 %v799, 1.442695
  %v821 = vpow.pop %v820
  %v822 = vmul.f32 %v800, 1.442695
  %v823 = vpow.pop %v822
  %v824 = vmul.f32 %v801, 1.442695
  %v825 = vpow.pop %v824
  %v826 = vmul.f32 %v802, 1.442695
  %v827 = vpow.pop %v826
  %v828 = vmul.f32 %v803, 1.442695
  %v829 = vpow.pop %v828
  %v830 = vmul.f32 %v804, 1.442695
  %v831 = vpow.pop %v830
  %v832 = vmul.f32 %v805, 1.442695
  %v833 = vpow.pop %v832
  %v834 = vmul.f32 %v806, 1.442695
  %v835 = vpow.pop %v834
  %v836 = vmul.f32 %v807, 1.442695
  %v837 = vpow.pop %v836
  %v838 = vmul.f32 %v808, 1.442695
  %v839 = vpow.pop %v838
  %v840 = vmul.f32 %v809, 1.442695
  %v841 = vpow.pop %v840
  %v842 = vmul.f32 %v810, 1.442695
  %v843 = vpow.pop %v842
  %v844 = vmul.f32 %v811, 1.442695
  %v845 = vpow.pop %v844
  %v846 = vmul.f32 %v761, %v813
  %v847 = vmul.f32 %v762, %v815
  %v848 = vmul.f32 %v763, %v817
  %v849 = vmul.f32 %v764, %v819
  %v850 = vmul.f32 %v765, %v821
  %v851 = vmul.f32 %v766, %v823
  %v852 = vmul.f32 %v767, %v825
  %v853 = vmul.f32 %v768, %v827
  %v854 = vmul.f32 %v769, %v829
  %v855 = vmul.f32 %v770, %v831
  %v856 = vmul.f32 %v771, %v833
  %v857 = vmul.f32 %v772, %v835
  %v858 = vmul.f32 %v773, %v837
  %v859 = vmul.f32 %v774, %v839
  %v860 = vmul.f32 %v775, %v841
  %v861 = vmul.f32 %v776, %v843
  %v862 = vmul.f32 %v777, %v845
  %v863 = vsub.f32 1.0, %v846
  %v864 = vsub.f32 1.0, %v847
  %v865 = vsub.f32 1.0, %v848
  %v866 = vsub.f32 1.0, %v849
  %v867 = vsub.f32 1.0, %v850
  %v868 = vsub.f32 1.0, %v851
  %v869 = vsub.f32 1.0, %v852
  %v870 = vsub.f32 1.0, %v853
  %v871 = vsub.f32 1.0, %v854
  %v872 = vsub.f32 1.0, %v855
  %v873 = vsub.f32 1.0, %v856
  %v874 = vsub.f32 1.0, %v857
  %v875 = vsub.f32 1.0, %v858
  %v876 = vsub.f32 1.0, %v859
  %v877 = vsub.f32 1.0, %v860
  %v878 = vsub.f32 1.0, %v861
  %v879 = vsub.f32 1.0, %v862
  %vm880 = vcmp.lt.f32.partialorder %v523, 0.0
  %vm881 = vcmp.lt.f32.partialorder %v524, 0.0
  %vm882 = vcmp.lt.f32.partialorder %v525, 0.0
  %vm883 = vcmp.lt.f32.partialorder %v526, 0.0
  %vm884 = vcmp.lt.f32.partialorder %v527, 0.0
  %vm885 = vcmp.lt.f32.partialorder %v528, 0.0
  %vm886 = vcmp.lt.f32.partialorder %v529, 0.0
  %vm887 = vcmp.lt.f32.partialorder %v530, 0.0
  %vm888 = vcmp.lt.f32.partialorder %v531, 0.0
  %vm889 = vcmp.lt.f32.partialorder %v532, 0.0
  %vm890 = vcmp.lt.f32.partialorder %v533, 0.0
  %vm891 = vcmp.lt.f32.partialorder %v534, 0.0
  %vm892 = vcmp.lt.f32.partialorder %v535, 0.0
  %vm893 = vcmp.lt.f32.partialorder %v536, 0.0
  %vm894 = vcmp.lt.f32.partialorder %v537, 0.0
  %vm895 = vcmp.lt.f32.partialorder %v538, 0.0
  %vm896 = vcmp.lt.f32.partialorder %v539, 0.0
  %v897 = vsub.f32 0.0, %v863
  %v898 = vsub.f32 0.0, %v864
  %v899 = vsub.f32 0.0, %v865
  %v900 = vsub.f32 0.0, %v866
  %v901 = vsub.f32 0.0, %v867
  %v902 = vsub.f32 0.0, %v868
  %v903 = vsub.f32 0.0, %v869
  %v904 = vsub.f32 0.0, %v870
  %v905 = vsub.f32 0.0, %v871
  %v906 = vsub.f32 0.0, %v872
  %v907 = vsub.f32 0.0, %v873
  %v908 = vsub.f32 0.0, %v874
  %v909 = vsub.f32 0.0, %v875
  %v910 = vsub.f32 0.0, %v876
  %v911 = vsub.f32 0.0, %v877
  %v912 = vsub.f32 0.0, %v878
  %v913 = vsub.f32 0.0, %v879
  %v914 = vsel %vm880, %v897, %v863
  %v915 = vsel %vm881, %v898, %v864
  %v916 = vsel %vm882, %v899, %v865
  %v917 = vsel %vm883, %v900, %v866
  %v918 = vsel %vm884, %v901, %v867
  %v919 = vsel %vm885, %v902, %v868
  %v920 = vsel %vm886, %v903, %v869
  %v921 = vsel %vm887, %v904, %v870
  %v922 = vsel %vm888, %v905, %v871
  %v923 = vsel %vm889, %v906, %v872
  %v924 = vsel %vm890, %v907, %v873
  %v925 = vsel %vm891, %v908, %v874
  %v926 = vsel %vm892, %v909, %v875
  %v927 = vsel %vm893, %v910, %v876
  %v928 = vsel %vm894, %v911, %v877
  %v929 = vsel %vm895, %v912, %v878
  %v930 = vsel %vm896, %v913, %v879
  %v931 = vadd.f32 %v914, 1.0
  %v932 = vadd.f32 %v915, 1.0
  %v933 = vadd.f32 %v916, 1.0
  %v934 = vadd.f32 %v917, 1.0
  %v935 = vadd.f32 %v918, 1.0
  %v936 = vadd.f32 %v919, 1.0
  %v937 = vadd.f32 %v920, 1.0
  %v938 = vadd.f32 %v921, 1.0
  %v939 = vadd.f32 %v922, 1.0
  %v940 = vadd.f32 %v923, 1.0
  %v941 = vadd.f32 %v924, 1.0
  %v942 = vadd.f32 %v925, 1.0
  %v943 = vadd.f32 %v926, 1.0
  %v944 = vadd.f32 %v927, 1.0
  %v945 = vadd.f32 %v928, 1.0
  %v946 = vadd.f32 %v929, 1.0
  %v947 = vadd.f32 %v930, 1.0
  %v948 = vmul.f32 %v506, %v931
  %v949 = vmul.f32 %v507, %v932
  %v950 = vmul.f32 %v508, %v933
  %v951 = vmul.f32 %v509, %v934
  %v952 = vmul.f32 %v510, %v935
  %v953 = vmul.f32 %v511, %v936
  %v954 = vmul.f32 %v512, %v937
  %v955 = vmul.f32 %v513, %v938
  %v956 = vmul.f32 %v514, %v939
  %v957 = vmul.f32 %v515, %v940
  %v958 = vmul.f32 %v516, %v941
  %v959 = vmul.f32 %v517, %v942
  %v960 = vmul.f32 %v518, %v943
  %v961 = vmul.f32 %v519, %v944
  %v962 = vmul.f32 %v520, %v945
  %v963 = vmul.f32 %v521, %v946
  %v964 = vmul.f32 %v522, %v947
  %965 = vst [vmem:[%s5] sm:$0xff] %v948
  %966 = vst [vmem:[%s5 + $0x8] sm:$0xff] %v949
  %967 = vst [vmem:[%s5 + $0x10] sm:$0xff] %v950
  %968 = vst [vmem:[%s5 + $0x18] sm:$0xff] %v951
  %969 = vst [vmem:[%s5 + $0x20] sm:$0xff] %v952
  %970 = vst [vmem:[%s5 + $0x28] sm:$0xff] %v953
  %971 = vst [vmem:[%s5 + $0x30] sm:$0xff] %v954
  %972 = vst [vmem:[%s5 + $0x38] sm:$0xff] %v955
  %973 = vst [vmem:[%s5 + $0x40] sm:$0xff] %v956
  %974 = vst [vmem:[%s5 + $0x48] sm:$0xff] %v957
  %975 = vst [vmem:[%s5 + $0x50] sm:$0xff] %v958
  %976 = vst [vmem:[%s5 + $0x58] sm:$0xff] %v959
  %977 = vst [vmem:[%s5 + $0x60] sm:$0xff] %v960
  %978 = vst [vmem:[%s5 + $0x68] sm:$0xff] %v961
  %979 = vst [vmem:[%s5 + $0x70] sm:$0xff] %v962
  %980 = vst [vmem:[%s5 + $0x78] sm:$0xff] %v963
  %981 = vst [vmem:[%s5 + $0x80] sm:$0x3] %v964
  // Predicated region
  $region22: #{masked_encoder_2d_forward.13} parent=0 // pred_check
    _
  $region23: #{masked_encoder_2d_forward.13} parent=0 // pred_check_branch
    %983 = sbr.rel (0) target = $region25
  $region24: #{masked_encoder_2d_forward.13} parent=0 // pred_region
    _
  $region25: #{masked_encoder_2d_forward.13} parent=0 // pred_fallthru
    _
  // Predicated region
  $region26: #{masked_encoder_2d_forward.13} parent=0 // pred_check
    _
  $region27: #{masked_encoder_2d_forward.13} parent=0 // pred_check_branch
    %985 = sbr.rel (0) target = $region29
  $region28: #{masked_encoder_2d_forward.13} parent=0 // pred_region
    _
  $region29: #{masked_encoder_2d_forward.13} parent=0 // pred_fallthru
    _

// kernel: masked_encoder_2d_forward.12
$region0: #{masked_encoder_2d_forward.12}
  #allocation0 [shape = 'u32[]', space=smem, size = 0x4, offset = 0x4, fixed_abs, tag = 'smem constant byte address 0x4 - core index']
  #allocation1 [shape = 'u32[144,128]{1,0:T(1,128)}', space=vmem, size = 0x12000, scoped, tag = 'internal scratch']
  %s0 = inlined_call_operand.vmem [shape: f32[2,4,65,8], index: 0, kind: input, shape index: {}]
  %s1 = inlined_call_operand.vmem [shape: f32[2,4,8,65], index: 1, kind: input, shape index: {}]
  %s2 = inlined_call_operand.vmem [shape: f32[2,4,65,8], index: 2, kind: input, shape index: {}]
  %s3 = inlined_call_operand.vmem [shape: f32[2,65,32], index: 3, kind: input, shape index: {}]
  %s4 = inlined_call_operand.vmem [shape: bf16[4,8,32], index: 4, kind: input, shape index: {}]
  %s5 = inlined_call_operand.vmem [shape: f32[1,32], index: 5, kind: input, shape index: {}]
  %s6 = inlined_call_operand.vmem [shape: f32[2,65,32], index: 6, kind: output, shape index: {}]
  %s7 = sld [smem:[#allocation0]]
  $region57: #{masked_encoder_2d_forward.12} parent=0
    _
  %s9 = ssub.s32 1, %s7
  %s10 = scalar_select 0, %s9, %s7
  loop: start=0, step=1, limit=4
  $region2: #{masked_encoder_2d_forward.12} parent=0 // loop_pre_header
    _
  $region3: #{masked_encoder_2d_forward.12} parent=0 // loop_header
    %s12 = sphi 0, %s16
    %p13 = scmp.ge.s32.totalorder %s12, 4
    %s22 = sphi 0, %s24
    %s25 = sphi 0, %s22
    %s26 = sphi 0, %s25
    %s42 = sphi 0, %s26
    %s48 = sphi 0, %s50
    %s51 = sphi 0, %s48
    %s52 = sphi 0, %s51
    %s68 = sphi 0, %s52
    %s74 = sphi 0, %s76
    %s77 = sphi 0, %s74
    %s78 = sphi 0, %s77
    %s94 = sphi 0, %s78
    %s100 = sphi 0, %s102
    %s103 = sphi 0, %s100
    %s104 = sphi 0, %s103
    %s120 = sphi 0, %s104
    %s124 = sphi 0, %s124
    %s126 = sphi 0, %s124
    %s127 = sphi 0, %s126
    %s141 = sphi 0, %s127
    %s145 = sphi 0, %s145
    %s147 = sphi 0, %s145
    %s148 = sphi 0, %s147
    %s162 = sphi 0, %s148
    %s168 = sphi 0, %s170
    %s171 = sphi 0, %s168
    %s172 = sphi 0, %s171
    %s188 = sphi 0, %s172
  $region4: #{masked_encoder_2d_forward.12} parent=0 // loop_header_branch
    %15 = sbr.rel (%p13) target = $region8
  $region5: #{masked_encoder_2d_forward.12} parent=0 // loop_body
    %s17 = ssub.s32 %s12, 1
    %s18 = ssub.s32 %s12, 2
    %s19 = sadd.s32 %s12, 1
    %s20 = ssub.s32 %s12, %s19
    %p21 = scmp.eq.s32.totalorder %s20, 0
    %s23 = sadd.s32 %s22, 1
    %s24 = scalar_select %p21, %s22, %s23
    %p27 = pneg %p21
    %p28 = scmp.eq.s32.totalorder %s12, 1
    %p29 = por %p27, %p28
    %p30 = scmp.ne.s32.totalorder %s22, %s25
    %p31 = scmp.eq.s32.totalorder %s12, 0
    %p32 = por %p30, %p31
    %p33 = scmp.ne.s32.totalorder %s22, %s25
    %p34 = scmp.eq.s32.totalorder %s17, 1
    %p35 = por %p33, %p34
    %p36 = scmp.ne.s32.totalorder %s25, %s26
    %p37 = scmp.eq.s32.totalorder %s17, 0
    %p38 = por %p36, %p37
    %p39 = scmp.ne.s32.totalorder %s25, %s26
    %p40 = scmp.eq.s32.totalorder %s18, 1
    %p41 = por %p39, %p40
    %p43 = scmp.ne.s32.totalorder %s26, %s42
    %p44 = scmp.eq.s32.totalorder %s18, 0
    %p45 = por %p43, %p44
    %s46 = ssub.s32 %s12, %s19
    %p47 = scmp.eq.s32.totalorder %s46, 0
    %s49 = sadd.s32 %s48, 1
    %s50 = scalar_select %p47, %s48, %s49
    %p53 = pneg %p47
    %p54 = scmp.eq.s32.totalorder %s12, 1
    %p55 = por %p53, %p54
    %p56 = scmp.ne.s32.totalorder %s48, %s51
    %p57 = scmp.eq.s32.totalorder %s12, 0
    %p58 = por %p56, %p57
    %p59 = scmp.ne.s32.totalorder %s48, %s51
    %p60 = scmp.eq.s32.totalorder %s17, 1
    %p61 = por %p59, %p60
    %p62 = scmp.ne.s32.totalorder %s51, %s52
    %p63 = scmp.eq.s32.totalorder %s17, 0
    %p64 = por %p62, %p63
    %p65 = scmp.ne.s32.totalorder %s51, %s52
    %p66 = scmp.eq.s32.totalorder %s18, 1
    %p67 = por %p65, %p66
    %p69 = scmp.ne.s32.totalorder %s52, %s68
    %p70 = scmp.eq.s32.totalorder %s18, 0
    %p71 = por %p69, %p70
    %s72 = ssub.s32 %s12, %s19
    %p73 = scmp.eq.s32.totalorder %s72, 0
    %s75 = sadd.s32 %s74, 1
    %s76 = scalar_select %p73, %s74, %s75
    %p79 = pneg %p73
    %p80 = scmp.eq.s32.totalorder %s12, 1
    %p81 = por %p79, %p80
    %p82 = scmp.ne.s32.totalorder %s74, %s77
    %p83 = scmp.eq.s32.totalorder %s12, 0
    %p84 = por %p82, %p83
    %p85 = scmp.ne.s32.totalorder %s74, %s77
    %p86 = scmp.eq.s32.totalorder %s17, 1
    %p87 = por %p85, %p86
    %p88 = scmp.ne.s32.totalorder %s77, %s78
    %p89 = scmp.eq.s32.totalorder %s17, 0
    %p90 = por %p88, %p89
    %p91 = scmp.ne.s32.totalorder %s77, %s78
    %p92 = scmp.eq.s32.totalorder %s18, 1
    %p93 = por %p91, %p92
    %p95 = scmp.ne.s32.totalorder %s78, %s94
    %p96 = scmp.eq.s32.totalorder %s18, 0
    %p97 = por %p95, %p96
    %s98 = ssub.s32 %s12, %s19
    %p99 = scmp.eq.s32.totalorder %s98, 0
    %s101 = sadd.s32 %s100, 1
    %s102 = scalar_select %p99, %s100, %s101
    %p105 = pneg %p99
    %p106 = scmp.eq.s32.totalorder %s12, 1
    %p107 = por %p105, %p106
    %p108 = scmp.ne.s32.totalorder %s100, %s103
    %p109 = scmp.eq.s32.totalorder %s12, 0
    %p110 = por %p108, %p109
    %p111 = scmp.ne.s32.totalorder %s100, %s103
    %p112 = scmp.eq.s32.totalorder %s17, 1
    %p113 = por %p111, %p112
    %p114 = scmp.ne.s32.totalorder %s103, %s104
    %p115 = scmp.eq.s32.totalorder %s17, 0
    %p116 = por %p114, %p115
    %p117 = scmp.ne.s32.totalorder %s103, %s104
    %p118 = scmp.eq.s32.totalorder %s18, 1
    %p119 = por %p117, %p118
    %p121 = scmp.ne.s32.totalorder %s104, %s120
    %p122 = scmp.eq.s32.totalorder %s18, 0
    %p123 = por %p121, %p122
    %s125 = sadd.s32 %s124, 1
    %p128 = scmp.eq.s32.totalorder %s12, 1
    %p129 = scmp.ne.s32.totalorder %s124, %s126
    %p130 = scmp.eq.s32.totalorder %s12, 0
    %p131 = por %p129, %p130
    %p132 = scmp.ne.s32.totalorder %s124, %s126
    %p133 = scmp.eq.s32.totalorder %s17, 1
    %p134 = por %p132, %p133
    %p135 = scmp.ne.s32.totalorder %s126, %s127
    %p136 = scmp.eq.s32.totalorder %s17, 0
    %p137 = por %p135, %p136
    %p138 = scmp.ne.s32.totalorder %s126, %s127
    %p139 = scmp.eq.s32.totalorder %s18, 1
    %p140 = por %p138, %p139
    %p142 = scmp.ne.s32.totalorder %s127, %s141
    %p143 = scmp.eq.s32.totalorder %s18, 0
    %p144 = por %p142, %p143
    %s146 = sadd.s32 %s145, 1
    %p149 = scmp.eq.s32.totalorder %s12, 1
    %p150 = scmp.ne.s32.totalorder %s145, %s147
    %p151 = scmp.eq.s32.totalorder %s12, 0
    %p152 = por %p150, %p151
    %p153 = scmp.ne.s32.totalorder %s145, %s147
    %p154 = scmp.eq.s32.totalorder %s17, 1
    %p155 = por %p153, %p154
    %p156 = scmp.ne.s32.totalorder %s147, %s148
    %p157 = scmp.eq.s32.totalorder %s17, 0
    %p158 = por %p156, %p157
    %p159 = scmp.ne.s32.totalorder %s147, %s148
    %p160 = scmp.eq.s32.totalorder %s18, 1
    %p161 = por %p159, %p160
    %p163 = scmp.ne.s32.totalorder %s148, %s162
    %p164 = scmp.eq.s32.totalorder %s18, 0
    %p165 = por %p163, %p164
    %s166 = ssub.s32 %s12, %s19
    %p167 = scmp.eq.s32.totalorder %s166, 0
    %s169 = sadd.s32 %s168, 1
    %s170 = scalar_select %p167, %s168, %s169
    %p173 = pneg %p167
    %p174 = scmp.eq.s32.totalorder %s12, 1
    %p175 = por %p173, %p174
    %p176 = scmp.ne.s32.totalorder %s168, %s171
    %p177 = scmp.eq.s32.totalorder %s12, 0
    %p178 = por %p176, %p177
    %p179 = scmp.ne.s32.totalorder %s168, %s171
    %p180 = scmp.eq.s32.totalorder %s17, 1
    %p181 = por %p179, %p180
    %p182 = scmp.ne.s32.totalorder %s171, %s172
    %p183 = scmp.eq.s32.totalorder %s17, 0
    %p184 = por %p182, %p183
    %p185 = scmp.ne.s32.totalorder %s171, %s172
    %p186 = scmp.eq.s32.totalorder %s18, 1
    %p187 = por %p185, %p186
    %p189 = scmp.ne.s32.totalorder %s172, %s188
    %p190 = scmp.eq.s32.totalorder %s18, 0
    %p191 = por %p189, %p190
    %p192 = scmp.le.s32.totalorder 1, %s12
    %p193 = scmp.lt.s32.totalorder %s12, 3
    %p194 = pnand %p192, %p193
    %p195 = pneg %p194
    // Predicated region
    $region9: #{masked_encoder_2d_forward.12} parent=5 // pred_check
      _
    $region10: #{masked_encoder_2d_forward.12} parent=5 // pred_check_branch
      %197 = sbr.rel (%p194) target = $region12
    $region11: #{masked_encoder_2d_forward.12} parent=5 // pred_region
      %s198 = ssub.s32 %s12, 1
      // Predicated region
      $region13: #{masked_encoder_2d_forward.12} parent=11 // pred_check
        %p199 = pneg %p137
      $region14: #{masked_encoder_2d_forward.12} parent=11 // pred_check_branch
        %201 = sbr.rel (%p199) target = $region16
      $region15: #{masked_encoder_2d_forward.12} parent=11 // pred_region
        _
      $region16: #{masked_encoder_2d_forward.12} parent=11 // pred_fallthru
        _
      // Predicated region
      $region17: #{masked_encoder_2d_forward.12} parent=11 // pred_check
        %p202 = pneg %p158
      $region18: #{masked_encoder_2d_forward.12} parent=11 // pred_check_branch
        %204 = sbr.rel (%p202) target = $region20
      $region19: #{masked_encoder_2d_forward.12} parent=11 // pred_region
        _
      $region20: #{masked_encoder_2d_forward.12} parent=11 // pred_fallthru
        _
    $region12: #{masked_encoder_2d_forward.12} parent=5 // pred_fallthru
      _
    %p205 = scmp.lt.s32.totalorder %s12, 2
    // Predicated region
    $region21: #{masked_encoder_2d_forward.12} parent=5 // pred_check
      %p206 = pneg %p205
    $region22: #{masked_encoder_2d_forward.12} parent=5 // pred_check_branch
      %208 = sbr.rel (%p206) target = $region24
    $region23: #{masked_encoder_2d_forward.12} parent=5 // pred_region
      // Predicated region
      $region25: #{masked_encoder_2d_forward.12} parent=23 // pred_check
        %p209 = pneg %p32
      $region26: #{masked_encoder_2d_forward.12} parent=23 // pred_check_branch
        %211 = sbr.rel (%p209) target = $region28
      $region27: #{masked_encoder_2d_forward.12} parent=23 // pred_region
        %p212 = scmp.lt.s32.totalorder %s12, 1
        %s213 = scalar_select %p212, %s12, 1
        %s214 = smul.addr %s213, 36
        %s215 = smul.addr %s214, 8
        %s216 = scalar_lea.vmem %s0, %s215
      $region28: #{masked_encoder_2d_forward.12} parent=23 // pred_fallthru
        _
      // Predicated region
      $region29: #{masked_encoder_2d_forward.12} parent=23 // pred_check
        %p217 = pneg %p58
      $region30: #{masked_encoder_2d_forward.12} parent=23 // pred_check_branch
        %219 = sbr.rel (%p217) target = $region32
      $region31: #{masked_encoder_2d_forward.12} parent=23 // pred_region
        %p220 = scmp.lt.s32.totalorder %s12, 1
        %s221 = scalar_select %p220, %s12, 1
        %s222 = smul.addr %s221, 4
        %s223 = smul.addr %s222, 8
        %s224 = scalar_lea.vmem %s1, %s223
      $region32: #{masked_encoder_2d_forward.12} parent=23 // pred_fallthru
        _
      // Predicated region
      $region33: #{masked_encoder_2d_forward.12} parent=23 // pred_check
        %p225 = pneg %p84
      $region34: #{masked_encoder_2d_forward.12} parent=23 // pred_check_branch
        %227 = sbr.rel (%p225) target = $region36
      $region35: #{masked_encoder_2d_forward.12} parent=23 // pred_region
        %p228 = scmp.lt.s32.totalorder %s12, 1
        %s229 = scalar_select %p228, %s12, 1
        %s230 = smul.addr %s229, 36
        %s231 = smul.addr %s230, 8
        %s232 = scalar_lea.vmem %s2, %s231
      $region36: #{masked_encoder_2d_forward.12} parent=23 // pred_fallthru
        _
      // Predicated region
      $region37: #{masked_encoder_2d_forward.12} parent=23 // pred_check
        %p233 = pneg %p110
      $region38: #{masked_encoder_2d_forward.12} parent=23 // pred_check_branch
        %235 = sbr.rel (%p233) target = $region40
      $region39: #{masked_encoder_2d_forward.12} parent=23 // pred_region
        %p236 = scmp.lt.s32.totalorder %s12, 1
        %s237 = scalar_select %p236, %s12, 1
        %s238 = smul.addr %s237, 9
        %s239 = smul.addr %s238, 8
        %s240 = scalar_lea.vmem %s3, %s239
      $region40: #{masked_encoder_2d_forward.12} parent=23 // pred_fallthru
        _
    $region24: #{masked_encoder_2d_forward.12} parent=5 // pred_fallthru
      _
    %p241 = scmp.le.s32.totalorder 1, %s12
    %p242 = scmp.lt.s32.totalorder %s12, 3
    %p243 = pnand %p241, %p242
    %p244 = pneg %p243
    // Predicated region
    $region41: #{masked_encoder_2d_forward.12} parent=5 // pred_check
      _
    $region42: #{masked_encoder_2d_forward.12} parent=5 // pred_check_branch
      %246 = sbr.rel (%p243) target = $region44
    $region43: #{masked_encoder_2d_forward.12} parent=5 // pred_region
      %s247 = ssub.s32 %s12, 1
      %p248 = scmp.lt.s32.totalorder %s17, 1
      %s249 = scalar_select %p248, %s17, 1
      %s250 = smul.addr %s249, 36
      %s251 = smul.addr %s250, 8
      %s252 = scalar_lea.vmem %s0, %s251
      %p253 = pneg %p38
      %p254 = pneg %p35
      %p255 = scmp.lt.s32.totalorder %s17, 1
      %s256 = scalar_select %p255, %s17, 1
      %s257 = smul.addr %s256, 4
      %s258 = smul.addr %s257, 8
      %s259 = scalar_lea.vmem %s1, %s258
      %p260 = pneg %p64
      %p261 = pneg %p61
      %p262 = scmp.lt.s32.totalorder %s17, 1
      %s263 = scalar_select %p262, %s17, 1
      %s264 = smul.addr %s263, 36
      %s265 = smul.addr %s264, 8
      %s266 = scalar_lea.vmem %s2, %s265
      %p267 = pneg %p90
      %p268 = pneg %p87
      %p269 = scmp.lt.s32.totalorder %s17, 1
      %s270 = scalar_select %p269, %s17, 1
      %s271 = smul.addr %s270, 9
      %s272 = smul.addr %s271, 8
      %s273 = scalar_lea.vmem %s3, %s272
      %p274 = pneg %p116
      %p275 = pneg %p113
      %p276 = pneg %p137
      %p277 = pneg %p134
      %p278 = pneg %p158
      %p279 = pneg %p155
      %p280 = pneg %p184
      %p281 = pneg %p181
      %p282 = scmp.lt.s32.totalorder %s17, 1
      %s283 = scalar_select %p282, %s17, 1
      %s284 = smul.addr %s283, 9
      %s285 = smul.addr %s284, 8
      %s286 = scalar_lea.vmem %s6, %s285
      %p287 = scmp.lt.s32.totalorder %s17, 1
      %s288 = scalar_select %p287, %s17, 1
      %s289 = smul.addr %s288, 36
      %s290 = smul.addr %s289, 8
      %s291 = scalar_lea.vmem %s0, %s290
      %p292 = scmp.lt.s32.totalorder %s17, 1
      %s293 = scalar_select %p292, %s17, 1
      %s294 = smul.addr %s293, 4
      %s295 = smul.addr %s294, 8
      %s296 = scalar_lea.vmem %s1, %s295
      %p297 = scmp.lt.s32.totalorder %s17, 1
      %s298 = scalar_select %p297, %s17, 1
      %s299 = smul.addr %s298, 36
      %s300 = smul.addr %s299, 8
      %s301 = scalar_lea.vmem %s2, %s300
      %p302 = scmp.lt.s32.totalorder %s17, 1
      %s303 = scalar_select %p302, %s17, 1
      %s304 = smul.addr %s303, 9
      %s305 = smul.addr %s304, 8
      %s306 = scalar_lea.vmem %s3, %s305
      %p307 = scmp.lt.s32.totalorder %s17, 1
      %s308 = scalar_select %p307, %s17, 1
      %s309 = smul.addr %s308, 9
      %s310 = smul.addr %s309, 8
      %s311 = scalar_lea.vmem %s6, %s310
      %v313 = vld [vmem:[%s306] sm:$0xff]
      %v314 = vld [vmem:[%s306 + $0x8] sm:$0xff]
      %v315 = vld [vmem:[%s306 + $0x10] sm:$0xff]
      %v316 = vld [vmem:[%s306 + $0x18] sm:$0xff]
      %v317 = vld [vmem:[%s306 + $0x20] sm:$0xff]
      %v318 = vld [vmem:[%s306 + $0x28] sm:$0xff]
      %v319 = vld [vmem:[%s306 + $0x30] sm:$0xff]
      %v320 = vld [vmem:[%s306 + $0x38] sm:$0xff]
      %v321 = vld [vmem:[%s306 + $0x40] sm:$0x1]
      %v322 = vld [vmem:[%s5] sm:$0x1]
      %v324 = vlaneseq
      %v325 = vshrl.u32 %v324, 7
      %v326 = vsub.s32 0, %v325
      %v327 = vrot.slane %v322, %v326
      %v329 = vadd.f32 %v313, %v327
      %v330 = vadd.f32 %v314, %v327
      %v331 = vadd.f32 %v315, %v327
      %v332 = vadd.f32 %v316, %v327
      %v333 = vadd.f32 %v317, %v327
      %v334 = vadd.f32 %v318, %v327
      %v335 = vadd.f32 %v319, %v327
      %v336 = vadd.f32 %v320, %v327
      %v337 = vadd.f32 %v321, %v327
      %v338 = vld [vmem:[%s291] sm:$0xff]
      %v339 = vld [vmem:[%s291 + $0x8] sm:$0xff]
      %v340 = vld [vmem:[%s291 + $0x10] sm:$0xff]
      %v341 = vld [vmem:[%s291 + $0x18] sm:$0xff]
      %v342 = vld [vmem:[%s291 + $0x20] sm:$0xff]
      %v343 = vld [vmem:[%s291 + $0x28] sm:$0xff]
      %v344 = vld [vmem:[%s291 + $0x30] sm:$0xff]
      %v345 = vld [vmem:[%s291 + $0x38] sm:$0xff]
      %v346 = vld [vmem:[%s291 + $0x40] sm:$0x1]
      %v347 = vmul.f32 %v338, 0.35355338
      %v348 = vmul.f32 %v339, 0.35355338
      %v349 = vmul.f32 %v340, 0.35355338
      %v350 = vmul.f32 %v341, 0.35355338
      %v351 = vmul.f32 %v342, 0.35355338
      %v352 = vmul.f32 %v343, 0.35355338
      %v353 = vmul.f32 %v344, 0.35355338
      %v354 = vmul.f32 %v345, 0.35355338
      %v355 = vmul.f32 %v346, 0.35355338
      %v356 = vpack.c.bf16 %v348, %v347
      %v357 = vpack.c.bf16 %v350, %v349
      %v358 = vpack.c.bf16 %v352, %v351
      %v359 = vpack.c.bf16 %v354, %v353
      %v360 = vpack.c.bf16 %v355, %v355
      %v361 = vld [vmem:[%s296] sm:$0xff]
      %v362 = vpack.c.bf16 %v361, %v361
      %v363 = vld [vmem:[%s301] sm:$0xff]
      %v364 = vld [vmem:[%s301 + $0x8] sm:$0xff]
      %v365 = vld [vmem:[%s301 + $0x10] sm:$0xff]
      %v366 = vld [vmem:[%s301 + $0x18] sm:$0xff]
      %v367 = vld [vmem:[%s301 + $0x20] sm:$0xff]
      %v368 = vld [vmem:[%s301 + $0x28] sm:$0xff]
      %v369 = vld [vmem:[%s301 + $0x30] sm:$0xff]
      %v370 = vld [vmem:[%s301 + $0x38] sm:$0xff]
      %v371 = vld [vmem:[%s301 + $0x40] sm:$0x1]
      %v372 = vpack.c.bf16 %v364, %v363
      %v373 = vpack.c.bf16 %v366, %v365
      %v374 = vpack.c.bf16 %v368, %v367
      %v375 = vpack.c.bf16 %v370, %v369
      %v376 = vpack.c.bf16 %v371, %v371
      %vm377 = vcmask 64512
      %v379 = vsel %vm377, %v356, 0
      %v382 = vsel %vm377, %v357, 0
      %v385 = vsel %vm377, %v358, 0
      %v388 = vsel %vm377, %v359, 0
      %v391 = vsel %vm377, %v360, 0
      %vm393 = vcmask 1043456
      %v395 = vsel %vm393, %v362, 0
      %397 = vmatprep.subr.bf16.mxu0 0
      %398 = vmatpush1.bf16.msra.mxu0 %v395
      %399 = vmatprep.subr.bf16.mxu0 0
      %400 = vmatpush1.bf16.msra.mxu0 0
      %401 = vmatprep.subr.bf16.mxu0 0
      %402 = vmatpush1.bf16.msra.mxu0 0
      %403 = vmatprep.subr.bf16.mxu0 0
      %404 = vmatpush1.bf16.msra.mxu0 0
      %405 = vmatprep.subr.bf16.mxu0 0
      %406 = vmatpush1.bf16.msra.mxu0 0
      %407 = vmatprep.subr.bf16.mxu0 0
      %408 = vmatpush1.bf16.msra.mxu0 0
      %409 = vmatprep.subr.bf16.mxu0 0
      %410 = vmatpush1.bf16.msra.mxu0 0
      %411 = vmatprep.subr.bf16.mxu0 0
      %412 = vmatpush1.bf16.msra.mxu0 0
      %413 = vmatprep.subr.bf16.mxu0 0
      %414 = vmatpush1.bf16.msra.mxu0 0
      %415 = vmatprep.subr.bf16.mxu0 0
      %416 = vmatpush1.bf16.msra.mxu0 0
      %417 = vmatprep.subr.bf16.mxu0 0
      %418 = vmatpush1.bf16.msra.mxu0 0
      %419 = vmatprep.subr.bf16.mxu0 0
      %420 = vmatpush1.bf16.msra.mxu0 0
      %421 = vmatprep.subr.bf16.mxu0 0
      %422 = vmatpush1.bf16.msra.mxu0 0
      %423 = vmatprep.subr.bf16.mxu0 0
      %424 = vmatpush1.bf16.msra.mxu0 0
      %425 = vmatprep.subr.bf16.mxu0 0
      %426 = vmatpush1.bf16.msra.mxu0 0
      %427 = vmatprep.subr.bf16.mxu0 0
      %428 = vmatpush1.bf16.msra.mxu0 0
      %429 = vmatprep.mubr.bf16.mxu0 0
      %430 = vmatmul.mubr.bf16.gmra.mrb[0].mxu0 %v379
      %v431 = vpop.f32.mrb[0].mxu0
      %v432 = vadd.f32 0.0, %v431
      %v433 = vpop.f32.mrb[0].mxu0
      %v434 = vpop.f32.mrb[0].mxu0
      %v435 = vadd.f32 0.0, %v434
      %v436 = vpop.f32.mrb[0].mxu0
      %437 = vmatprep.mubr.bf16.mxu0 0
      %438 = vmatmul.mubr.bf16.gmra.mrb[0].mxu0 %v382
      %v439 = vpop.f32.mrb[0].mxu0
      %v440 = vadd.f32 0.0, %v439
      %v441 = vpop.f32.mrb[0].mxu0
      %v442 = vpop.f32.mrb[0].mxu0
      %v443 = vadd.f32 0.0, %v442
      %v444 = vpop.f32.mrb[0].mxu0
      %445 = vmatprep.mubr.bf16.mxu0 0
      %446 = vmatmul.mubr.bf16.gmra.mrb[0].mxu0 %v385
      %v447 = vpop.f32.mrb[0].mxu0
      %v448 = vadd.f32 0.0, %v447
      %v449 = vpop.f32.mrb[0].mxu0
      %v450 = vpop.f32.mrb[0].mxu0
      %v451 = vadd.f32 0.0, %v450
      %v452 = vpop.f32.mrb[0].mxu0
      %453 = vmatprep.mubr.bf16.mxu0 0
      %454 = vmatmul.mubr.bf16.gmra.mrb[0].mxu0 %v388
      %v455 = vpop.f32.mrb[0].mxu0
      %v456 = vadd.f32 0.0, %v455
      %v457 = vpop.f32.mrb[0].mxu0
      %v458 = vpop.f32.mrb[0].mxu0
      %v459 = vadd.f32 0.0, %v458
      %v460 = vpop.f32.mrb[0].mxu0
      %461 = vmatprep.mubr.bf16.mxu0 0
      %462 = vmatmul.mubr.bf16.gmra.mrb[0].mxu0 %v391
      %v463 = vpop.f32.mrb[0].mxu0
      %v464 = vadd.f32 0.0, %v463
      %v465 = vpop.f32.mrb[0].mxu0
      %v466 = vpop.f32.mrb[0].mxu0
      %v467 = vpop.f32.mrb[0].mxu0
      %468 = vdwg.mxu0
      %vm469 = vcmask 531456
      %v470 = vsel %vm469, %v432, -inf
      %471 = vmax.xlane.f32.xlu0 %v470
      %v472 = vpop.xlane.xlu0 %471
      %v473 = vsel %vm469, %v435, -inf
      %474 = vmax.xlane.f32.xlu0 %v473
      %v475 = vpop.xlane.xlu0 %474
      %v476 = vsel %vm469, %v440, -inf
      %477 = vmax.xlane.f32.xlu0 %v476
      %v478 = vpop.xlane.xlu0 %477
      %v479 = vsel %vm469, %v443, -inf
      %480 = vmax.xlane.f32.xlu0 %v479
      %v481 = vpop.xlane.xlu0 %480
      %v482 = vsel %vm469, %v448, -inf
      %483 = vmax.xlane.f32.xlu0 %v482
      %v484 = vpop.xlane.xlu0 %483
      %v485 = vsel %vm469, %v451, -inf
      %486 = vmax.xlane.f32.xlu0 %v485
      %v487 = vpop.xlane.xlu0 %486
      %v488 = vsel %vm469, %v456, -inf
      %489 = vmax.xlane.f32.xlu0 %v488
      %v490 = vpop.xlane.xlu0 %489
      %v491 = vsel %vm469, %v459, -inf
      %492 = vmax.xlane.f32.xlu0 %v491
      %v493 = vpop.xlane.xlu0 %492
      %vm494 = vcmask 524288
      %v495 = vsel %vm494, %v464, -inf
      %496 = vmax.xlane.f32.xlu0 %v495
      %v497 = vpop.xlane.xlu0 %496
      %v498 = vsub.f32 %v432, %v472
      %v499 = vsub.f32 %v435, %v475
      %v500 = vsub.f32 %v440, %v478
      %v501 = vsub.f32 %v443, %v481
      %v502 = vsub.f32 %v448, %v484
      %v503 = vsub.f32 %v451, %v487
      %v504 = vsub.f32 %v456, %v490
      %v505 = vsub.f32 %v459, %v493
      %v506 = vsub.f32 %v464, %v497
      %v507 = vmul.f32 %v498, 1.442695
      %v508 = vpow.pop %v507
      %v509 = vmul.f32 %v499, 1.442695
      %v510 = vpow.pop %v509
      %v511 = vmul.f32 %v500, 1.442695
      %v512 = vpow.pop %v511
      %v513 = vmul.f32 %v501, 1.442695
      %v514 = vpow.pop %v513
      %v515 = vmul.f32 %v502, 1.442695
      %v516 = vpow.pop %v515
      %v517 = vmul.f32 %v503, 1.442695
      %v518 = vpow.pop %v517
      %v519 = vmul.f32 %v504, 1.442695
      %v520 = vpow.pop %v519
      %v521 = vmul.f32 %v505, 1.442695
      %v522 = vpow.pop %v521
      %v523 = vmul.f32 %v506, 1.442695
      %v524 = vpow.pop %v523
      %v525 = vsel %vm469, %v508, 0.0
      %526 = vadd.xlane.f32.xlu0 %v525
      %v527 = vpop.xlane.xlu0 %526
      %v528 = vsel %vm469, %v510, 0.0
      %529 = vadd.xlane.f32.xlu0 %v528
      %v530 = vpop.xlane.xlu0 %529
      %v531 = vsel %vm469, %v512, 0.0
      %532 = vadd.xlane.f32.xlu0 %v531
      %v533 = vpop.xlane.xlu0 %532
      %v534 = vsel %vm469, %v514, 0.0
      %535 = vadd.xlane.f32.xlu0 %v534
      %v536 = vpop.xlane.xlu0 %535
      %v537 = vsel %vm469, %v516, 0.0
      %538 = vadd.xlane.f32.xlu0 %v537
      %v539 = vpop.xlane.xlu0 %538
      %v540 = vsel %vm469, %v518, 0.0
      %541 = vadd.xlane.f32.xlu0 %v540
      %v542 = vpop.xlane.xlu0 %541
      %v543 = vsel %vm469, %v520, 0.0
      %544 = vadd.xlane.f32.xlu0 %v543
      %v545 = vpop.xlane.xlu0 %544
      %v546 = vsel %vm469, %v522, 0.0
      %547 = vadd.xlane.f32.xlu0 %v546
      %v548 = vpop.xlane.xlu0 %547
      %v549 = vsel %vm494, %v524, 0.0
      %550 = vadd.xlane.f32.xlu0 %v549
      %v551 = vpop.xlane.xlu0 %550
      %v552 = vrcp.pop %v527
      %v553 = vrcp.pop %v530
      %v554 = vrcp.pop %v533
      %v555 = vrcp.pop %v536
      %v556 = vrcp.pop %v539
      %v557 = vrcp.pop %v542
      %v558 = vrcp.pop %v545
      %v559 = vrcp.pop %v548
      %v560 = vrcp.pop %v551
      %v561 = vmul.f32 %v508, %v552
      %v562 = vmul.f32 %v510, %v553
      %v563 = vmul.f32 %v512, %v554
      %v564 = vmul.f32 %v514, %v555
      %v565 = vmul.f32 %v516, %v556
      %v566 = vmul.f32 %v518, %v557
      %v567 = vmul.f32 %v520, %v558
      %v568 = vmul.f32 %v522, %v559
      %v569 = vmul.f32 %v524, %v560
      %v570 = vpack.c.bf16 %v562, %v561
      %v571 = vpack.c.bf16 %v564, %v563
      %v572 = vpack.c.bf16 %v566, %v565
      %v573 = vpack.c.bf16 %v568, %v567
      %v574 = vpack.c.bf16 %v569, %v569
      %v576 = vsel %vm469, %v570, 0
      %v579 = vsel %vm469, %v571, 0
      %v582 = vsel %vm469, %v572, 0
      %v585 = vsel %vm469, %v573, 0
      %v588 = vsel %vm469, %v574, 0
      %vm590 = vcmask 1040384
      %v591 = vsel 0, 4294967295, 65535
      %v592 = vsel %vm590, %v591, 0
      %v594 = vand.u32 %v376, %v592
      %596 = vmatprep.subr.bf16.mxu0 0
      %597 = vmatpush1.bf16.msra.mxu0 %v372
      %598 = vmatprep.subr.bf16.mxu0 0
      %599 = vmatpush1.bf16.msra.mxu0 %v373
      %600 = vmatprep.subr.bf16.mxu0 0
      %601 = vmatpush1.bf16.msra.mxu0 %v374
      %602 = vmatprep.subr.bf16.mxu0 0
      %603 = vmatpush1.bf16.msra.mxu0 %v375
      %604 = vmatprep.subr.bf16.mxu0 0
      %605 = vmatpush1.bf16.msra.mxu0 %v594
      %606 = vmatprep.subr.bf16.mxu0 0
      %607 = vmatpush1.bf16.msra.mxu0 0
      %608 = vmatprep.subr.bf16.mxu0 0
      %609 = vmatpush1.bf16.msra.mxu0 0
      %610 = vmatprep.subr.bf16.mxu0 0
      %611 = vmatpush1.bf16.msra.mxu0 0
      %612 = vmatprep.subr.bf16.mxu0 0
      %613 = vmatpush1.bf16.msra.mxu0 0
      %614 = vmatprep.subr.bf16.mxu0 0
      %615 = vmatpush1.bf16.msra.mxu0 0
      %616 = vmatprep.subr.bf16.mxu0 0
      %617 = vmatpush1.bf16.msra.mxu0 0
      %618 = vmatprep.subr.bf16.mxu0 0
      %619 = vmatpush1.bf16.msra.mxu0 0
      %620 = vmatprep.subr.bf16.mxu0 0
      %621 = vmatpush1.bf16.msra.mxu0 0
      %622 = vmatprep.subr.bf16.mxu0 0
      %623 = vmatpush1.bf16.msra.mxu0 0
      %624 = vmatprep.subr.bf16.mxu0 0
      %625 = vmatpush1.bf16.msra.mxu0 0
      %626 = vmatprep.subr.bf16.mxu0 0
      %627 = vmatpush1.bf16.msra.mxu0 0
      %628 = vmatprep.mubr.bf16.mxu0 0
      %629 = vmatmul.mubr.bf16.gmra.mrb[0].mxu0 %v576
      %v630 = vpop.f32.mrb[0].mxu0
      %v631 = vadd.f32 0.0, %v630
      %v632 = vpop.f32.mrb[0].mxu0
      %v633 = vpop.f32.mrb[0].mxu0
      %v634 = vadd.f32 0.0, %v633
      %v635 = vpop.f32.mrb[0].mxu0
      %636 = vmatprep.mubr.bf16.mxu0 0
      %637 = vmatmul.mubr.bf16.gmra.mrb[0].mxu0 %v579
      %v638 = vpop.f32.mrb[0].mxu0
      %v639 = vadd.f32 0.0, %v638
      %v640 = vpop.f32.mrb[0].mxu0
      %v641 = vpop.f32.mrb[0].mxu0
      %v642 = vadd.f32 0.0, %v641
      %v643 = vpop.f32.mrb[0].mxu0
      %644 = vmatprep.mubr.bf16.mxu0 0
      %645 = vmatmul.mubr.bf16.gmra.mrb[0].mxu0 %v582
      %v646 = vpop.f32.mrb[0].mxu0
      %v647 = vadd.f32 0.0, %v646
      %v648 = vpop.f32.mrb[0].mxu0
      %v649 = vpop.f32.mrb[0].mxu0
      %v650 = vadd.f32 0.0, %v649
      %v651 = vpop.f32.mrb[0].mxu0
      %652 = vmatprep.mubr.bf16.mxu0 0
      %653 = vmatmul.mubr.bf16.gmra.mrb[0].mxu0 %v585
      %v654 = vpop.f32.mrb[0].mxu0
      %v655 = vadd.f32 0.0, %v654
      %v656 = vpop.f32.mrb[0].mxu0
      %v657 = vpop.f32.mrb[0].mxu0
      %v658 = vadd.f32 0.0, %v657
      %v659 = vpop.f32.mrb[0].mxu0
      %660 = vmatprep.mubr.bf16.mxu0 0
      %661 = vmatmul.mubr.bf16.gmra.mrb[0].mxu0 %v588
      %v662 = vpop.f32.mrb[0].mxu0
      %v663 = vadd.f32 0.0, %v662
      %v664 = vpop.f32.mrb[0].mxu0
      %v665 = vpop.f32.mrb[0].mxu0
      %v666 = vpop.f32.mrb[0].mxu0
      %667 = vdwg.mxu0
      %v668 = vpack.c.bf16 %v634, %v631
      %v669 = vpack.c.bf16 %v642, %v639
      %v670 = vpack.c.bf16 %v650, %v647
      %v671 = vpack.c.bf16 %v658, %v655
      %v672 = vpack.c.bf16 %v663, %v663
      %v673 = vld [vmem:[%s4] sm:$0xf]
      %v675 = vsel %vm377, %v668, 0
      %v678 = vsel %vm377, %v669, 0
      %v681 = vsel %vm377, %v670, 0
      %v684 = vsel %vm377, %v671, 0
      %v687 = vsel %vm377, %v672, 0
      %v690 = vsel %vm393, %v673, 0
      %692 = vmatprep.subr.bf16.mxu0 0
      %693 = vmatpush1.bf16.msra.mxu0 %v690
      %694 = vmatprep.subr.bf16.mxu0 0
      %695 = vmatpush1.bf16.msra.mxu0 0
      %696 = vmatprep.subr.bf16.mxu0 0
      %697 = vmatpush1.bf16.msra.mxu0 0
      %698 = vmatprep.subr.bf16.mxu0 0
      %699 = vmatpush1.bf16.msra.mxu0 0
      %700 = vmatprep.subr.bf16.mxu0 0
      %701 = vmatpush1.bf16.msra.mxu0 0
      %702 = vmatprep.subr.bf16.mxu0 0
      %703 = vmatpush1.bf16.msra.mxu0 0
      %704 = vmatprep.subr.bf16.mxu0 0
      %705 = vmatpush1.bf16.msra.mxu0 0
      %706 = vmatprep.subr.bf16.mxu0 0
      %707 = vmatpush1.bf16.msra.mxu0 0
      %708 = vmatprep.subr.bf16.mxu0 0
      %709 = vmatpush1.bf16.msra.mxu0 0
      %710 = vmatprep.subr.bf16.mxu0 0
      %711 = vmatpush1.bf16.msra.mxu0 0
      %712 = vmatprep.subr.bf16.mxu0 0
      %713 = vmatpush1.bf16.msra.mxu0 0
      %714 = vmatprep.subr.bf16.mxu0 0
      %715 = vmatpush1.bf16.msra.mxu0 0
      %716 = vmatprep.subr.bf16.mxu0 0
      %717 = vmatpush1.bf16.msra.mxu0 0
      %718 = vmatprep.subr.bf16.mxu0 0
      %719 = vmatpush1.bf16.msra.mxu0 0
      %720 = vmatprep.subr.bf16.mxu0 0
      %721 = vmatpush1.bf16.msra.mxu0 0
      %722 = vmatprep.subr.bf16.mxu0 0
      %723 = vmatpush1.bf16.msra.mxu0 0
      %724 = vmatprep.mubr.bf16.mxu0 0
      %725 = vmatmul.mubr.bf16.gmra.mrb[0].mxu0 %v675
      %v726 = vpop.f32.mrb[0].mxu0
      %v727 = vadd.f32 0.0, %v726
      %v728 = vpop.f32.mrb[0].mxu0
      %v729 = vpop.f32.mrb[0].mxu0
      %v730 = vadd.f32 0.0, %v729
      %v731 = vpop.f32.mrb[0].mxu0
      %732 = vmatprep.mubr.bf16.mxu0 0
      %733 = vmatmul.mubr.bf16.gmra.mrb[0].mxu0 %v678
      %v734 = vpop.f32.mrb[0].mxu0
      %v735 = vadd.f32 0.0, %v734
      %v736 = vpop.f32.mrb[0].mxu0
      %v737 = vpop.f32.mrb[0].mxu0
      %v738 = vadd.f32 0.0, %v737
      %v739 = vpop.f32.mrb[0].mxu0
      %740 = vmatprep.mubr.bf16.mxu0 0
      %741 = vmatmul.mubr.bf16.gmra.mrb[0].mxu0 %v681
      %v742 = vpop.f32.mrb[0].mxu0
      %v743 = vadd.f32 0.0, %v742
      %v744 = vpop.f32.mrb[0].mxu0
      %v745 = vpop.f32.mrb[0].mxu0
      %v746 = vadd.f32 0.0, %v745
      %v747 = vpop.f32.mrb[0].mxu0
      %748 = vmatprep.mubr.bf16.mxu0 0
      %749 = vmatmul.mubr.bf16.gmra.mrb[0].mxu0 %v684
      %v750 = vpop.f32.mrb[0].mxu0
      %v751 = vadd.f32 0.0, %v750
      %v752 = vpop.f32.mrb[0].mxu0
      %v753 = vpop.f32.mrb[0].mxu0
      %v754 = vadd.f32 0.0, %v753
      %v755 = vpop.f32.mrb[0].mxu0
      %756 = vmatprep.mubr.bf16.mxu0 0
      %757 = vmatmul.mubr.bf16.gmra.mrb[0].mxu0 %v687
      %v758 = vpop.f32.mrb[0].mxu0
      %v759 = vadd.f32 0.0, %v758
      %v760 = vpop.f32.mrb[0].mxu0
      %v761 = vpop.f32.mrb[0].mxu0
      %v762 = vpop.f32.mrb[0].mxu0
      %763 = vdwg.mxu0
      %v764 = vadd.f32 %v329, %v727
      %v765 = vadd.f32 %v330, %v730
      %v766 = vadd.f32 %v331, %v735
      %v767 = vadd.f32 %v332, %v738
      %v768 = vadd.f32 %v333, %v743
      %v769 = vadd.f32 %v334, %v746
      %v770 = vadd.f32 %v335, %v751
      %v771 = vadd.f32 %v336, %v754
      %v772 = vadd.f32 %v337, %v759
      %s773 = scalar_lea.vmem %s291, 72
      %v774 = vld [vmem:[%s773] sm:$0xff]
      %v775 = vld [vmem:[%s773 + $0x8] sm:$0xff]
      %v776 = vld [vmem:[%s773 + $0x10] sm:$0xff]
      %v777 = vld [vmem:[%s773 + $0x18] sm:$0xff]
      %v778 = vld [vmem:[%s773 + $0x20] sm:$0xff]
      %v779 = vld [vmem:[%s773 + $0x28] sm:$0xff]
      %v780 = vld [vmem:[%s773 + $0x30] sm:$0xff]
      %v781 = vld [vmem:[%s773 + $0x38] sm:$0xff]
      %v782 = vld [vmem:[%s773 + $0x40] sm:$0x1]
      %v783 = vmul.f32 %v774, 0.35355338
      %v784 = vmul.f32 %v775, 0.35355338
      %v785 = vmul.f32 %v776, 0.35355338
      %v786 = vmul.f32 %v777, 0.35355338
      %v787 = vmul.f32 %v778, 0.35355338
      %v788 = vmul.f32 %v779, 0.35355338
      %v789 = vmul.f32 %v780, 0.35355338
      %v790 = vmul.f32 %v781, 0.35355338
      %v791 = vmul.f32 %v782, 0.35355338
      %v792 = vpack.c.bf16 %v784, %v783
      %v793 = vpack.c.bf16 %v786, %v785
      %v794 = vpack.c.bf16 %v788, %v787
      %v795 = vpack.c.bf16 %v790, %v789
      %v796 = vpack.c.bf16 %v791, %v791
      %s797 = scalar_lea.vmem %s296, 8
      %v798 = vld [vmem:[%s797] sm:$0xff]
      %v799 = vpack.c.bf16 %v798, %v798
      %s800 = scalar_lea.vmem %s301, 72
      %v801 = vld [vmem:[%s800] sm:$0xff]
      %v802 = vld [vmem:[%s800 + $0x8] sm:$0xff]
      %v803 = vld [vmem:[%s800 + $0x10] sm:$0xff]
      %v804 = vld [vmem:[%s800 + $0x18] sm:$0xff]
      %v805 = vld [vmem:[%s800 + $0x20] sm:$0xff]
      %v806 = vld [vmem:[%s800 + $0x28] sm:$0xff]
      %v807 = vld [vmem:[%s800 + $0x30] sm:$0xff]
      %v808 = vld [vmem:[%s800 + $0x38] sm:$0xff]
      %v809 = vld [vmem:[%s800 + $0x40] sm:$0x1]
      %v810 = vpack.c.bf16 %v802, %v801
      %v811 = vpack.c.bf16 %v804, %v803
      %v812 = vpack.c.bf16 %v806, %v805
      %v813 = vpack.c.bf16 %v808, %v807
      %v814 = vpack.c.bf16 %v809, %v809
      %v816 = vsel %vm377, %v792, 0
      %v819 = vsel %vm377, %v793, 0
      %v822 = vsel %vm377, %v794, 0
      %v825 = vsel %vm377, %v795, 0
      %v828 = vsel %vm377, %v796, 0
      %v831 = vsel %vm393, %v799, 0
      %833 = vmatprep.subr.bf16.mxu0 0
      %834 = vmatpush1.bf16.msra.mxu0 %v831
      %835 = vmatprep.subr.bf16.mxu0 0
      %836 = vmatpush1.bf16.msra.mxu0 0
      %837 = vmatprep.subr.bf16.mxu0 0
      %838 = vmatpush1.bf16.msra.mxu0 0
      %839 = vmatprep.subr.bf16.mxu0 0
      %840 = vmatpush1.bf16.msra.mxu0 0
      %841 = vmatprep.subr.bf16.mxu0 0
      %842 = vmatpush1.bf16.msra.mxu0 0
      %843 = vmatprep.subr.bf16.mxu0 0
      %844 = vmatpush1.bf16.msra.mxu0 0
      %845 = vmatprep.subr.bf16.mxu0 0
      %846 = vmatpush1.bf16.msra.mxu0 0
      %847 = vmatprep.subr.bf16.mxu0 0
      %848 = vmatpush1.bf16.msra.mxu0 0
      %849 = vmatprep.subr.bf16.mxu0 0
      %850 = vmatpush1.bf16.msra.mxu0 0
      %851 = vmatprep.subr.bf16.mxu0 0
      %852 = vmatpush1.bf16.msra.mxu0 0
      %853 = vmatprep.subr.bf16.mxu0 0
      %854 = vmatpush1.bf16.msra.mxu0 0
      %855 = vmatprep.subr.bf16.mxu0 0
      %856 = vmatpush1.bf16.msra.mxu0 0
      %857 = vmatprep.subr.bf16.mxu0 0
      %858 = vmatpush1.bf16.msra.mxu0 0
      %859 = vmatprep.subr.bf16.mxu0 0
      %860 = vmatpush1.bf16.msra.mxu0 0
      %861 = vmatprep.subr.bf16.mxu0 0
      %862 = vmatpush1.bf16.msra.mxu0 0
      %863 = vmatprep.subr.bf16.mxu0 0
      %864 = vmatpush1.bf16.msra.mxu0 0
      %865 = vmatprep.mubr.bf16.mxu0 0
      %866 = vmatmul.mubr.bf16.gmra.mrb[0].mxu0 %v816
      %v867 = vpop.f32.mrb[0].mxu0
      %v868 = vadd.f32 0.0, %v867
      %v869 = vpop.f32.mrb[0].mxu0
      %v870 = vpop.f32.mrb[0].mxu0
      %v871 = vadd.f32 0.0, %v870
      %v872 = vpop.f32.mrb[0].mxu0
      %873 = vmatprep.mubr.bf16.mxu0 0
      %874 = vmatmul.mubr.bf16.gmra.mrb[0].mxu0 %v819
      %v875 = vpop.f32.mrb[0].mxu0
      %v876 = vadd.f32 0.0, %v875
      %v877 = vpop.f32.mrb[0].mxu0
      %v878 = vpop.f32.mrb[0].mxu0
      %v879 = vadd.f32 0.0, %v878
      %v880 = vpop.f32.mrb[0].mxu0
      %881 = vmatprep.mubr.bf16.mxu0 0
      %882 = vmatmul.mubr.bf16.gmra.mrb[0].mxu0 %v822
      %v883 = vpop.f32.mrb[0].mxu0
      %v884 = vadd.f32 0.0, %v883
      %v885 = vpop.f32.mrb[0].mxu0
      %v886 = vpop.f32.mrb[0].mxu0
      %v887 = vadd.f32 0.0, %v886
      %v888 = vpop.f32.mrb[0].mxu0
      %889 = vmatprep.mubr.bf16.mxu0 0
      %890 = vmatmul.mubr.bf16.gmra.mrb[0].mxu0 %v825
      %v891 = vpop.f32.mrb[0].mxu0
      %v892 = vadd.f32 0.0, %v891
      %v893 = vpop.f32.mrb[0].mxu0
      %v894 = vpop.f32.mrb[0].mxu0
      %v895 = vadd.f32 0.0, %v894
      %v896 = vpop.f32.mrb[0].mxu0
      %897 = vmatprep.mubr.bf16.mxu0 0
      %898 = vmatmul.mubr.bf16.gmra.mrb[0].mxu0 %v828
      %v899 = vpop.f32.mrb[0].mxu0
      %v900 = vadd.f32 0.0, %v899
      %v901 = vpop.f32.mrb[0].mxu0
      %v902 = vpop.f32.mrb[0].mxu0
      %v903 = vpop.f32.mrb[0].mxu0
      %904 = vdwg.mxu0
      %v905 = vsel %vm469, %v868, -inf
      %906 = vmax.xlane.f32.xlu0 %v905
      %v907 = vpop.xlane.xlu0 %906
      %v908 = vsel %vm469, %v871, -inf
      %909 = vmax.xlane.f32.xlu0 %v908
      %v910 = vpop.xlane.xlu0 %909
      %v911 = vsel %vm469, %v876, -inf
      %912 = vmax.xlane.f32.xlu0 %v911
      %v913 = vpop.xlane.xlu0 %912
      %v914 = vsel %vm469, %v879, -inf
      %915 = vmax.xlane.f32.xlu0 %v914
      %v916 = vpop.xlane.xlu0 %915
      %v917 = vsel %vm469, %v884, -inf
      %918 = vmax.xlane.f32.xlu0 %v917
      %v919 = vpop.xlane.xlu0 %918
      %v920 = vsel %vm469, %v887, -inf
      %921 = vmax.xlane.f32.xlu0 %v920
      %v922 = vpop.xlane.xlu0 %921
      %v923 = vsel %vm469, %v892, -inf
      %924 = vmax.xlane.f32.xlu0 %v923
      %v925 = vpop.xlane.xlu0 %924
      %v926 = vsel %vm469, %v895, -inf
      %927 = vmax.xlane.f32.xlu0 %v926
      %v928 = vpop.xlane.xlu0 %927
      %v929 = vsel %vm494, %v900, -inf
      %930 = vmax.xlane.f32.xlu0 %v929
      %v931 = vpop.xlane.xlu0 %930
      %v932 = vsub.f32 %v868, %v907
      %v933 = vsub.f32 %v871, %v910
      %v934 = vsub.f32 %v876, %v913
      %v935 = vsub.f32 %v879, %v916
      %v936 = vsub.f32 %v884, %v919
      %v937 = vsub.f32 %v887, %v922
      %v938 = vsub.f32 %v892, %v925
      %v939 = vsub.f32 %v895, %v928
      %v940 = vsub.f32 %v900, %v931
      %v941 = vmul.f32 %v932, 1.442695
      %v942 = vpow.pop %v941
      %v943 = vmul.f32 %v933, 1.442695
      %v944 = vpow.pop %v943
      %v945 = vmul.f32 %v934, 1.442695
      %v946 = vpow.pop %v945
      %v947 = vmul.f32 %v935, 1.442695
      %v948 = vpow.pop %v947
      %v949 = vmul.f32 %v936, 1.442695
      %v950 = vpow.pop %v949
      %v951 = vmul.f32 %v937, 1.442695
      %v952 = vpow.pop %v951
      %v953 = vmul.f32 %v938, 1.442695
      %v954 = vpow.pop %v953
      %v955 = vmul.f32 %v939, 1.442695
      %v956 = vpow.pop %v955
      %v957 = vmul.f32 %v940, 1.442695
      %v958 = vpow.pop %v957
      %v959 = vsel %vm469, %v942, 0.0
      %960 = vadd.xlane.f32.xlu0 %v959
      %v961 = vpop.xlane.xlu0 %960
      %v962 = vsel %vm469, %v944, 0.0
      %963 = vadd.xlane.f32.xlu0 %v962
      %v964 = vpop.xlane.xlu0 %963
      %v965 = vsel %vm469, %v946, 0.0
      %966 = vadd.xlane.f32.xlu0 %v965
      %v967 = vpop.xlane.xlu0 %966
      %v968 = vsel %vm469, %v948, 0.0
      %969 = vadd.xlane.f32.xlu0 %v968
      %v970 = vpop.xlane.xlu0 %969
      %v971 = vsel %vm469, %v950, 0.0
      %972 = vadd.xlane.f32.xlu0 %v971
      %v973 = vpop.xlane.xlu0 %972
      %v974 = vsel %vm469, %v952, 0.0
      %975 = vadd.xlane.f32.xlu0 %v974
      %v976 = vpop.xlane.xlu0 %975
      %v977 = vsel %vm469, %v954, 0.0
      %978 = vadd.xlane.f32.xlu0 %v977
      %v979 = vpop.xlane.xlu0 %978
      %v980 = vsel %vm469, %v956, 0.0
      %981 = vadd.xlane.f32.xlu0 %v980
      %v982 = vpop.xlane.xlu0 %981
      %v983 = vsel %vm494, %v958, 0.0
      %984 = vadd.xlane.f32.xlu0 %v983
      %v985 = vpop.xlane.xlu0 %984
      %v986 = vrcp.pop %v961
      %v987 = vrcp.pop %v964
      %v988 = vrcp.pop %v967
      %v989 = vrcp.pop %v970
      %v990 = vrcp.pop %v973
      %v991 = vrcp.pop %v976
      %v992 = vrcp.pop %v979
      %v993 = vrcp.pop %v982
      %v994 = vrcp.pop %v985
      %v995 = vmul.f32 %v942, %v986
      %v996 = vmul.f32 %v944, %v987
      %v997 = vmul.f32 %v946, %v988
      %v998 = vmul.f32 %v948, %v989
      %v999 = vmul.f32 %v950, %v990
      %v1000 = vmul.f32 %v952, %v991
      %v1001 = vmul.f32 %v954, %v992
      %v1002 = vmul.f32 %v956, %v993
      %v1003 = vmul.f32 %v958, %v994
      %v1004 = vpack.c.bf16 %v996, %v995
      %v1005 = vpack.c.bf16 %v998, %v997
      %v1006 = vpack.c.bf16 %v1000, %v999
      %v1007 = vpack.c.bf16 %v1002, %v1001
      %v1008 = vpack.c.bf16 %v1003, %v1003
      %v1010 = vsel %vm469, %v1004, 0
      %v1013 = vsel %vm469, %v1005, 0
      %v1016 = vsel %vm469, %v1006, 0
      %v1019 = vsel %vm469, %v1007, 0
      %v1022 = vsel %vm469, %v1008, 0
      %v1025 = vand.u32 %v814, %v592
      %1027 = vmatprep.subr.bf16.mxu0 0
      %1028 = vmatpush1.bf16.msra.mxu0 %v810
      %1029 = vmatprep.subr.bf16.mxu0 0
      %1030 = vmatpush1.bf16.msra.mxu0 %v811
      %1031 = vmatprep.subr.bf16.mxu0 0
      %1032 = vmatpush1.bf16.msra.mxu0 %v812
      %1033 = vmatprep.subr.bf16.mxu0 0
      %1034 = vmatpush1.bf16.msra.mxu0 %v813
      %1035 = vmatprep.subr.bf16.mxu0 0
      %1036 = vmatpush1.bf16.msra.mxu0 %v1025
      %1037 = vmatprep.subr.bf16.mxu0 0
      %1038 = vmatpush1.bf16.msra.mxu0 0
      %1039 = vmatprep.subr.bf16.mxu0 0
      %1040 = vmatpush1.bf16.msra.mxu0 0
      %1041 = vmatprep.subr.bf16.mxu0 0
      %1042 = vmatpush1.bf16.msra.mxu0 0
      %1043 = vmatprep.subr.bf16.mxu0 0
      %1044 = vmatpush1.bf16.msra.mxu0 0
      %1045 = vmatprep.subr.bf16.mxu0 0
      %1046 = vmatpush1.bf16.msra.mxu0 0
      %1047 = vmatprep.subr.bf16.mxu0 0
      %1048 = vmatpush1.bf16.msra.mxu0 0
      %1049 = vmatprep.subr.bf16.mxu0 0
      %1050 = vmatpush1.bf16.msra.mxu0 0
      %1051 = vmatprep.subr.bf16.mxu0 0
      %1052 = vmatpush1.bf16.msra.mxu0 0
      %1053 = vmatprep.subr.bf16.mxu0 0
      %1054 = vmatpush1.bf16.msra.mxu0 0
      %1055 = vmatprep.subr.bf16.mxu0 0
      %1056 = vmatpush1.bf16.msra.mxu0 0
      %1057 = vmatprep.subr.bf16.mxu0 0
      %1058 = vmatpush1.bf16.msra.mxu0 0
      %1059 = vmatprep.mubr.bf16.mxu0 0
      %1060 = vmatmul.mubr.bf16.gmra.mrb[0].mxu0 %v1010
      %v1061 = vpop.f32.mrb[0].mxu0
      %v1062 = vadd.f32 0.0, %v1061
      %v1063 = vpop.f32.mrb[0].mxu0
      %v1064 = vpop.f32.mrb[0].mxu0
      %v1065 = vadd.f32 0.0, %v1064
      %v1066 = vpop.f32.mrb[0].mxu0
      %1067 = vmatprep.mubr.bf16.mxu0 0
      %1068 = vmatmul.mubr.bf16.gmra.mrb[0].mxu0 %v1013
      %v1069 = vpop.f32.mrb[0].mxu0
      %v1070 = vadd.f32 0.0, %v1069
      %v1071 = vpop.f32.mrb[0].mxu0
      %v1072 = vpop.f32.mrb[0].mxu0
      %v1073 = vadd.f32 0.0, %v1072
      %v1074 = vpop.f32.mrb[0].mxu0
      %1075 = vmatprep.mubr.bf16.mxu0 0
      %1076 = vmatmul.mubr.bf16.gmra.mrb[0].mxu0 %v1016
      %v1077 = vpop.f32.mrb[0].mxu0
      %v1078 = vadd.f32 0.0, %v1077
      %v1079 = vpop.f32.mrb[0].mxu0
      %v1080 = vpop.f32.mrb[0].mxu0
      %v1081 = vadd.f32 0.0, %v1080
      %v1082 = vpop.f32.mrb[0].mxu0
      %1083 = vmatprep.mubr.bf16.mxu0 0
      %1084 = vmatmul.mubr.bf16.gmra.mrb[0].mxu0 %v1019
      %v1085 = vpop.f32.mrb[0].mxu0
      %v1086 = vadd.f32 0.0, %v1085
      %v1087 = vpop.f32.mrb[0].mxu0
      %v1088 = vpop.f32.mrb[0].mxu0
      %v1089 = vadd.f32 0.0, %v1088
      %v1090 = vpop.f32.mrb[0].mxu0
      %1091 = vmatprep.mubr.bf16.mxu0 0
      %1092 = vmatmul.mubr.bf16.gmra.mrb[0].mxu0 %v1022
      %v1093 = vpop.f32.mrb[0].mxu0
      %v1094 = vadd.f32 0.0, %v1093
      %v1095 = vpop.f32.mrb[0].mxu0
      %v1096 = vpop.f32.mrb[0].mxu0
      %v1097 = vpop.f32.mrb[0].mxu0
      %1098 = vdwg.mxu0
      %v1099 = vpack.c.bf16 %v1065, %v1062
      %v1100 = vpack.c.bf16 %v1073, %v1070
      %v1101 = vpack.c.bf16 %v1081, %v1078
      %v1102 = vpack.c.bf16 %v1089, %v1086
      %v1103 = vpack.c.bf16 %v1094, %v1094
      %s1104 = scalar_lea.vmem %s4, 4
      %v1105 = vld [vmem:[%s1104] sm:$0xf]
      %v1107 = vsel %vm377, %v1099, 0
      %v1110 = vsel %vm377, %v1100, 0
      %v1113 = vsel %vm377, %v1101, 0
      %v1116 = vsel %vm377, %v1102, 0
      %v1119 = vsel %vm377, %v1103, 0
      %v1122 = vsel %vm393, %v1105, 0
      %1124 = vmatprep.subr.bf16.mxu0 0
      %1125 = vmatpush1.bf16.msra.mxu0 %v1122
      %1126 = vmatprep.subr.bf16.mxu0 0
      %1127 = vmatpush1.bf16.msra.mxu0 0
      %1128 = vmatprep.subr.bf16.mxu0 0
      %1129 = vmatpush1.bf16.msra.mxu0 0
      %1130 = vmatprep.subr.bf16.mxu0 0
      %1131 = vmatpush1.bf16.msra.mxu0 0
      %1132 = vmatprep.subr.bf16.mxu0 0
      %1133 = vmatpush1.bf16.msra.mxu0 0
      %1134 = vmatprep.subr.bf16.mxu0 0
      %1135 = vmatpush1.bf16.msra.mxu0 0
      %1136 = vmatprep.subr.bf16.mxu0 0
      %1137 = vmatpush1.bf16.msra.mxu0 0
      %1138 = vmatprep.subr.bf16.mxu0 0
      %1139 = vmatpush1.bf16.msra.mxu0 0
      %1140 = vmatprep.subr.bf16.mxu0 0
      %1141 = vmatpush1.bf16.msra.mxu0 0
      %1142 = vmatprep.subr.bf16.mxu0 0
      %1143 = vmatpush1.bf16.msra.mxu0 0
      %1144 = vmatprep.subr.bf16.mxu0 0
      %1145 = vmatpush1.bf16.msra.mxu0 0
      %1146 = vmatprep.subr.bf16.mxu0 0
      %1147 = vmatpush1.bf16.msra.mxu0 0
      %1148 = vmatprep.subr.bf16.mxu0 0
      %1149 = vmatpush1.bf16.msra.mxu0 0
      %1150 = vmatprep.subr.bf16.mxu0 0
      %1151 = vmatpush1.bf16.msra.mxu0 0
      %1152 = vmatprep.subr.bf16.mxu0 0
      %1153 = vmatpush1.bf16.msra.mxu0 0
      %1154 = vmatprep.subr.bf16.mxu0 0
      %1155 = vmatpush1.bf16.msra.mxu0 0
      %1156 = vmatprep.mubr.bf16.mxu0 0
      %1157 = vmatmul.mubr.bf16.gmra.mrb[0].mxu0 %v1107
      %v1158 = vpop.f32.mrb[0].mxu0
      %v1159 = vadd.f32 0.0, %v1158
      %v1160 = vpop.f32.mrb[0].mxu0
      %v1161 = vpop.f32.mrb[0].mxu0
      %v1162 = vadd.f32 0.0, %v1161
      %v1163 = vpop.f32.mrb[0].mxu0
      %1164 = vmatprep.mubr.bf16.mxu0 0
      %1165 = vmatmul.mubr.bf16.gmra.mrb[0].mxu0 %v1110
      %v1166 = vpop.f32.mrb[0].mxu0
      %v1167 = vadd.f32 0.0, %v1166
      %v1168 = vpop.f32.mrb[0].mxu0
      %v1169 = vpop.f32.mrb[0].mxu0
      %v1170 = vadd.f32 0.0, %v1169
      %v1171 = vpop.f32.mrb[0].mxu0
      %1172 = vmatprep.mubr.bf16.mxu0 0
      %1173 = vmatmul.mubr.bf16.gmra.mrb[0].mxu0 %v1113
      %v1174 = vpop.f32.mrb[0].mxu0
      %v1175 = vadd.f32 0.0, %v1174
      %v1176 = vpop.f32.mrb[0].mxu0
      %v1177 = vpop.f32.mrb[0].mxu0
      %v1178 = vadd.f32 0.0, %v1177
      %v1179 = vpop.f32.mrb[0].mxu0
      %1180 = vmatprep.mubr.bf16.mxu0 0
      %1181 = vmatmul.mubr.bf16.gmra.mrb[0].mxu0 %v1116
      %v1182 = vpop.f32.mrb[0].mxu0
      %v1183 = vadd.f32 0.0, %v1182
      %v1184 = vpop.f32.mrb[0].mxu0
      %v1185 = vpop.f32.mrb[0].mxu0
      %v1186 = vadd.f32 0.0, %v1185
      %v1187 = vpop.f32.mrb[0].mxu0
      %1188 = vmatprep.mubr.bf16.mxu0 0
      %1189 = vmatmul.mubr.bf16.gmra.mrb[0].mxu0 %v1119
      %v1190 = vpop.f32.mrb[0].mxu0
      %v1191 = vadd.f32 0.0, %v1190
      %v1192 = vpop.f32.mrb[0].mxu0
      %v1193 = vpop.f32.mrb[0].mxu0
      %v1194 = vpop.f32.mrb[0].mxu0
      %1195 = vdwg.mxu0
      %v1196 = vadd.f32 %v764, %v1159
      %v1197 = vadd.f32 %v765, %v1162
      %v1198 = vadd.f32 %v766, %v1167
      %v1199 = vadd.f32 %v767, %v1170
      %v1200 = vadd.f32 %v768, %v1175
      %v1201 = vadd.f32 %v769, %v1178
      %v1202 = vadd.f32 %v770, %v1183
      %v1203 = vadd.f32 %v771, %v1186
      %v1204 = vadd.f32 %v772, %v1191
      %s1205 = scalar_lea.vmem %s291, 144
      %v1206 = vld [vmem:[%s1205] sm:$0xff]
      %v1207 = vld [vmem:[%s1205 + $0x8] sm:$0xff]
      %v1208 = vld [vmem:[%s1205 + $0x10] sm:$0xff]
      %v1209 = vld [vmem:[%s1205 + $0x18] sm:$0xff]
      %v1210 = vld [vmem:[%s1205 + $0x20] sm:$0xff]
      %v1211 = vld [vmem:[%s1205 + $0x28] sm:$0xff]
      %v1212 = vld [vmem:[%s1205 + $0x30] sm:$0xff]
      %v1213 = vld [vmem:[%s1205 + $0x38] sm:$0xff]
      %v1214 = vld [vmem:[%s1205 + $0x40] sm:$0x1]
      %v1215 = vmul.f32 %v1206, 0.35355338
      %v1216 = vmul.f32 %v1207, 0.35355338
      %v1217 = vmul.f32 %v1208, 0.35355338
      %v1218 = vmul.f32 %v1209, 0.35355338
      %v1219 = vmul.f32 %v1210, 0.35355338
      %v1220 = vmul.f32 %v1211, 0.35355338
      %v1221 = vmul.f32 %v1212, 0.35355338
      %v1222 = vmul.f32 %v1213, 0.35355338
      %v1223 = vmul.f32 %v1214, 0.35355338
      %v1224 = vpack.c.bf16 %v1216, %v1215
      %v1225 = vpack.c.bf16 %v1218, %v1217
      %v1226 = vpack.c.bf16 %v1220, %v1219
      %v1227 = vpack.c.bf16 %v1222, %v1221
      %v1228 = vpack.c.bf16 %v1223, %v1223
      %s1229 = scalar_lea.vmem %s296, 16
      %v1230 = vld [vmem:[%s1229] sm:$0xff]
      %v1231 = vpack.c.bf16 %v1230, %v1230
      %s1232 = scalar_lea.vmem %s301, 144
      %v1233 = vld [vmem:[%s1232] sm:$0xff]
      %v1234 = vld [vmem:[%s1232 + $0x8] sm:$0xff]
      %v1235 = vld [vmem:[%s1232 + $0x10] sm:$0xff]
      %v1236 = vld [vmem:[%s1232 + $0x18] sm:$0xff]
      %v1237 = vld [vmem:[%s1232 + $0x20] sm:$0xff]
      %v1238 = vld [vmem:[%s1232 + $0x28] sm:$0xff]
      %v1239 = vld [vmem:[%s1232 + $0x30] sm:$0xff]
      %v1240 = vld [vmem:[%s1232 + $0x38] sm:$0xff]
      %v1241 = vld [vmem:[%s1232 + $0x40] sm:$0x1]
      %v1242 = vpack.c.bf16 %v1234, %v1233
      %v1243 = vpack.c.bf16 %v1236, %v1235
      %v1244 = vpack.c.bf16 %v1238, %v1237
      %v1245 = vpack.c.bf16 %v1240, %v1239
      %v1246 = vpack.c.bf16 %v1241, %v1241
      %v1248 = vsel %vm377, %v1224, 0
      %v1251 = vsel %vm377, %v1225, 0
      %v1254 = vsel %vm377, %v1226, 0
      %v1257 = vsel %vm377, %v1227, 0
      %v1260 = vsel %vm377, %v1228, 0
      %v1263 = vsel %vm393, %v1231, 0
      %1265 = vmatprep.subr.bf16.mxu0 0
      %1266 = vmatpush1.bf16.msra.mxu0 %v1263
      %1267 = vmatprep.subr.bf16.mxu0 0
      %1268 = vmatpush1.bf16.msra.mxu0 0
      %1269 = vmatprep.subr.bf16.mxu0 0
      %1270 = vmatpush1.bf16.msra.mxu0 0
      %1271 = vmatprep.subr.bf16.mxu0 0
      %1272 = vmatpush1.bf16.msra.mxu0 0
      %1273 = vmatprep.subr.bf16.mxu0 0
      %1274 = vmatpush1.bf16.msra.mxu0 0
      %1275 = vmatprep.subr.bf16.mxu0 0
      %1276 = vmatpush1.bf16.msra.mxu0 0
      %1277 = vmatprep.subr.bf16.mxu0 0
      %1278 = vmatpush1.bf16.msra.mxu0 0
      %1279 = vmatprep.subr.bf16.mxu0 0
      %1280 = vmatpush1.bf16.msra.mxu0 0
      %1281 = vmatprep.subr.bf16.mxu0 0
      %1282 = vmatpush1.bf16.msra.mxu0 0
      %1283 = vmatprep.subr.bf16.mxu0 0
      %1284 = vmatpush1.bf16.msra.mxu0 0
      %1285 = vmatprep.subr.bf16.mxu0 0
      %1286 = vmatpush1.bf16.msra.mxu0 0
      %1287 = vmatprep.subr.bf16.mxu0 0
      %1288 = vmatpush1.bf16.msra.mxu0 0
      %1289 = vmatprep.subr.bf16.mxu0 0
      %1290 = vmatpush1.bf16.msra.mxu0 0
      %1291 = vmatprep.subr.bf16.mxu0 0
      %1292 = vmatpush1.bf16.msra.mxu0 0
      %1293 = vmatprep.subr.bf16.mxu0 0
      %1294 = vmatpush1.bf16.msra.mxu0 0
      %1295 = vmatprep.subr.bf16.mxu0 0
      %1296 = vmatpush1.bf16.msra.mxu0 0
      %1297 = vmatprep.mubr.bf16.mxu0 0
      %1298 = vmatmul.mubr.bf16.gmra.mrb[0].mxu0 %v1248
      %v1299 = vpop.f32.mrb[0].mxu0
      %v1300 = vadd.f32 0.0, %v1299
      %v1301 = vpop.f32.mrb[0].mxu0
      %v1302 = vpop.f32.mrb[0].mxu0
      %v1303 = vadd.f32 0.0, %v1302
      %v1304 = vpop.f32.mrb[0].mxu0
      %1305 = vmatprep.mubr.bf16.mxu0 0
      %1306 = vmatmul.mubr.bf16.gmra.mrb[0].mxu0 %v1251
      %v1307 = vpop.f32.mrb[0].mxu0
      %v1308 = vadd.f32 0.0, %v1307
      %v1309 = vpop.f32.mrb[0].mxu0
      %v1310 = vpop.f32.mrb[0].mxu0
      %v1311 = vadd.f32 0.0, %v1310
      %v1312 = vpop.f32.mrb[0].mxu0
      %1313 = vmatprep.mubr.bf16.mxu0 0
      %1314 = vmatmul.mubr.bf16.gmra.mrb[0].mxu0 %v1254
      %v1315 = vpop.f32.mrb[0].mxu0
      %v1316 = vadd.f32 0.0, %v1315
      %v1317 = vpop.f32.mrb[0].mxu0
      %v1318 = vpop.f32.mrb[0].mxu0
      %v1319 = vadd.f32 0.0, %v1318
      %v1320 = vpop.f32.mrb[0].mxu0
      %1321 = vmatprep.mubr.bf16.mxu0 0
      %1322 = vmatmul.mubr.bf16.gmra.mrb[0].mxu0 %v1257
      %v1323 = vpop.f32.mrb[0].mxu0
      %v1324 = vadd.f32 0.0, %v1323
      %v1325 = vpop.f32.mrb[0].mxu0
      %v1326 = vpop.f32.mrb[0].mxu0
      %v1327 = vadd.f32 0.0, %v1326
      %v1328 = vpop.f32.mrb[0].mxu0
      %1329 = vmatprep.mubr.bf16.mxu0 0
      %1330 = vmatmul.mubr.bf16.gmra.mrb[0].mxu0 %v1260
      %v1331 = vpop.f32.mrb[0].mxu0
      %v1332 = vadd.f32 0.0, %v1331
      %v1333 = vpop.f32.mrb[0].mxu0
      %v1334 = vpop.f32.mrb[0].mxu0
      %v1335 = vpop.f32.mrb[0].mxu0
      %1336 = vdwg.mxu0
      %v1337 = vsel %vm469, %v1300, -inf
      %1338 = vmax.xlane.f32.xlu0 %v1337
      %v1339 = vpop.xlane.xlu0 %1338
      %v1340 = vsel %vm469, %v1303, -inf
      %1341 = vmax.xlane.f32.xlu0 %v1340
      %v1342 = vpop.xlane.xlu0 %1341
      %v1343 = vsel %vm469, %v1308, -inf
      %1344 = vmax.xlane.f32.xlu0 %v1343
      %v1345 = vpop.xlane.xlu0 %1344
      %v1346 = vsel %vm469, %v1311, -inf
      %1347 = vmax.xlane.f32.xlu0 %v1346
      %v1348 = vpop.xlane.xlu0 %1347
      %v1349 = vsel %vm469, %v1316, -inf
      %1350 = vmax.xlane.f32.xlu0 %v1349
      %v1351 = vpop.xlane.xlu0 %1350
      %v1352 = vsel %vm469, %v1319, -inf
      %1353 = vmax.xlane.f32.xlu0 %v1352
      %v1354 = vpop.xlane.xlu0 %1353
      %v1355 = vsel %vm469, %v1324, -inf
      %1356 = vmax.xlane.f32.xlu0 %v1355
      %v1357 = vpop.xlane.xlu0 %1356
      %v1358 = vsel %vm469, %v1327, -inf
      %1359 = vmax.xlane.f32.xlu0 %v1358
      %v1360 = vpop.xlane.xlu0 %1359
      %v1361 = vsel %vm494, %v1332, -inf
      %1362 = vmax.xlane.f32.xlu0 %v1361
      %v1363 = vpop.xlane.xlu0 %1362
      %v1364 = vsub.f32 %v1300, %v1339
      %v1365 = vsub.f32 %v1303, %v1342
      %v1366 = vsub.f32 %v1308, %v1345
      %v1367 = vsub.f32 %v1311, %v1348
      %v1368 = vsub.f32 %v1316, %v1351
      %v1369 = vsub.f32 %v1319, %v1354
      %v1370 = vsub.f32 %v1324, %v1357
      %v1371 = vsub.f32 %v1327, %v1360
      %v1372 = vsub.f32 %v1332, %v1363
      %v1373 = vmul.f32 %v1364, 1.442695
      %v1374 = vpow.pop %v1373
      %v1375 = vmul.f32 %v1365, 1.442695
      %v1376 = vpow.pop %v1375
      %v1377 = vmul.f32 %v1366, 1.442695
      %v1378 = vpow.pop %v1377
      %v1379 = vmul.f32 %v1367, 1.442695
      %v1380 = vpow.pop %v1379
      %v1381 = vmul.f32 %v1368, 1.442695
      %v1382 = vpow.pop %v1381
      %v1383 = vmul.f32 %v1369, 1.442695
      %v1384 = vpow.pop %v1383
      %v1385 = vmul.f32 %v1370, 1.442695
      %v1386 = vpow.pop %v1385
      %v1387 = vmul.f32 %v1371, 1.442695
      %v1388 = vpow.pop %v1387
      %v1389 = vmul.f32 %v1372, 1.442695
      %v1390 = vpow.pop %v1389
      %v1391 = vsel %vm469, %v1374, 0.0
      %1392 = vadd.xlane.f32.xlu0 %v1391
      %v1393 = vpop.xlane.xlu0 %1392
      %v1394 = vsel %vm469, %v1376, 0.0
      %1395 = vadd.xlane.f32.xlu0 %v1394
      %v1396 = vpop.xlane.xlu0 %1395
      %v1397 = vsel %vm469, %v1378, 0.0
      %1398 = vadd.xlane.f32.xlu0 %v1397
      %v1399 = vpop.xlane.xlu0 %1398
      %v1400 = vsel %vm469, %v1380, 0.0
      %1401 = vadd.xlane.f32.xlu0 %v1400
      %v1402 = vpop.xlane.xlu0 %1401
      %v1403 = vsel %vm469, %v1382, 0.0
      %1404 = vadd.xlane.f32.xlu0 %v1403
      %v1405 = vpop.xlane.xlu0 %1404
      %v1406 = vsel %vm469, %v1384, 0.0
      %1407 = vadd.xlane.f32.xlu0 %v1406
      %v1408 = vpop.xlane.xlu0 %1407
      %v1409 = vsel %vm469, %v1386, 0.0
      %1410 = vadd.xlane.f32.xlu0 %v1409
      %v1411 = vpop.xlane.xlu0 %1410
      %v1412 = vsel %vm469, %v1388, 0.0
      %1413 = vadd.xlane.f32.xlu0 %v1412
      %v1414 = vpop.xlane.xlu0 %1413
      %v1415 = vsel %vm494, %v1390, 0.0
      %1416 = vadd.xlane.f32.xlu0 %v1415
      %v1417 = vpop.xlane.xlu0 %1416
      %v1418 = vrcp.pop %v1393
      %v1419 = vrcp.pop %v1396
      %v1420 = vrcp.pop %v1399
      %v1421 = vrcp.pop %v1402
      %v1422 = vrcp.pop %v1405
      %v1423 = vrcp.pop %v1408
      %v1424 = vrcp.pop %v1411
      %v1425 = vrcp.pop %v1414
      %v1426 = vrcp.pop %v1417
      %v1427 = vmul.f32 %v1374, %v1418
      %v1428 = vmul.f32 %v1376, %v1419
      %v1429 = vmul.f32 %v1378, %v1420
      %v1430 = vmul.f32 %v1380, %v1421
      %v1431 = vmul.f32 %v1382, %v1422
      %v1432 = vmul.f32 %v1384, %v1423
      %v1433 = vmul.f32 %v1386, %v1424
      %v1434 = vmul.f32 %v1388, %v1425
      %v1435 = vmul.f32 %v1390, %v1426
      %v1436 = vpack.c.bf16 %v1428, %v1427
      %v1437 = vpack.c.bf16 %v1430, %v1429
      %v1438 = vpack.c.bf16 %v1432, %v1431
      %v1439 = vpack.c.bf16 %v1434, %v1433
      %v1440 = vpack.c.bf16 %v1435, %v1435
      %v1442 = vsel %vm469, %v1436, 0
      %v1445 = vsel %vm469, %v1437, 0
      %v1448 = vsel %vm469, %v1438, 0
      %v1451 = vsel %vm469, %v1439, 0
      %v1454 = vsel %vm469, %v1440, 0
      %v1457 = vand.u32 %v1246, %v592
      %1459 = vmatprep.subr.bf16.mxu0 0
      %1460 = vmatpush1.bf16.msra.mxu0 %v1242
      %1461 = vmatprep.subr.bf16.mxu0 0
      %1462 = vmatpush1.bf16.msra.mxu0 %v1243
      %1463 = vmatprep.subr.bf16.mxu0 0
      %1464 = vmatpush1.bf16.msra.mxu0 %v1244
      %1465 = vmatprep.subr.bf16.mxu0 0
      %1466 = vmatpush1.bf16.msra.mxu0 %v1245
      %1467 = vmatprep.subr.bf16.mxu0 0
      %1468 = vmatpush1.bf16.msra.mxu0 %v1457
      %1469 = vmatprep.subr.bf16.mxu0 0
      %1470 = vmatpush1.bf16.msra.mxu0 0
      %1471 = vmatprep.subr.bf16.mxu0 0
      %1472 = vmatpush1.bf16.msra.mxu0 0
      %1473 = vmatprep.subr.bf16.mxu0 0
      %1474 = vmatpush1.bf16.msra.mxu0 0
      %1475 = vmatprep.subr.bf16.mxu0 0
      %1476 = vmatpush1.bf16.msra.mxu0 0
      %1477 = vmatprep.subr.bf16.mxu0 0
      %1478 = vmatpush1.bf16.msra.mxu0 0
      %1479 = vmatprep.subr.bf16.mxu0 0
      %1480 = vmatpush1.bf16.msra.mxu0 0
      %1481 = vmatprep.subr.bf16.mxu0 0
      %1482 = vmatpush1.bf16.msra.mxu0 0
      %1483 = vmatprep.subr.bf16.mxu0 0
      %1484 = vmatpush1.bf16.msra.mxu0 0
      %1485 = vmatprep.subr.bf16.mxu0 0
      %1486 = vmatpush1.bf16.msra.mxu0 0
      %1487 = vmatprep.subr.bf16.mxu0 0
      %1488 = vmatpush1.bf16.msra.mxu0 0
      %1489 = vmatprep.subr.bf16.mxu0 0
      %1490 = vmatpush1.bf16.msra.mxu0 0
      %1491 = vmatprep.mubr.bf16.mxu0 0
      %1492 = vmatmul.mubr.bf16.gmra.mrb[0].mxu0 %v1442
      %v1493 = vpop.f32.mrb[0].mxu0
      %v1494 = vadd.f32 0.0, %v1493
      %v1495 = vpop.f32.mrb[0].mxu0
      %v1496 = vpop.f32.mrb[0].mxu0
      %v1497 = vadd.f32 0.0, %v1496
      %v1498 = vpop.f32.mrb[0].mxu0
      %1499 = vmatprep.mubr.bf16.mxu0 0
      %1500 = vmatmul.mubr.bf16.gmra.mrb[0].mxu0 %v1445
      %v1501 = vpop.f32.mrb[0].mxu0
      %v1502 = vadd.f32 0.0, %v1501
      %v1503 = vpop.f32.mrb[0].mxu0
      %v1504 = vpop.f32.mrb[0].mxu0
      %v1505 = vadd.f32 0.0, %v1504
      %v1506 = vpop.f32.mrb[0].mxu0
      %1507 = vmatprep.mubr.bf16.mxu0 0
      %1508 = vmatmul.mubr.bf16.gmra.mrb[0].mxu0 %v1448
      %v1509 = vpop.f32.mrb[0].mxu0
      %v1510 = vadd.f32 0.0, %v1509
      %v1511 = vpop.f32.mrb[0].mxu0
      %v1512 = vpop.f32.mrb[0].mxu0
      %v1513 = vadd.f32 0.0, %v1512
      %v1514 = vpop.f32.mrb[0].mxu0
      %1515 = vmatprep.mubr.bf16.mxu0 0
      %1516 = vmatmul.mubr.bf16.gmra.mrb[0].mxu0 %v1451
      %v1517 = vpop.f32.mrb[0].mxu0
      %v1518 = vadd.f32 0.0, %v1517
      %v1519 = vpop.f32.mrb[0].mxu0
      %v1520 = vpop.f32.mrb[0].mxu0
      %v1521 = vadd.f32 0.0, %v1520
      %v1522 = vpop.f32.mrb[0].mxu0
      %1523 = vmatprep.mubr.bf16.mxu0 0
      %1524 = vmatmul.mubr.bf16.gmra.mrb[0].mxu0 %v1454
      %v1525 = vpop.f32.mrb[0].mxu0
      %v1526 = vadd.f32 0.0, %v1525
      %v1527 = vpop.f32.mrb[0].mxu0
      %v1528 = vpop.f32.mrb[0].mxu0
      %v1529 = vpop.f32.mrb[0].mxu0
      %1530 = vdwg.mxu0
      %v1531 = vpack.c.bf16 %v1497, %v1494
      %v1532 = vpack.c.bf16 %v1505, %v1502
      %v1533 = vpack.c.bf16 %v1513, %v1510
      %v1534 = vpack.c.bf16 %v1521, %v1518
      %v1535 = vpack.c.bf16 %v1526, %v1526
      %s1536 = scalar_lea.vmem %s4, 8
      %v1537 = vld [vmem:[%s1536] sm:$0xf]
      %v1539 = vsel %vm377, %v1531, 0
      %v1542 = vsel %vm377, %v1532, 0
      %v1545 = vsel %vm377, %v1533, 0
      %v1548 = vsel %vm377, %v1534, 0
      %v1551 = vsel %vm377, %v1535, 0
      %v1554 = vsel %vm393, %v1537, 0
      %1556 = vmatprep.subr.bf16.mxu0 0
      %1557 = vmatpush1.bf16.msra.mxu0 %v1554
      %1558 = vmatprep.subr.bf16.mxu0 0
      %1559 = vmatpush1.bf16.msra.mxu0 0
      %1560 = vmatprep.subr.bf16.mxu0 0
      %1561 = vmatpush1.bf16.msra.mxu0 0
      %1562 = vmatprep.subr.bf16.mxu0 0
      %1563 = vmatpush1.bf16.msra.mxu0 0
      %1564 = vmatprep.subr.bf16.mxu0 0
      %1565 = vmatpush1.bf16.msra.mxu0 0
      %1566 = vmatprep.subr.bf16.mxu0 0
      %1567 = vmatpush1.bf16.msra.mxu0 0
      %1568 = vmatprep.subr.bf16.mxu0 0
      %1569 = vmatpush1.bf16.msra.mxu0 0
      %1570 = vmatprep.subr.bf16.mxu0 0
      %1571 = vmatpush1.bf16.msra.mxu0 0
      %1572 = vmatprep.subr.bf16.mxu0 0
      %1573 = vmatpush1.bf16.msra.mxu0 0
      %1574 = vmatprep.subr.bf16.mxu0 0
      %1575 = vmatpush1.bf16.msra.mxu0 0
      %1576 = vmatprep.subr.bf16.mxu0 0
      %1577 = vmatpush1.bf16.msra.mxu0 0
      %1578 = vmatprep.subr.bf16.mxu0 0
      %1579 = vmatpush1.bf16.msra.mxu0 0
      %1580 = vmatprep.subr.bf16.mxu0 0
      %1581 = vmatpush1.bf16.msra.mxu0 0
      %1582 = vmatprep.subr.bf16.mxu0 0
      %1583 = vmatpush1.bf16.msra.mxu0 0
      %1584 = vmatprep.subr.bf16.mxu0 0
      %1585 = vmatpush1.bf16.msra.mxu0 0
      %1586 = vmatprep.subr.bf16.mxu0 0
      %1587 = vmatpush1.bf16.msra.mxu0 0
      %1588 = vmatprep.mubr.bf16.mxu0 0
      %1589 = vmatmul.mubr.bf16.gmra.mrb[0].mxu0 %v1539
      %v1590 = vpop.f32.mrb[0].mxu0
      %v1591 = vadd.f32 0.0, %v1590
      %v1592 = vpop.f32.mrb[0].mxu0
      %v1593 = vpop.f32.mrb[0].mxu0
      %v1594 = vadd.f32 0.0, %v1593
      %v1595 = vpop.f32.mrb[0].mxu0
      %1596 = vmatprep.mubr.bf16.mxu0 0
      %1597 = vmatmul.mubr.bf16.gmra.mrb[0].mxu0 %v1542
      %v1598 = vpop.f32.mrb[0].mxu0
      %v1599 = vadd.f32 0.0, %v1598
      %v1600 = vpop.f32.mrb[0].mxu0
      %v1601 = vpop.f32.mrb[0].mxu0
      %v1602 = vadd.f32 0.0, %v1601
      %v1603 = vpop.f32.mrb[0].mxu0
      %1604 = vmatprep.mubr.bf16.mxu0 0
      %1605 = vmatmul.mubr.bf16.gmra.mrb[0].mxu0 %v1545
      %v1606 = vpop.f32.mrb[0].mxu0
      %v1607 = vadd.f32 0.0, %v1606
      %v1608 = vpop.f32.mrb[0].mxu0
      %v1609 = vpop.f32.mrb[0].mxu0
      %v1610 = vadd.f32 0.0, %v1609
      %v1611 = vpop.f32.mrb[0].mxu0
      %1612 = vmatprep.mubr.bf16.mxu0 0
      %1613 = vmatmul.mubr.bf16.gmra.mrb[0].mxu0 %v1548
      %v1614 = vpop.f32.mrb[0].mxu0
      %v1615 = vadd.f32 0.0, %v1614
      %v1616 = vpop.f32.mrb[0].mxu0
      %v1617 = vpop.f32.mrb[0].mxu0
      %v1618 = vadd.f32 0.0, %v1617
      %v1619 = vpop.f32.mrb[0].mxu0
      %1620 = vmatprep.mubr.bf16.mxu0 0
      %1621 = vmatmul.mubr.bf16.gmra.mrb[0].mxu0 %v1551
      %v1622 = vpop.f32.mrb[0].mxu0
      %v1623 = vadd.f32 0.0, %v1622
      %v1624 = vpop.f32.mrb[0].mxu0
      %v1625 = vpop.f32.mrb[0].mxu0
      %v1626 = vpop.f32.mrb[0].mxu0
      %1627 = vdwg.mxu0
      %v1628 = vadd.f32 %v1196, %v1591
      %v1629 = vadd.f32 %v1197, %v1594
      %v1630 = vadd.f32 %v1198, %v1599
      %v1631 = vadd.f32 %v1199, %v1602
      %v1632 = vadd.f32 %v1200, %v1607
      %v1633 = vadd.f32 %v1201, %v1610
      %v1634 = vadd.f32 %v1202, %v1615
      %v1635 = vadd.f32 %v1203, %v1618
      %v1636 = vadd.f32 %v1204, %v1623
      %s1637 = scalar_lea.vmem %s291, 216
      %v1638 = vld [vmem:[%s1637] sm:$0xff]
      %v1639 = vld [vmem:[%s1637 + $0x8] sm:$0xff]
      %v1640 = vld [vmem:[%s1637 + $0x10] sm:$0xff]
      %v1641 = vld [vmem:[%s1637 + $0x18] sm:$0xff]
      %v1642 = vld [vmem:[%s1637 + $0x20] sm:$0xff]
      %v1643 = vld [vmem:[%s1637 + $0x28] sm:$0xff]
      %v1644 = vld [vmem:[%s1637 + $0x30] sm:$0xff]
      %v1645 = vld [vmem:[%s1637 + $0x38] sm:$0xff]
      %v1646 = vld [vmem:[%s1637 + $0x40] sm:$0x1]
      %v1647 = vmul.f32 %v1638, 0.35355338
      %v1648 = vmul.f32 %v1639, 0.35355338
      %v1649 = vmul.f32 %v1640, 0.35355338
      %v1650 = vmul.f32 %v1641, 0.35355338
      %v1651 = vmul.f32 %v1642, 0.35355338
      %v1652 = vmul.f32 %v1643, 0.35355338
      %v1653 = vmul.f32 %v1644, 0.35355338
      %v1654 = vmul.f32 %v1645, 0.35355338
      %v1655 = vmul.f32 %v1646, 0.35355338
      %v1656 = vpack.c.bf16 %v1648, %v1647
      %v1657 = vpack.c.bf16 %v1650, %v1649
      %v1658 = vpack.c.bf16 %v1652, %v1651
      %v1659 = vpack.c.bf16 %v1654, %v1653
      %v1660 = vpack.c.bf16 %v1655, %v1655
      %s1661 = scalar_lea.vmem %s296, 24
      %v1662 = vld [vmem:[%s1661] sm:$0xff]
      %v1663 = vpack.c.bf16 %v1662, %v1662
      %s1664 = scalar_lea.vmem %s301, 216
      %v1665 = vld [vmem:[%s1664] sm:$0xff]
      %v1666 = vld [vmem:[%s1664 + $0x8] sm:$0xff]
      %v1667 = vld [vmem:[%s1664 + $0x10] sm:$0xff]
      %v1668 = vld [vmem:[%s1664 + $0x18] sm:$0xff]
      %v1669 = vld [vmem:[%s1664 + $0x20] sm:$0xff]
      %v1670 = vld [vmem:[%s1664 + $0x28] sm:$0xff]
      %v1671 = vld [vmem:[%s1664 + $0x30] sm:$0xff]
      %v1672 = vld [vmem:[%s1664 + $0x38] sm:$0xff]
      %v1673 = vld [vmem:[%s1664 + $0x40] sm:$0x1]
      %v1674 = vpack.c.bf16 %v1666, %v1665
      %v1675 = vpack.c.bf16 %v1668, %v1667
      %v1676 = vpack.c.bf16 %v1670, %v1669
      %v1677 = vpack.c.bf16 %v1672, %v1671
      %v1678 = vpack.c.bf16 %v1673, %v1673
      %v1680 = vsel %vm377, %v1656, 0
      %v1683 = vsel %vm377, %v1657, 0
      %v1686 = vsel %vm377, %v1658, 0
      %v1689 = vsel %vm377, %v1659, 0
      %v1692 = vsel %vm377, %v1660, 0
      %v1695 = vsel %vm393, %v1663, 0
      %1697 = vmatprep.subr.bf16.mxu0 0
      %1698 = vmatpush1.bf16.msra.mxu0 %v1695
      %1699 = vmatprep.subr.bf16.mxu0 0
      %1700 = vmatpush1.bf16.msra.mxu0 0
      %1701 = vmatprep.subr.bf16.mxu0 0
      %1702 = vmatpush1.bf16.msra.mxu0 0
      %1703 = vmatprep.subr.bf16.mxu0 0
      %1704 = vmatpush1.bf16.msra.mxu0 0
      %1705 = vmatprep.subr.bf16.mxu0 0
      %1706 = vmatpush1.bf16.msra.mxu0 0
      %1707 = vmatprep.subr.bf16.mxu0 0
      %1708 = vmatpush1.bf16.msra.mxu0 0
      %1709 = vmatprep.subr.bf16.mxu0 0
      %1710 = vmatpush1.bf16.msra.mxu0 0
      %1711 = vmatprep.subr.bf16.mxu0 0
      %1712 = vmatpush1.bf16.msra.mxu0 0
      %1713 = vmatprep.subr.bf16.mxu0 0
      %1714 = vmatpush1.bf16.msra.mxu0 0
      %1715 = vmatprep.subr.bf16.mxu0 0
      %1716 = vmatpush1.bf16.msra.mxu0 0
      %1717 = vmatprep.subr.bf16.mxu0 0
      %1718 = vmatpush1.bf16.msra.mxu0 0
      %1719 = vmatprep.subr.bf16.mxu0 0
      %1720 = vmatpush1.bf16.msra.mxu0 0
      %1721 = vmatprep.subr.bf16.mxu0 0
      %1722 = vmatpush1.bf16.msra.mxu0 0
      %1723 = vmatprep.subr.bf16.mxu0 0
      %1724 = vmatpush1.bf16.msra.mxu0 0
      %1725 = vmatprep.subr.bf16.mxu0 0
      %1726 = vmatpush1.bf16.msra.mxu0 0
      %1727 = vmatprep.subr.bf16.mxu0 0
      %1728 = vmatpush1.bf16.msra.mxu0 0
      %1729 = vmatprep.mubr.bf16.mxu0 0
      %1730 = vmatmul.mubr.bf16.gmra.mrb[0].mxu0 %v1680
      %v1731 = vpop.f32.mrb[0].mxu0
      %v1732 = vadd.f32 0.0, %v1731
      %v1733 = vpop.f32.mrb[0].mxu0
      %v1734 = vpop.f32.mrb[0].mxu0
      %v1735 = vadd.f32 0.0, %v1734
      %v1736 = vpop.f32.mrb[0].mxu0
      %1737 = vmatprep.mubr.bf16.mxu0 0
      %1738 = vmatmul.mubr.bf16.gmra.mrb[0].mxu0 %v1683
      %v1739 = vpop.f32.mrb[0].mxu0
      %v1740 = vadd.f32 0.0, %v1739
      %v1741 = vpop.f32.mrb[0].mxu0
      %v1742 = vpop.f32.mrb[0].mxu0
      %v1743 = vadd.f32 0.0, %v1742
      %v1744 = vpop.f32.mrb[0].mxu0
      %1745 = vmatprep.mubr.bf16.mxu0 0
      %1746 = vmatmul.mubr.bf16.gmra.mrb[0].mxu0 %v1686
      %v1747 = vpop.f32.mrb[0].mxu0
      %v1748 = vadd.f32 0.0, %v1747
      %v1749 = vpop.f32.mrb[0].mxu0
      %v1750 = vpop.f32.mrb[0].mxu0
      %v1751 = vadd.f32 0.0, %v1750
      %v1752 = vpop.f32.mrb[0].mxu0
      %1753 = vmatprep.mubr.bf16.mxu0 0
      %1754 = vmatmul.mubr.bf16.gmra.mrb[0].mxu0 %v1689
      %v1755 = vpop.f32.mrb[0].mxu0
      %v1756 = vadd.f32 0.0, %v1755
      %v1757 = vpop.f32.mrb[0].mxu0
      %v1758 = vpop.f32.mrb[0].mxu0
      %v1759 = vadd.f32 0.0, %v1758
      %v1760 = vpop.f32.mrb[0].mxu0
      %1761 = vmatprep.mubr.bf16.mxu0 0
      %1762 = vmatmul.mubr.bf16.gmra.mrb[0].mxu0 %v1692
      %v1763 = vpop.f32.mrb[0].mxu0
      %v1764 = vadd.f32 0.0, %v1763
      %v1765 = vpop.f32.mrb[0].mxu0
      %v1766 = vpop.f32.mrb[0].mxu0
      %v1767 = vpop.f32.mrb[0].mxu0
      %1768 = vdwg.mxu0
      %v1769 = vsel %vm469, %v1732, -inf
      %1770 = vmax.xlane.f32.xlu0 %v1769
      %v1771 = vpop.xlane.xlu0 %1770
      %v1772 = vsel %vm469, %v1735, -inf
      %1773 = vmax.xlane.f32.xlu0 %v1772
      %v1774 = vpop.xlane.xlu0 %1773
      %v1775 = vsel %vm469, %v1740, -inf
      %1776 = vmax.xlane.f32.xlu0 %v1775
      %v1777 = vpop.xlane.xlu0 %1776
      %v1778 = vsel %vm469, %v1743, -inf
      %1779 = vmax.xlane.f32.xlu0 %v1778
      %v1780 = vpop.xlane.xlu0 %1779
      %v1781 = vsel %vm469, %v1748, -inf
      %1782 = vmax.xlane.f32.xlu0 %v1781
      %v1783 = vpop.xlane.xlu0 %1782
      %v1784 = vsel %vm469, %v1751, -inf
      %1785 = vmax.xlane.f32.xlu0 %v1784
      %v1786 = vpop.xlane.xlu0 %1785
      %v1787 = vsel %vm469, %v1756, -inf
      %1788 = vmax.xlane.f32.xlu0 %v1787
      %v1789 = vpop.xlane.xlu0 %1788
      %v1790 = vsel %vm469, %v1759, -inf
      %1791 = vmax.xlane.f32.xlu0 %v1790
      %v1792 = vpop.xlane.xlu0 %1791
      %v1793 = vsel %vm494, %v1764, -inf
      %1794 = vmax.xlane.f32.xlu0 %v1793
      %v1795 = vpop.xlane.xlu0 %1794
      %v1796 = vsub.f32 %v1732, %v1771
      %v1797 = vsub.f32 %v1735, %v1774
      %v1798 = vsub.f32 %v1740, %v1777
      %v1799 = vsub.f32 %v1743, %v1780
      %v1800 = vsub.f32 %v1748, %v1783
      %v1801 = vsub.f32 %v1751, %v1786
      %v1802 = vsub.f32 %v1756, %v1789
      %v1803 = vsub.f32 %v1759, %v1792
      %v1804 = vsub.f32 %v1764, %v1795
      %v1805 = vmul.f32 %v1796, 1.442695
      %v1806 = vpow.pop %v1805
      %v1807 = vmul.f32 %v1797, 1.442695
      %v1808 = vpow.pop %v1807
      %v1809 = vmul.f32 %v1798, 1.442695
      %v1810 = vpow.pop %v1809
      %v1811 = vmul.f32 %v1799, 1.442695
      %v1812 = vpow.pop %v1811
      %v1813 = vmul.f32 %v1800, 1.442695
      %v1814 = vpow.pop %v1813
      %v1815 = vmul.f32 %v1801, 1.442695
      %v1816 = vpow.pop %v1815
      %v1817 = vmul.f32 %v1802, 1.442695
      %v1818 = vpow.pop %v1817
      %v1819 = vmul.f32 %v1803, 1.442695
      %v1820 = vpow.pop %v1819
      %v1821 = vmul.f32 %v1804, 1.442695
      %v1822 = vpow.pop %v1821
      %v1823 = vsel %vm469, %v1806, 0.0
      %1824 = vadd.xlane.f32.xlu0 %v1823
      %v1825 = vpop.xlane.xlu0 %1824
      %v1826 = vsel %vm469, %v1808, 0.0
      %1827 = vadd.xlane.f32.xlu0 %v1826
      %v1828 = vpop.xlane.xlu0 %1827
      %v1829 = vsel %vm469, %v1810, 0.0
      %1830 = vadd.xlane.f32.xlu0 %v1829
      %v1831 = vpop.xlane.xlu0 %1830
      %v1832 = vsel %vm469, %v1812, 0.0
      %1833 = vadd.xlane.f32.xlu0 %v1832
      %v1834 = vpop.xlane.xlu0 %1833
      %v1835 = vsel %vm469, %v1814, 0.0
      %1836 = vadd.xlane.f32.xlu0 %v1835
      %v1837 = vpop.xlane.xlu0 %1836
      %v1838 = vsel %vm469, %v1816, 0.0
      %1839 = vadd.xlane.f32.xlu0 %v1838
      %v1840 = vpop.xlane.xlu0 %1839
      %v1841 = vsel %vm469, %v1818, 0.0
      %1842 = vadd.xlane.f32.xlu0 %v1841
      %v1843 = vpop.xlane.xlu0 %1842
      %v1844 = vsel %vm469, %v1820, 0.0
      %1845 = vadd.xlane.f32.xlu0 %v1844
      %v1846 = vpop.xlane.xlu0 %1845
      %v1847 = vsel %vm494, %v1822, 0.0
      %1848 = vadd.xlane.f32.xlu0 %v1847
      %v1849 = vpop.xlane.xlu0 %1848
      %v1850 = vrcp.pop %v1825
      %v1851 = vrcp.pop %v1828
      %v1852 = vrcp.pop %v1831
      %v1853 = vrcp.pop %v1834
      %v1854 = vrcp.pop %v1837
      %v1855 = vrcp.pop %v1840
      %v1856 = vrcp.pop %v1843
      %v1857 = vrcp.pop %v1846
      %v1858 = vrcp.pop %v1849
      %v1859 = vmul.f32 %v1806, %v1850
      %v1860 = vmul.f32 %v1808, %v1851
      %v1861 = vmul.f32 %v1810, %v1852
      %v1862 = vmul.f32 %v1812, %v1853
      %v1863 = vmul.f32 %v1814, %v1854
      %v1864 = vmul.f32 %v1816, %v1855
      %v1865 = vmul.f32 %v1818, %v1856
      %v1866 = vmul.f32 %v1820, %v1857
      %v1867 = vmul.f32 %v1822, %v1858
      %v1868 = vpack.c.bf16 %v1860, %v1859
      %v1869 = vpack.c.bf16 %v1862, %v1861
      %v1870 = vpack.c.bf16 %v1864, %v1863
      %v1871 = vpack.c.bf16 %v1866, %v1865
      %v1872 = vpack.c.bf16 %v1867, %v1867
      %v1874 = vsel %vm469, %v1868, 0
      %v1877 = vsel %vm469, %v1869, 0
      %v1880 = vsel %vm469, %v1870, 0
      %v1883 = vsel %vm469, %v1871, 0
      %v1886 = vsel %vm469, %v1872, 0
      %v1889 = vand.u32 %v1678, %v592
      %1891 = vmatprep.subr.bf16.mxu0 0
      %1892 = vmatpush1.bf16.msra.mxu0 %v1674
      %1893 = vmatprep.subr.bf16.mxu0 0
      %1894 = vmatpush1.bf16.msra.mxu0 %v1675
      %1895 = vmatprep.subr.bf16.mxu0 0
      %1896 = vmatpush1.bf16.msra.mxu0 %v1676
      %1897 = vmatprep.subr.bf16.mxu0 0
      %1898 = vmatpush1.bf16.msra.mxu0 %v1677
      %1899 = vmatprep.subr.bf16.mxu0 0
      %1900 = vmatpush1.bf16.msra.mxu0 %v1889
      %1901 = vmatprep.subr.bf16.mxu0 0
      %1902 = vmatpush1.bf16.msra.mxu0 0
      %1903 = vmatprep.subr.bf16.mxu0 0
      %1904 = vmatpush1.bf16.msra.mxu0 0
      %1905 = vmatprep.subr.bf16.mxu0 0
      %1906 = vmatpush1.bf16.msra.mxu0 0
      %1907 = vmatprep.subr.bf16.mxu0 0
      %1908 = vmatpush1.bf16.msra.mxu0 0
      %1909 = vmatprep.subr.bf16.mxu0 0
      %1910 = vmatpush1.bf16.msra.mxu0 0
      %1911 = vmatprep.subr.bf16.mxu0 0
      %1912 = vmatpush1.bf16.msra.mxu0 0
      %1913 = vmatprep.subr.bf16.mxu0 0
      %1914 = vmatpush1.bf16.msra.mxu0 0
      %1915 = vmatprep.subr.bf16.mxu0 0
      %1916 = vmatpush1.bf16.msra.mxu0 0
      %1917 = vmatprep.subr.bf16.mxu0 0
      %1918 = vmatpush1.bf16.msra.mxu0 0
      %1919 = vmatprep.subr.bf16.mxu0 0
      %1920 = vmatpush1.bf16.msra.mxu0 0
      %1921 = vmatprep.subr.bf16.mxu0 0
      %1922 = vmatpush1.bf16.msra.mxu0 0
      %1923 = vmatprep.mubr.bf16.mxu0 0
      %1924 = vmatmul.mubr.bf16.gmra.mrb[0].mxu0 %v1874
      %v1925 = vpop.f32.mrb[0].mxu0
      %v1926 = vadd.f32 0.0, %v1925
      %v1927 = vpop.f32.mrb[0].mxu0
      %v1928 = vpop.f32.mrb[0].mxu0
      %v1929 = vadd.f32 0.0, %v1928
      %v1930 = vpop.f32.mrb[0].mxu0
      %1931 = vmatprep.mubr.bf16.mxu0 0
      %1932 = vmatmul.mubr.bf16.gmra.mrb[0].mxu0 %v1877
      %v1933 = vpop.f32.mrb[0].mxu0
      %v1934 = vadd.f32 0.0, %v1933
      %v1935 = vpop.f32.mrb[0].mxu0
      %v1936 = vpop.f32.mrb[0].mxu0
      %v1937 = vadd.f32 0.0, %v1936
      %v1938 = vpop.f32.mrb[0].mxu0
      %1939 = vmatprep.mubr.bf16.mxu0 0
      %1940 = vmatmul.mubr.bf16.gmra.mrb[0].mxu0 %v1880
      %v1941 = vpop.f32.mrb[0].mxu0
      %v1942 = vadd.f32 0.0, %v1941
      %v1943 = vpop.f32.mrb[0].mxu0
      %v1944 = vpop.f32.mrb[0].mxu0
      %v1945 = vadd.f32 0.0, %v1944
      %v1946 = vpop.f32.mrb[0].mxu0
      %1947 = vmatprep.mubr.bf16.mxu0 0
      %1948 = vmatmul.mubr.bf16.gmra.mrb[0].mxu0 %v1883
      %v1949 = vpop.f32.mrb[0].mxu0
      %v1950 = vadd.f32 0.0, %v1949
      %v1951 = vpop.f32.mrb[0].mxu0
      %v1952 = vpop.f32.mrb[0].mxu0
      %v1953 = vadd.f32 0.0, %v1952
      %v1954 = vpop.f32.mrb[0].mxu0
      %1955 = vmatprep.mubr.bf16.mxu0 0
      %1956 = vmatmul.mubr.bf16.gmra.mrb[0].mxu0 %v1886
      %v1957 = vpop.f32.mrb[0].mxu0
      %v1958 = vadd.f32 0.0, %v1957
      %v1959 = vpop.f32.mrb[0].mxu0
      %v1960 = vpop.f32.mrb[0].mxu0
      %v1961 = vpop.f32.mrb[0].mxu0
      %1962 = vdwg.mxu0
      %v1963 = vpack.c.bf16 %v1929, %v1926
      %v1964 = vpack.c.bf16 %v1937, %v1934
      %v1965 = vpack.c.bf16 %v1945, %v1942
      %v1966 = vpack.c.bf16 %v1953, %v1950
      %v1967 = vpack.c.bf16 %v1958, %v1958
      %s1968 = scalar_lea.vmem %s4, 12
      %v1969 = vld [vmem:[%s1968] sm:$0xf]
      %v1971 = vsel %vm377, %v1963, 0
      %v1974 = vsel %vm377, %v1964, 0
      %v1977 = vsel %vm377, %v1965, 0
      %v1980 = vsel %vm377, %v1966, 0
      %v1983 = vsel %vm377, %v1967, 0
      %v1986 = vsel %vm393, %v1969, 0
      %1988 = vmatprep.subr.bf16.mxu0 0
      %1989 = vmatpush1.bf16.msra.mxu0 %v1986
      %1990 = vmatprep.subr.bf16.mxu0 0
      %1991 = vmatpush1.bf16.msra.mxu0 0
      %1992 = vmatprep.subr.bf16.mxu0 0
      %1993 = vmatpush1.bf16.msra.mxu0 0
      %1994 = vmatprep.subr.bf16.mxu0 0
      %1995 = vmatpush1.bf16.msra.mxu0 0
      %1996 = vmatprep.subr.bf16.mxu0 0
      %1997 = vmatpush1.bf16.msra.mxu0 0
      %1998 = vmatprep.subr.bf16.mxu0 0
      %1999 = vmatpush1.bf16.msra.mxu0 0
      %2000 = vmatprep.subr.bf16.mxu0 0
      %2001 = vmatpush1.bf16.msra.mxu0 0
      %2002 = vmatprep.subr.bf16.mxu0 0
      %2003 = vmatpush1.bf16.msra.mxu0 0
      %2004 = vmatprep.subr.bf16.mxu0 0
      %2005 = vmatpush1.bf16.msra.mxu0 0
      %2006 = vmatprep.subr.bf16.mxu0 0
      %2007 = vmatpush1.bf16.msra.mxu0 0
      %2008 = vmatprep.subr.bf16.mxu0 0
      %2009 = vmatpush1.bf16.msra.mxu0 0
      %2010 = vmatprep.subr.bf16.mxu0 0
      %2011 = vmatpush1.bf16.msra.mxu0 0
      %2012 = vmatprep.subr.bf16.mxu0 0
      %2013 = vmatpush1.bf16.msra.mxu0 0
      %2014 = vmatprep.subr.bf16.mxu0 0
      %2015 = vmatpush1.bf16.msra.mxu0 0
      %2016 = vmatprep.subr.bf16.mxu0 0
      %2017 = vmatpush1.bf16.msra.mxu0 0
      %2018 = vmatprep.subr.bf16.mxu0 0
      %2019 = vmatpush1.bf16.msra.mxu0 0
      %2020 = vmatprep.mubr.bf16.mxu0 0
      %2021 = vmatmul.mubr.bf16.gmra.mrb[0].mxu0 %v1971
      %v2022 = vpop.f32.mrb[0].mxu0
      %v2023 = vadd.f32 0.0, %v2022
      %v2024 = vpop.f32.mrb[0].mxu0
      %v2025 = vpop.f32.mrb[0].mxu0
      %v2026 = vadd.f32 0.0, %v2025
      %v2027 = vpop.f32.mrb[0].mxu0
      %2028 = vmatprep.mubr.bf16.mxu0 0
      %2029 = vmatmul.mubr.bf16.gmra.mrb[0].mxu0 %v1974
      %v2030 = vpop.f32.mrb[0].mxu0
      %v2031 = vadd.f32 0.0, %v2030
      %v2032 = vpop.f32.mrb[0].mxu0
      %v2033 = vpop.f32.mrb[0].mxu0
      %v2034 = vadd.f32 0.0, %v2033
      %v2035 = vpop.f32.mrb[0].mxu0
      %2036 = vmatprep.mubr.bf16.mxu0 0
      %2037 = vmatmul.mubr.bf16.gmra.mrb[0].mxu0 %v1977
      %v2038 = vpop.f32.mrb[0].mxu0
      %v2039 = vadd.f32 0.0, %v2038
      %v2040 = vpop.f32.mrb[0].mxu0
      %v2041 = vpop.f32.mrb[0].mxu0
      %v2042 = vadd.f32 0.0, %v2041
      %v2043 = vpop.f32.mrb[0].mxu0
      %2044 = vmatprep.mubr.bf16.mxu0 0
      %2045 = vmatmul.mubr.bf16.gmra.mrb[0].mxu0 %v1980
      %v2046 = vpop.f32.mrb[0].mxu0
      %v2047 = vadd.f32 0.0, %v2046
      %v2048 = vpop.f32.mrb[0].mxu0
      %v2049 = vpop.f32.mrb[0].mxu0
      %v2050 = vadd.f32 0.0, %v2049
      %v2051 = vpop.f32.mrb[0].mxu0
      %2052 = vmatprep.mubr.bf16.mxu0 0
      %2053 = vmatmul.mubr.bf16.gmra.mrb[0].mxu0 %v1983
      %v2054 = vpop.f32.mrb[0].mxu0
      %v2055 = vadd.f32 0.0, %v2054
      %v2056 = vpop.f32.mrb[0].mxu0
      %v2057 = vpop.f32.mrb[0].mxu0
      %v2058 = vpop.f32.mrb[0].mxu0
      %2059 = vdwg.mxu0
      %v2060 = vadd.f32 %v1628, %v2023
      %v2061 = vadd.f32 %v1629, %v2026
      %v2062 = vadd.f32 %v1630, %v2031
      %v2063 = vadd.f32 %v1631, %v2034
      %v2064 = vadd.f32 %v1632, %v2039
      %v2065 = vadd.f32 %v1633, %v2042
      %v2066 = vadd.f32 %v1634, %v2047
      %v2067 = vadd.f32 %v1635, %v2050
      %v2068 = vadd.f32 %v1636, %v2055
      %vm2069 = vcmask 261120
      %2070 = vst.msk [vmem:[%s311] sm:$0xff] %vm2069, %v2060
      %2071 = vst.msk [vmem:[%s311 + $0x8] sm:$0xff] %vm2069, %v2061
      %2072 = vst.msk [vmem:[%s311 + $0x10] sm:$0xff] %vm2069, %v2062
      %2073 = vst.msk [vmem:[%s311 + $0x18] sm:$0xff] %vm2069, %v2063
      %2074 = vst.msk [vmem:[%s311 + $0x20] sm:$0xff] %vm2069, %v2064
      %2075 = vst.msk [vmem:[%s311 + $0x28] sm:$0xff] %vm2069, %v2065
      %2076 = vst.msk [vmem:[%s311 + $0x30] sm:$0xff] %vm2069, %v2066
      %2077 = vst.msk [vmem:[%s311 + $0x38] sm:$0xff] %vm2069, %v2067
      %vm2078 = vcmask 253952
      %2079 = vst.msk [vmem:[%s311 + $0x40] sm:$0x1] %vm2078, %v2068
      %p2080 = scmp.lt.s32.totalorder %s17, 1
      %s2081 = scalar_select %p2080, %s17, 1
      %s2082 = smul.addr %s2081, 9
      %s2083 = smul.addr %s2082, 8
      %s2084 = scalar_lea.vmem %s6, %s2083
      // Predicated region
      $region45: #{masked_encoder_2d_forward.12} parent=43 // pred_check
        %p2085 = pneg %p181
      $region46: #{masked_encoder_2d_forward.12} parent=43 // pred_check_branch
        %2087 = sbr.rel (%p2085) target = $region48
      $region47: #{masked_encoder_2d_forward.12} parent=43 // pred_region
        _
      $region48: #{masked_encoder_2d_forward.12} parent=43 // pred_fallthru
        _
    $region44: #{masked_encoder_2d_forward.12} parent=5 // pred_fallthru
      _
    %p2088 = scmp.le.s32.totalorder 2, %s12
    // Predicated region
    $region49: #{masked_encoder_2d_forward.12} parent=5 // pred_check
      %p2089 = pneg %p2088
    $region50: #{masked_encoder_2d_forward.12} parent=5 // pred_check_branch
      %2091 = sbr.rel (%p2089) target = $region52
    $region51: #{masked_encoder_2d_forward.12} parent=5 // pred_region
      %s2092 = ssub.s32 %s12, 2
      // Predicated region
      $region53: #{masked_encoder_2d_forward.12} parent=51 // pred_check
        %p2093 = pneg %p187
      $region54: #{masked_encoder_2d_forward.12} parent=51 // pred_check_branch
        %2095 = sbr.rel (%p2093) target = $region56
      $region55: #{masked_encoder_2d_forward.12} parent=51 // pred_region
        %p2096 = scmp.lt.s32.totalorder %s18, 1
        %s2097 = scalar_select %p2096, %s18, 1
        %s2098 = smul.addr %s2097, 9
        %s2099 = smul.addr %s2098, 8
        %s2100 = scalar_lea.vmem %s6, %s2099
      $region56: #{masked_encoder_2d_forward.12} parent=51 // pred_fallthru
        _
    $region52: #{masked_encoder_2d_forward.12} parent=5 // pred_fallthru
      _
  $region6: #{masked_encoder_2d_forward.12} parent=0 // loop_footer
    %s16 = sadd.s32 1, %s12
  $region7: #{masked_encoder_2d_forward.12} parent=0 // loop_footer_branch
    %11 = sbr.rel target = $region3
  $region8: #{masked_encoder_2d_forward.12} parent=0 // loop_exit
    _

</llo_original>
